<compile_context>
chip_gen: v6e
topology: v6e:2x2x1
jax: 0.10.0
libtpu: 0.0.40
codegen_flags: <defaults>
</compile_context>

<pallas_src>
import functools

import jax
import jax.numpy as jnp
from jax.experimental import pallas as pl
from jax.experimental.pallas import tpu as pltpu

_LANE = 128


def _round_up(n, m):
    return ((n + m - 1) // m) * m


# --------------------------------- kernel --------------------------------- #

def _bottleneck_kernel(x_ref, w1_ref, b1_ref, w2_ref, b2_ref, o_ref,
                       *, H, W, use_add):
    """One image per grid step.

    x_ref : (1, H*W, Cin)        f32
    w1_ref: (Cin, Ch_p)          bf16  (BN scale folded in)
    b1_ref: (1, Ch_p)            f32
    w2_ref: (9*Ch_p, Cout_p)     bf16  (3x3 weight, im2col layout, BN folded)
    b2_ref: (1, Cout_p)          f32
    o_ref : (1, H*W, Cout_p)     f32
    """
    HW = H * W
    cout_p = w2_ref.shape[1]

    x = x_ref[0]                                                  # (HW, Cin) f32

    # ---- conv1 (1x1) + bias + SiLU : bf16 matmul, f32 accumulate ----------
    y_pre = jnp.dot(x.astype(jnp.bfloat16), w1_ref[...],
                    preferred_element_type=jnp.float32) + b1_ref[...]
    y = y_pre * jax.nn.sigmoid(y_pre)                             # (HW, Ch_p) f32

    # ---- conv2 (3x3, pad=1) as im2col ------------------------------------
    # Tap (dh, dw) of the 3x3 stencil is y shifted by dh*W + dw in flattened
    # (HW, C) space: an XLU sublane rotation + an edge mask.  All 9 taps are
    # concatenated along lanes and fed to one large-K MXU matmul.
    r = jax.lax.broadcasted_iota(jnp.int32, (HW, 1), 0)           # flat row id
    w_idx = r % W                                                 # column id

    taps = []
    for dh in (-1, 0, 1):
        for dw in (-1, 0, 1):
            shift = (-(dh * W + dw)) % HW                         # jnp.roll semantics
            t = pltpu.roll(y, shift=shift, axis=0) if shift else y
            conds = []
            if dh == -1:
                conds.append(r >= W)                              # h >= 1
            elif dh == 1:
                conds.append(r < HW - W)                          # h <= H-2
            if dw == -1:
                conds.append(w_idx >= 1)
            elif dw == 1:
                conds.append(w_idx <= W - 2)
            if conds:
                mask = conds[0]
                for c in conds[1:]:
                    mask = jnp.logical_and(mask, c)
                t = jnp.where(mask, t, 0.0)
            taps.append(t)

    col = jnp.concatenate(taps, axis=1).astype(jnp.bfloat16)      # (HW, 9*Ch_p)
    z_pre = jnp.dot(col, w2_ref[...],
                    preferred_element_type=jnp.float32) + b2_ref[...]
    z = z_pre * jax.nn.sigmoid(z_pre)                             # (HW, Cout_p) f32

    # ---- residual ----------------------------------------------------------
    if use_add:
        ident = x                                                 # Cin == Cout
        pad = cout_p - ident.shape[1]
        if pad:
            ident = jnp.concatenate(
                [ident, jnp.zeros((HW, pad), jnp.float32)], axis=1)
        z = z + ident

    o_ref[0] = z.astype(o_ref.dtype)


# -------------------------------- wrapper ---------------------------------- #

def bottleneck_forward(x_nhwc, p, shortcut=True):
    """x_nhwc: (B, H, W, Cin) f32.  Returns (B, H, W, Cout) f32."""
    B, H, W, cin = x_nhwc.shape
    cout = p["cout"]
    ch_p = p["w1"].shape[1]
    cout_p = p["w2"].shape[1]
    use_add = shortcut and (cin == cout)
    HW = H * W

    x2 = x_nhwc.reshape(B, HW, cin)            # contiguous merge: free in XLA

    kernel = functools.partial(_bottleneck_kernel, H=H, W=W, use_add=use_add)

    grid_spec = pltpu.PrefetchScalarGridSpec(
        num_scalar_prefetch=0,
        grid=(B,),
        in_specs=[
            pl.BlockSpec((1, HW, cin), lambda b: (b, 0, 0)),
            # Weights / biases: constant block index -> DMA'd once, stays resident.
            pl.BlockSpec((cin, ch_p), lambda b: (0, 0)),
            pl.BlockSpec((1, ch_p), lambda b: (0, 0)),
            pl.BlockSpec((9 * ch_p, cout_p), lambda b: (0, 0)),
            pl.BlockSpec((1, cout_p), lambda b: (0, 0)),
        ],
        out_specs=pl.BlockSpec((1, HW, cout_p), lambda b: (b, 0, 0)),
    )

    out = pl.pallas_call(
        kernel,
        out_shape=jax.ShapeDtypeStruct((B, HW, cout_p), jnp.float32),
        grid_spec=grid_spec,
        compiler_params=pltpu.CompilerParams(
            dimension_semantics=("parallel",),      # batch images are independent
            vmem_limit_bytes=32 * 1024 * 1024,
        ),
    )(x2, p["w1"], p["b1"], p["w2"], p["b2"])

    out = out.reshape(B, H, W, cout_p)
    # Real YOLOX channel counts are multiples of 128 -> this slice disappears.
    return out[..., :cout]


# -------------------------- parameter construction ------------------------- #

def _folded_bn(key, c):
    k1, k2, k3, k4 = jax.random.split(key, 4)
    gamma = jax.random.uniform(k1, (c,), minval=0.5, maxval=1.5)
    beta = 0.1 * jax.random.normal(k2, (c,))
    mean = 0.1 * jax.random.normal(k3, (c,))
    var = jax.random.uniform(k4, (c,), minval=0.5, maxval=1.5)
    scale = gamma / jnp.sqrt(var + 1e-5)
    bias = beta - mean * scale
    return scale.astype(jnp.float32), bias.astype(jnp.float32)


def make_params(key, cin, cout, expansion=0.5):
    hidden = int(cout * expansion)
    ch_p = _round_up(hidden, _LANE)
    cout_p = _round_up(cout, _LANE)
    ks = jax.random.split(key, 4)

    w1 = (0.2 * jax.random.normal(ks[0], (cin, hidden))).astype(jnp.float32)
    s1, b1 = _folded_bn(ks[1], hidden)
    w2 = (0.15 * jax.random.normal(ks[2], (3, 3, hidden, cout))).astype(jnp.float32)
    s2, b2 = _folded_bn(ks[3], cout)

    # Fold BN scale into the conv weights (conv has bias=False in BaseConv).
    w1f = w1 * s1[None, :]
    w2f = w2 * s2[None, None, None, :]

    # Pad channel dims to lane-dense multiples of 128; reshape the 3x3 weight
    # to im2col layout (9*Ch_p, Cout_p); matmul weights stored in bf16.
    w1p = jnp.zeros((cin, ch_p), jnp.float32).at[:, :hidden].set(w1f)
    b1p = jnp.zeros((1, ch_p), jnp.float32).at[:, :hidden].set(b1)
    w2p = jnp.zeros((3, 3, ch_p, cout_p), jnp.float32).at[:, :, :hidden, :cout].set(w2f)
    b2p = jnp.zeros((1, cout_p), jnp.float32).at[:, :cout].set(b2)

    return {
        "w1": w1p.astype(jnp.bfloat16),
        "b1": b1p,
        "w2": w2p.reshape(9 * ch_p, cout_p).astype(jnp.bfloat16),
        "b2": b2p,
        "cin": cin,
        "cout": cout,
        "hidden": hidden,
    }


# ------------------------------ JAX reference ------------------------------ #

def ref_forward(x_nhwc, p, shortcut=True):
    """Reference Bottleneck forward (f32 math on the same bf16-rounded,
    BN-folded weights the kernel uses, so the comparison isolates kernel
    structure rather than bf16 rounding)."""
    cin, cout = p["cin"], p["cout"]
    w1 = p["w1"].astype(jnp.float32)                         # (cin, ch_p)
    ch_p = w1.shape[1]
    w2 = p["w2"].astype(jnp.float32).reshape(3, 3, ch_p, -1)
    b1 = p["b1"].reshape(1, 1, 1, -1)
    b2 = p["b2"].reshape(1, 1, 1, -1)
    use_add = shortcut and (cin == cout)

    xb = x_nhwc.astype(jnp.bfloat16).astype(jnp.float32)     # mirror kernel rounding
    y = jnp.einsum("nhwc,cd->nhwd", xb, w1) + b1
    y = y * jax.nn.sigmoid(y)
    yb = y.astype(jnp.bfloat16).astype(jnp.float32)
    z = jax.lax.conv_general_dilated(
        yb, w2, (1, 1), "SAME",
        dimension_numbers=("NHWC", "HWIO", "NHWC")) + b2
    z = z * jax.nn.sigmoid(z)
    z = z[..., :cout]
    if use_add:
        z = z + x_nhwc
    return z


# ----------------------------------- main ---------------------------------- #

if __name__ == "__main__":
    # in_channels == out_channels -> shortcut residual is active (module default).
    B, C, H, W = 2, 8, 16, 16
    expansion = 0.5

    key = jax.random.PRNGKey(0)
    kx, kp = jax.random.split(key)
    x_nchw = jax.random.normal(kx, (B, C, H, W), dtype=jnp.float32)  # PyTorch layout
    # One-time layout conversion outside the kernel hot path (production callers
    # would keep activations in NHWC end-to-end).
    x_nhwc = jnp.transpose(x_nchw, (0, 2, 3, 1))

    params = make_params(kp, C, C, expansion)

    out = jax.block_until_ready(bottleneck_forward(x_nhwc, params))
    ref = jax.block_until_ready(ref_forward(x_nhwc, params))

    assert out.shape == (B, H, W, C), out.shape
    max_err = float(jnp.max(jnp.abs(out - ref)))
    assert jnp.allclose(out, ref, rtol=1e-2, atol=1e-2), max_err
    print("KERNEL_OK")
</pallas_src>

<mosaic_0001>
module attributes {stable_mosaic.version = 11 : i64} {
  func.func @_bottleneck_kernel(%arg0: i32, %arg1: memref<1x256x8xf32, #tpu.memory_space<vmem>>, %arg2: memref<8x128xbf16, #tpu.memory_space<vmem>>, %arg3: memref<1x128xf32, #tpu.memory_space<vmem>>, %arg4: memref<1152x128xbf16, #tpu.memory_space<vmem>>, %arg5: memref<1x128xf32, #tpu.memory_space<vmem>>, %arg6: memref<1x256x128xf32, #tpu.memory_space<vmem>>) attributes {dimension_semantics = [#tpu.dimension_semantics<parallel>], iteration_bounds = array<i64: 2>, scalar_prefetch = 0 : i64, scratch_operands = 0 : i64, tpu.core_type = #tpu.core_type<tc>, window_params = [{transform_indices = @transform_0, window_bounds = array<i64: 1, 256, 8>}, {pipeline_mode = #tpu.pipeline_mode<synchronous>, transform_indices = @transform_1, window_bounds = array<i64: 8, 128>}, {pipeline_mode = #tpu.pipeline_mode<synchronous>, transform_indices = @transform_2, window_bounds = array<i64: 1, 128>}, {pipeline_mode = #tpu.pipeline_mode<synchronous>, transform_indices = @transform_3, window_bounds = array<i64: 1152, 128>}, {pipeline_mode = #tpu.pipeline_mode<synchronous>, transform_indices = @transform_4, window_bounds = array<i64: 1, 128>}, {transform_indices = @transform_5, window_bounds = array<i64: 1, 256, 128>}]} {
    %c0 = arith.constant 0 : index
    %c0_0 = arith.constant 0 : index
    %c0_1 = arith.constant 0 : index
    %0 = vector.load %arg1[%c0, %c0_0, %c0_1] : memref<1x256x8xf32, #tpu.memory_space<vmem>>, vector<1x256x8xf32>
    %1 = vector.shape_cast %0 : vector<1x256x8xf32> to vector<256x8xf32>
    %2 = arith.truncf %1 : vector<256x8xf32> to vector<256x8xbf16>
    %c0_2 = arith.constant 0 : index
    %c0_3 = arith.constant 0 : index
    %3 = vector.load %arg2[%c0_2, %c0_3] : memref<8x128xbf16, #tpu.memory_space<vmem>>, vector<8x128xbf16>
    %cst = arith.constant dense<0.000000e+00> : vector<256x128xf32>
    %4 = tpu.matmul %2, %3, %cst {dimension_numbers = #tpu.dot_dimension_numbers<[1], [0], [0], [1], [0, 0, 1, 1], [], []>} : vector<256x8xbf16>, vector<8x128xbf16>, vector<256x128xf32> -> vector<256x128xf32>
    %c0_4 = arith.constant 0 : index
    %c0_5 = arith.constant 0 : index
    %5 = vector.load %arg3[%c0_4, %c0_5] : memref<1x128xf32, #tpu.memory_space<vmem>>, vector<1x128xf32>
    %6 = vector.broadcast %5 : vector<1x128xf32> to vector<256x128xf32>
    %7 = arith.addf %4, %6 : vector<256x128xf32>
    %8 = arith.negf %7 : vector<256x128xf32>
    %9 = math.exp %8 : vector<256x128xf32>
    %cst_6 = arith.constant 1.000000e+00 : f32
    %10 = vector.broadcast %cst_6 : f32 to vector<256x128xf32>
    %11 = arith.addf %10, %9 : vector<256x128xf32>
    %12 = arith.divf %10, %11 : vector<256x128xf32>
    %13 = arith.mulf %7, %12 : vector<256x128xf32>
    %14 = tpu.iota {dimensions = array<i32: 0>} : vector<256x1xi32>
    %c16_i32 = arith.constant 16 : i32
    %c0_i32 = arith.constant 0 : i32
    %15 = arith.cmpi eq, %c16_i32, %c0_i32 : i32
    %c1_i32 = arith.constant 1 : i32
    %16 = arith.select %15, %c1_i32, %c16_i32 : i32
    %17 = vector.broadcast %16 : i32 to vector<256x1xi32>
    %18 = arith.remsi %14, %17 : vector<256x1xi32>
    %c0_i32_7 = arith.constant 0 : i32
    %19 = vector.broadcast %c0_i32_7 : i32 to vector<256x1xi32>
    %20 = arith.cmpi ne, %18, %19 : vector<256x1xi32>
    %c0_i32_8 = arith.constant 0 : i32
    %21 = vector.broadcast %c0_i32_8 : i32 to vector<256x1xi32>
    %22 = arith.cmpi slt, %18, %21 : vector<256x1xi32>
    %c0_i32_9 = arith.constant 0 : i32
    %23 = arith.cmpi slt, %16, %c0_i32_9 : i32
    %24 = vector.broadcast %23 : i1 to vector<256x1xi1>
    %25 = vector.broadcast %24 : vector<256x1xi1> to vector<256x1xi1>
    %26 = arith.xori %22, %25 : vector<256x1xi1>
    %27 = arith.andi %26, %20 : vector<256x1xi1>
    %28 = vector.broadcast %16 : i32 to vector<256x1xi32>
    %29 = arith.addi %18, %28 : vector<256x1xi32>
    %30 = arith.select %27, %29, %18 : vector<256x1xi1>, vector<256x1xi32>
    %c17_i32 = arith.constant 17 : i32
    %31 = tpu.dynamic_rotate %13 by %c17_i32 dim 0 : vector<256x128xf32>, i32 -> vector<256x128xf32>
    %c16_i32_10 = arith.constant 16 : i32
    %32 = vector.broadcast %c16_i32_10 : i32 to vector<256x1xi32>
    %33 = arith.cmpi sge, %14, %32 : vector<256x1xi32>
    %c1_i32_11 = arith.constant 1 : i32
    %34 = vector.broadcast %c1_i32_11 : i32 to vector<256x1xi32>
    %35 = arith.cmpi sge, %30, %34 : vector<256x1xi32>
    %36 = arith.andi %33, %35 : vector<256x1xi1>
    %cst_12 = arith.constant 0.000000e+00 : f32
    %37 = vector.shape_cast %36 : vector<256x1xi1> to vector<256x1xi1>
    %38 = vector.broadcast %37 : vector<256x1xi1> to vector<256x128xi1>
    %39 = vector.broadcast %cst_12 : f32 to vector<256x128xf32>
    %40 = arith.select %38, %31, %39 : vector<256x128xi1>, vector<256x128xf32>
    %c16_i32_13 = arith.constant 16 : i32
    %41 = tpu.dynamic_rotate %13 by %c16_i32_13 dim 0 : vector<256x128xf32>, i32 -> vector<256x128xf32>
    %c16_i32_14 = arith.constant 16 : i32
    %42 = vector.broadcast %c16_i32_14 : i32 to vector<256x1xi32>
    %43 = arith.cmpi sge, %14, %42 : vector<256x1xi32>
    %cst_15 = arith.constant 0.000000e+00 : f32
    %44 = vector.shape_cast %43 : vector<256x1xi1> to vector<256x1xi1>
    %45 = vector.broadcast %44 : vector<256x1xi1> to vector<256x128xi1>
    %46 = vector.broadcast %cst_15 : f32 to vector<256x128xf32>
    %47 = arith.select %45, %41, %46 : vector<256x128xi1>, vector<256x128xf32>
    %c15_i32 = arith.constant 15 : i32
    %48 = tpu.dynamic_rotate %13 by %c15_i32 dim 0 : vector<256x128xf32>, i32 -> vector<256x128xf32>
    %c16_i32_16 = arith.constant 16 : i32
    %49 = vector.broadcast %c16_i32_16 : i32 to vector<256x1xi32>
    %50 = arith.cmpi sge, %14, %49 : vector<256x1xi32>
    %c14_i32 = arith.constant 14 : i32
    %51 = vector.broadcast %c14_i32 : i32 to vector<256x1xi32>
    %52 = arith.cmpi sle, %30, %51 : vector<256x1xi32>
    %53 = arith.andi %50, %52 : vector<256x1xi1>
    %cst_17 = arith.constant 0.000000e+00 : f32
    %54 = vector.shape_cast %53 : vector<256x1xi1> to vector<256x1xi1>
    %55 = vector.broadcast %54 : vector<256x1xi1> to vector<256x128xi1>
    %56 = vector.broadcast %cst_17 : f32 to vector<256x128xf32>
    %57 = arith.select %55, %48, %56 : vector<256x128xi1>, vector<256x128xf32>
    %c1_i32_18 = arith.constant 1 : i32
    %58 = tpu.dynamic_rotate %13 by %c1_i32_18 dim 0 : vector<256x128xf32>, i32 -> vector<256x128xf32>
    %c1_i32_19 = arith.constant 1 : i32
    %59 = vector.broadcast %c1_i32_19 : i32 to vector<256x1xi32>
    %60 = arith.cmpi sge, %30, %59 : vector<256x1xi32>
    %cst_20 = arith.constant 0.000000e+00 : f32
    %61 = vector.shape_cast %60 : vector<256x1xi1> to vector<256x1xi1>
    %62 = vector.broadcast %61 : vector<256x1xi1> to vector<256x128xi1>
    %63 = vector.broadcast %cst_20 : f32 to vector<256x128xf32>
    %64 = arith.select %62, %58, %63 : vector<256x128xi1>, vector<256x128xf32>
    %c255_i32 = arith.constant 255 : i32
    %65 = tpu.dynamic_rotate %13 by %c255_i32 dim 0 : vector<256x128xf32>, i32 -> vector<256x128xf32>
    %c14_i32_21 = arith.constant 14 : i32
    %66 = vector.broadcast %c14_i32_21 : i32 to vector<256x1xi32>
    %67 = arith.cmpi sle, %30, %66 : vector<256x1xi32>
    %cst_22 = arith.constant 0.000000e+00 : f32
    %68 = vector.shape_cast %67 : vector<256x1xi1> to vector<256x1xi1>
    %69 = vector.broadcast %68 : vector<256x1xi1> to vector<256x128xi1>
    %70 = vector.broadcast %cst_22 : f32 to vector<256x128xf32>
    %71 = arith.select %69, %65, %70 : vector<256x128xi1>, vector<256x128xf32>
    %c241_i32 = arith.constant 241 : i32
    %72 = tpu.dynamic_rotate %13 by %c241_i32 dim 0 : vector<256x128xf32>, i32 -> vector<256x128xf32>
    %c240_i32 = arith.constant 240 : i32
    %73 = vector.broadcast %c240_i32 : i32 to vector<256x1xi32>
    %74 = arith.cmpi slt, %14, %73 : vector<256x1xi32>
    %c1_i32_23 = arith.constant 1 : i32
    %75 = vector.broadcast %c1_i32_23 : i32 to vector<256x1xi32>
    %76 = arith.cmpi sge, %30, %75 : vector<256x1xi32>
    %77 = arith.andi %74, %76 : vector<256x1xi1>
    %cst_24 = arith.constant 0.000000e+00 : f32
    %78 = vector.shape_cast %77 : vector<256x1xi1> to vector<256x1xi1>
    %79 = vector.broadcast %78 : vector<256x1xi1> to vector<256x128xi1>
    %80 = vector.broadcast %cst_24 : f32 to vector<256x128xf32>
    %81 = arith.select %79, %72, %80 : vector<256x128xi1>, vector<256x128xf32>
    %c240_i32_25 = arith.constant 240 : i32
    %82 = tpu.dynamic_rotate %13 by %c240_i32_25 dim 0 : vector<256x128xf32>, i32 -> vector<256x128xf32>
    %c240_i32_26 = arith.constant 240 : i32
    %83 = vector.broadcast %c240_i32_26 : i32 to vector<256x1xi32>
    %84 = arith.cmpi slt, %14, %83 : vector<256x1xi32>
    %cst_27 = arith.constant 0.000000e+00 : f32
    %85 = vector.shape_cast %84 : vector<256x1xi1> to vector<256x1xi1>
    %86 = vector.broadcast %85 : vector<256x1xi1> to vector<256x128xi1>
    %87 = vector.broadcast %cst_27 : f32 to vector<256x128xf32>
    %88 = arith.select %86, %82, %87 : vector<256x128xi1>, vector<256x128xf32>
    %c239_i32 = arith.constant 239 : i32
    %89 = tpu.dynamic_rotate %13 by %c239_i32 dim 0 : vector<256x128xf32>, i32 -> vector<256x128xf32>
    %c240_i32_28 = arith.constant 240 : i32
    %90 = vector.broadcast %c240_i32_28 : i32 to vector<256x1xi32>
    %91 = arith.cmpi slt, %14, %90 : vector<256x1xi32>
    %c14_i32_29 = arith.constant 14 : i32
    %92 = vector.broadcast %c14_i32_29 : i32 to vector<256x1xi32>
    %93 = arith.cmpi sle, %30, %92 : vector<256x1xi32>
    %94 = arith.andi %91, %93 : vector<256x1xi1>
    %cst_30 = arith.constant 0.000000e+00 : f32
    %95 = vector.shape_cast %94 : vector<256x1xi1> to vector<256x1xi1>
    %96 = vector.broadcast %95 : vector<256x1xi1> to vector<256x128xi1>
    %97 = vector.broadcast %cst_30 : f32 to vector<256x128xf32>
    %98 = arith.select %96, %89, %97 : vector<256x128xi1>, vector<256x128xf32>
    %99 = tpu.concatenate %40, %47, %57, %64, %13, %71, %81, %88, %98 in 1 : vector<256x128xf32>, vector<256x128xf32>, vector<256x128xf32>, vector<256x128xf32>, vector<256x128xf32>, vector<256x128xf32>, vector<256x128xf32>, vector<256x128xf32>, vector<256x128xf32> -> vector<256x1152xf32>
    %100 = arith.truncf %99 : vector<256x1152xf32> to vector<256x1152xbf16>
    %c0_31 = arith.constant 0 : index
    %c0_32 = arith.constant 0 : index
    %101 = vector.load %arg4[%c0_31, %c0_32] : memref<1152x128xbf16, #tpu.memory_space<vmem>>, vector<1152x128xbf16>
    %cst_33 = arith.constant dense<0.000000e+00> : vector<256x128xf32>
    %102 = tpu.matmul %100, %101, %cst_33 {dimension_numbers = #tpu.dot_dimension_numbers<[1], [0], [0], [1], [0, 0, 1, 1], [], []>} : vector<256x1152xbf16>, vector<1152x128xbf16>, vector<256x128xf32> -> vector<256x128xf32>
    %c0_34 = arith.constant 0 : index
    %c0_35 = arith.constant 0 : index
    %103 = vector.load %arg5[%c0_34, %c0_35] : memref<1x128xf32, #tpu.memory_space<vmem>>, vector<1x128xf32>
    %104 = vector.broadcast %103 : vector<1x128xf32> to vector<256x128xf32>
    %105 = arith.addf %102, %104 : vector<256x128xf32>
    %106 = arith.negf %105 : vector<256x128xf32>
    %107 = math.exp %106 : vector<256x128xf32>
    %cst_36 = arith.constant 1.000000e+00 : f32
    %108 = vector.broadcast %cst_36 : f32 to vector<256x128xf32>
    %109 = arith.addf %108, %107 : vector<256x128xf32>
    %110 = arith.divf %108, %109 : vector<256x128xf32>
    %111 = arith.mulf %105, %110 : vector<256x128xf32>
    %cst_37 = arith.constant 0.000000e+00 : f32
    %112 = vector.broadcast %cst_37 : f32 to vector<256x120xf32>
    %113 = tpu.concatenate %1, %112 in 1 : vector<256x8xf32>, vector<256x120xf32> -> vector<256x128xf32>
    %114 = arith.addf %111, %113 : vector<256x128xf32>
    %c0_38 = arith.constant 0 : index
    %c0_39 = arith.constant 0 : index
    %c0_40 = arith.constant 0 : index
    %115 = vector.load %arg6[%c0_38, %c0_39, %c0_40] : memref<1x256x128xf32, #tpu.memory_space<vmem>>, vector<1x256x128xf32>
    %116 = vector.shape_cast %115 : vector<1x256x128xf32> to vector<256x128xf32>
    %117 = vector.shape_cast %114 : vector<256x128xf32> to vector<1x256x128xf32>
    tpu.vector_store %arg6[%c0_38, %c0_39, %c0_40], %117 {strides = array<i32>} : memref<1x256x128xf32, #tpu.memory_space<vmem>>, vector<1x256x128xf32>,
    return
  }
  func.func @transform_0(%arg0: i32) -> (i32, i32, i32) {
    %c0_i32 = arith.constant 0 : i32
    %c0_i32_0 = arith.constant 0 : i32
    %c0_i32_1 = arith.constant 0 : i32
    return %arg0, %c0_i32, %c0_i32_0 : i32, i32, i32
  }
  func.func @transform_1(%arg0: i32) -> (i32, i32) {
    %c0_i32 = arith.constant 0 : i32
    %c0_i32_0 = arith.constant 0 : i32
    %c0_i32_1 = arith.constant 0 : i32
    return %c0_i32, %c0_i32_0 : i32, i32
  }
  func.func @transform_2(%arg0: i32) -> (i32, i32) {
    %c0_i32 = arith.constant 0 : i32
    %c0_i32_0 = arith.constant 0 : i32
    %c0_i32_1 = arith.constant 0 : i32
    return %c0_i32, %c0_i32_0 : i32, i32
  }
  func.func @transform_3(%arg0: i32) -> (i32, i32) {
    %c0_i32 = arith.constant 0 : i32
    %c0_i32_0 = arith.constant 0 : i32
    %c0_i32_1 = arith.constant 0 : i32
    return %c0_i32, %c0_i32_0 : i32, i32
  }
  func.func @transform_4(%arg0: i32) -> (i32, i32) {
    %c0_i32 = arith.constant 0 : i32
    %c0_i32_0 = arith.constant 0 : i32
    %c0_i32_1 = arith.constant 0 : i32
    return %c0_i32, %c0_i32_0 : i32, i32
  }
  func.func @transform_5(%arg0: i32) -> (i32, i32, i32) {
    %c0_i32 = arith.constant 0 : i32
    %c0_i32_0 = arith.constant 0 : i32
    %c0_i32_1 = arith.constant 0 : i32
    return %arg0, %c0_i32, %c0_i32_0 : i32, i32, i32
  }
}

</mosaic_0001>

<llo_original>
// kernel: tpu_custom_call.1
$region0: #{tpu_custom_call.1}
  #allocation0 [shape = 'u32[]', space=smem, size = 0x4, offset = 0x4, fixed_abs, tag = 'smem constant byte address 0x4 - core index']
  #allocation1 [shape = 'u32[144,128]{1,0:T(1,128)}', space=vmem, size = 0x12000, scoped, tag = 'internal scratch']
  %s0 = inlined_call_operand.vmem [shape: f32[2,256,8], index: 0, kind: input, shape index: {}]
  %s1 = inlined_call_operand.vmem [shape: bf16[8,128], index: 1, kind: input, shape index: {}]
  %s2 = inlined_call_operand.vmem [shape: f32[1,128], index: 2, kind: input, shape index: {}]
  %s3 = inlined_call_operand.hbm [shape: bf16[1152,128], index: 3, kind: input, shape index: {}]
  %s4 = inlined_call_operand.vmem [shape: f32[1,128], index: 4, kind: input, shape index: {}]
  %s5 = inlined_call_operand.hbm [shape: f32[2,256,128], index: 5, kind: output, shape index: {}]
  %s6 = sld [smem:[#allocation0]]
  $region57: #{tpu_custom_call.1} parent=0
    _
  %s8 = ssub.s32 1, %s6
  %s9 = scalar_select 0, %s8, %s6
  $region1: #{tpu_custom_call.1} parent=0
    #allocation2 [shape = 'u8[294912]{0}', space=vmem, size = 0x48000, scoped, tag = 'input window, operand 3, single buffered']
    #allocation3 [shape = 's32[2]{0}', space=sflag, size = 0x8, scoped, tag = 'scoped memory for tpu_custom_call.1']
    #allocation4 [shape = 's32[2]{0}', space=sflag, size = 0x8, scoped, tag = 'scoped memory for tpu_custom_call.1']
    #allocation5 [shape = 'u8[262144]{0}', space=vmem, size = 0x40000, scoped, tag = 'output window, operand 0']
    %10 = vsyncpa [#allocation3], 0
    %11 = vsyncpa [#allocation4], 0
    %s12 = scalar_lea.sflag [#allocation4], 1
    %13 = vsyncpa %s12, 0
    loop: start=0, step=1, limit=4
    $region2: #{tpu_custom_call.1} parent=1 // loop_pre_header
      _
    $region3: #{tpu_custom_call.1} parent=1 // loop_header
      %s15 = sphi 0, %s19
      %p16 = scmp.ge.s32.totalorder %s15, 4
      %s25 = sphi 0, %s27
      %s28 = sphi 0, %s25
      %s29 = sphi 0, %s28
      %s45 = sphi 0, %s29
      %s49 = sphi 0, %s49
      %s51 = sphi 0, %s49
      %s52 = sphi 0, %s51
      %s66 = sphi 0, %s52
      %s70 = sphi 0, %s70
      %s72 = sphi 0, %s70
      %s73 = sphi 0, %s72
      %s87 = sphi 0, %s73
      %s91 = sphi 0, %s91
      %s93 = sphi 0, %s91
      %s94 = sphi 0, %s93
      %s108 = sphi 0, %s94
      %s112 = sphi 0, %s112
      %s114 = sphi 0, %s112
      %s115 = sphi 0, %s114
      %s129 = sphi 0, %s115
      %s135 = sphi 0, %s137
      %s138 = sphi 0, %s135
      %s139 = sphi 0, %s138
      %s155 = sphi 0, %s139
    $region4: #{tpu_custom_call.1} parent=1 // loop_header_branch
      %18 = sbr.rel (%p16) target = $region8
    $region5: #{tpu_custom_call.1} parent=1 // loop_body
      %s20 = ssub.s32 %s15, 1
      %s21 = ssub.s32 %s15, 2
      %s22 = sadd.s32 %s15, 1
      %s23 = ssub.s32 %s15, %s22
      %p24 = scmp.eq.s32.totalorder %s23, 0
      %s26 = sadd.s32 %s25, 1
      %s27 = scalar_select %p24, %s25, %s26
      %p30 = pneg %p24
      %p31 = scmp.eq.s32.totalorder %s15, 1
      %p32 = por %p30, %p31
      %p33 = scmp.ne.s32.totalorder %s25, %s28
      %p34 = scmp.eq.s32.totalorder %s15, 0
      %p35 = por %p33, %p34
      %p36 = scmp.ne.s32.totalorder %s25, %s28
      %p37 = scmp.eq.s32.totalorder %s20, 1
      %p38 = por %p36, %p37
      %p39 = scmp.ne.s32.totalorder %s28, %s29
      %p40 = scmp.eq.s32.totalorder %s20, 0
      %p41 = por %p39, %p40
      %p42 = scmp.ne.s32.totalorder %s28, %s29
      %p43 = scmp.eq.s32.totalorder %s21, 1
      %p44 = por %p42, %p43
      %p46 = scmp.ne.s32.totalorder %s29, %s45
      %p47 = scmp.eq.s32.totalorder %s21, 0
      %p48 = por %p46, %p47
      %s50 = sadd.s32 %s49, 1
      %p53 = scmp.eq.s32.totalorder %s15, 1
      %p54 = scmp.ne.s32.totalorder %s49, %s51
      %p55 = scmp.eq.s32.totalorder %s15, 0
      %p56 = por %p54, %p55
      %p57 = scmp.ne.s32.totalorder %s49, %s51
      %p58 = scmp.eq.s32.totalorder %s20, 1
      %p59 = por %p57, %p58
      %p60 = scmp.ne.s32.totalorder %s51, %s52
      %p61 = scmp.eq.s32.totalorder %s20, 0
      %p62 = por %p60, %p61
      %p63 = scmp.ne.s32.totalorder %s51, %s52
      %p64 = scmp.eq.s32.totalorder %s21, 1
      %p65 = por %p63, %p64
      %p67 = scmp.ne.s32.totalorder %s52, %s66
      %p68 = scmp.eq.s32.totalorder %s21, 0
      %p69 = por %p67, %p68
      %s71 = sadd.s32 %s70, 1
      %p74 = scmp.eq.s32.totalorder %s15, 1
      %p75 = scmp.ne.s32.totalorder %s70, %s72
      %p76 = scmp.eq.s32.totalorder %s15, 0
      %p77 = por %p75, %p76
      %p78 = scmp.ne.s32.totalorder %s70, %s72
      %p79 = scmp.eq.s32.totalorder %s20, 1
      %p80 = por %p78, %p79
      %p81 = scmp.ne.s32.totalorder %s72, %s73
      %p82 = scmp.eq.s32.totalorder %s20, 0
      %p83 = por %p81, %p82
      %p84 = scmp.ne.s32.totalorder %s72, %s73
      %p85 = scmp.eq.s32.totalorder %s21, 1
      %p86 = por %p84, %p85
      %p88 = scmp.ne.s32.totalorder %s73, %s87
      %p89 = scmp.eq.s32.totalorder %s21, 0
      %p90 = por %p88, %p89
      %s92 = sadd.s32 %s91, 1
      %p95 = scmp.eq.s32.totalorder %s15, 1
      %p96 = scmp.ne.s32.totalorder %s91, %s93
      %p97 = scmp.eq.s32.totalorder %s15, 0
      %p98 = por %p96, %p97
      %p99 = scmp.ne.s32.totalorder %s91, %s93
      %p100 = scmp.eq.s32.totalorder %s20, 1
      %p101 = por %p99, %p100
      %p102 = scmp.ne.s32.totalorder %s93, %s94
      %p103 = scmp.eq.s32.totalorder %s20, 0
      %p104 = por %p102, %p103
      %p105 = scmp.ne.s32.totalorder %s93, %s94
      %p106 = scmp.eq.s32.totalorder %s21, 1
      %p107 = por %p105, %p106
      %p109 = scmp.ne.s32.totalorder %s94, %s108
      %p110 = scmp.eq.s32.totalorder %s21, 0
      %p111 = por %p109, %p110
      %s113 = sadd.s32 %s112, 1
      %p116 = scmp.eq.s32.totalorder %s15, 1
      %p117 = scmp.ne.s32.totalorder %s112, %s114
      %p118 = scmp.eq.s32.totalorder %s15, 0
      %p119 = por %p117, %p118
      %p120 = scmp.ne.s32.totalorder %s112, %s114
      %p121 = scmp.eq.s32.totalorder %s20, 1
      %p122 = por %p120, %p121
      %p123 = scmp.ne.s32.totalorder %s114, %s115
      %p124 = scmp.eq.s32.totalorder %s20, 0
      %p125 = por %p123, %p124
      %p126 = scmp.ne.s32.totalorder %s114, %s115
      %p127 = scmp.eq.s32.totalorder %s21, 1
      %p128 = por %p126, %p127
      %p130 = scmp.ne.s32.totalorder %s115, %s129
      %p131 = scmp.eq.s32.totalorder %s21, 0
      %p132 = por %p130, %p131
      %s133 = ssub.s32 %s15, %s22
      %p134 = scmp.eq.s32.totalorder %s133, 0
      %s136 = sadd.s32 %s135, 1
      %s137 = scalar_select %p134, %s135, %s136
      %p140 = pneg %p134
      %p141 = scmp.eq.s32.totalorder %s15, 1
      %p142 = por %p140, %p141
      %p143 = scmp.ne.s32.totalorder %s135, %s138
      %p144 = scmp.eq.s32.totalorder %s15, 0
      %p145 = por %p143, %p144
      %p146 = scmp.ne.s32.totalorder %s135, %s138
      %p147 = scmp.eq.s32.totalorder %s20, 1
      %p148 = por %p146, %p147
      %p149 = scmp.ne.s32.totalorder %s138, %s139
      %p150 = scmp.eq.s32.totalorder %s20, 0
      %p151 = por %p149, %p150
      %p152 = scmp.ne.s32.totalorder %s138, %s139
      %p153 = scmp.eq.s32.totalorder %s21, 1
      %p154 = por %p152, %p153
      %p156 = scmp.ne.s32.totalorder %s139, %s155
      %p157 = scmp.eq.s32.totalorder %s21, 0
      %p158 = por %p156, %p157
      %p159 = scmp.le.s32.totalorder 1, %s15
      %p160 = scmp.lt.s32.totalorder %s15, 3
      %p161 = pnand %p159, %p160
      %p162 = pneg %p161
      // Predicated region
      $region9: #{tpu_custom_call.1} parent=5 // pred_check
        _
      $region10: #{tpu_custom_call.1} parent=5 // pred_check_branch
        %164 = sbr.rel (%p161) target = $region12
      $region11: #{tpu_custom_call.1} parent=5 // pred_region
        %s165 = ssub.s32 %s15, 1
        // Predicated region
        $region13: #{tpu_custom_call.1} parent=11 // pred_check
          %p166 = pneg %p62
        $region14: #{tpu_custom_call.1} parent=11 // pred_check_branch
          %168 = sbr.rel (%p166) target = $region16
        $region15: #{tpu_custom_call.1} parent=11 // pred_region
          _
        $region16: #{tpu_custom_call.1} parent=11 // pred_fallthru
          _
        // Predicated region
        $region17: #{tpu_custom_call.1} parent=11 // pred_check
          %p169 = pneg %p83
        $region18: #{tpu_custom_call.1} parent=11 // pred_check_branch
          %171 = sbr.rel (%p169) target = $region20
        $region19: #{tpu_custom_call.1} parent=11 // pred_region
          _
        $region20: #{tpu_custom_call.1} parent=11 // pred_fallthru
          _
        // Predicated region
        $region21: #{tpu_custom_call.1} parent=11 // pred_check
          %p172 = pneg %p104
        $region22: #{tpu_custom_call.1} parent=11 // pred_check_branch
          %174 = sbr.rel (%p172) target = $region24
        $region23: #{tpu_custom_call.1} parent=11 // pred_region
          %s176 = ssub.s32 9216, 9216
          %177 = vsyncadd [#allocation3], %s176
          %s178 = sshll.u32 [#allocation2], 4
          %s179 = int_to_ptr.vmem [resolvable:$true] %s178
          %184 = dma.hbm_to_vmem [thread:$0]  %s3, 9216, %s179, [#allocation3], 64, 64, 4
        $region24: #{tpu_custom_call.1} parent=11 // pred_fallthru
          _
        // Predicated region
        $region25: #{tpu_custom_call.1} parent=11 // pred_check
          %p185 = pneg %p125
        $region26: #{tpu_custom_call.1} parent=11 // pred_check_branch
          %187 = sbr.rel (%p185) target = $region28
        $region27: #{tpu_custom_call.1} parent=11 // pred_region
          _
        $region28: #{tpu_custom_call.1} parent=11 // pred_fallthru
          _
      $region12: #{tpu_custom_call.1} parent=5 // pred_fallthru
        _
      %p188 = scmp.lt.s32.totalorder %s15, 2
      // Predicated region
      $region29: #{tpu_custom_call.1} parent=5 // pred_check
        %p189 = pneg %p188
      $region30: #{tpu_custom_call.1} parent=5 // pred_check_branch
        %191 = sbr.rel (%p189) target = $region32
      $region31: #{tpu_custom_call.1} parent=5 // pred_region
        // Predicated region
        $region33: #{tpu_custom_call.1} parent=31 // pred_check
          %p192 = pneg %p35
        $region34: #{tpu_custom_call.1} parent=31 // pred_check_branch
          %194 = sbr.rel (%p192) target = $region36
        $region35: #{tpu_custom_call.1} parent=31 // pred_region
          %p195 = scmp.lt.s32.totalorder %s15, 1
          %s196 = scalar_select %p195, %s15, 1
          %s197 = smul.addr %s196, 32
          %s198 = smul.addr %s197, 8
          %s199 = scalar_lea.vmem %s0, %s198
        $region36: #{tpu_custom_call.1} parent=31 // pred_fallthru
          _
      $region32: #{tpu_custom_call.1} parent=5 // pred_fallthru
        _
      %p200 = scmp.le.s32.totalorder 1, %s15
      %p201 = scmp.lt.s32.totalorder %s15, 3
      %p202 = pnand %p200, %p201
      %p203 = pneg %p202
      // Predicated region
      $region37: #{tpu_custom_call.1} parent=5 // pred_check
        _
      $region38: #{tpu_custom_call.1} parent=5 // pred_check_branch
        %205 = sbr.rel (%p202) target = $region40
      $region39: #{tpu_custom_call.1} parent=5 // pred_region
        %s206 = ssub.s32 %s15, 1
        // Predicated region
        $region41: #{tpu_custom_call.1} parent=39 // pred_check
          %p207 = pneg %p104
        $region42: #{tpu_custom_call.1} parent=39 // pred_check_branch
          %209 = sbr.rel (%p207) target = $region44
        $region43: #{tpu_custom_call.1} parent=39 // pred_region
          %210 = dma.done [#allocation3], 9216
        $region44: #{tpu_custom_call.1} parent=39 // pred_fallthru
          _
        %p211 = scmp.lt.s32.totalorder %s20, 1
        %s212 = scalar_select %p211, %s20, 1
        %s213 = smul.addr %s212, 32
        %s214 = smul.addr %s213, 8
        %s215 = scalar_lea.vmem %s0, %s214
        %p216 = pneg %p41
        %p217 = pneg %p38
        %p218 = pneg %p62
        %p219 = pneg %p59
        %p220 = pneg %p83
        %p221 = pneg %p80
        %p222 = pneg %p104
        %p223 = pneg %p101
        %p224 = pneg %p125
        %p225 = pneg %p122
        %p226 = pneg %p151
        %p227 = pneg %p148
        %s228 = sand.u32 %s138, 1
        %s229 = scalar_lea.sflag [#allocation4], %s228
        %s230 = sand.u32 %s138, 1
        %s231 = smul.addr %s230, 256
        %s232 = scalar_lea.vmem [#allocation5], %s231
        %p233 = scmp.lt.s32.totalorder %s20, 1
        %s234 = scalar_select %p233, %s20, 1
        %s235 = smul.addr %s234, 32
        %s236 = smul.addr %s235, 8
        %s237 = scalar_lea.vmem %s0, %s236
        %v239 = vld [vmem:[%s237] sm:$0xff]
        %v240 = vld [vmem:[%s237 + $0x8] sm:$0xff]
        %v241 = vld [vmem:[%s237 + $0x10] sm:$0xff]
        %v242 = vld [vmem:[%s237 + $0x18] sm:$0xff]
        %v243 = vld [vmem:[%s237 + $0x20] sm:$0xff]
        %v244 = vld [vmem:[%s237 + $0x28] sm:$0xff]
        %v245 = vld [vmem:[%s237 + $0x30] sm:$0xff]
        %v246 = vld [vmem:[%s237 + $0x38] sm:$0xff]
        %v247 = vld [vmem:[%s237 + $0x40] sm:$0xff]
        %v248 = vld [vmem:[%s237 + $0x48] sm:$0xff]
        %v249 = vld [vmem:[%s237 + $0x50] sm:$0xff]
        %v250 = vld [vmem:[%s237 + $0x58] sm:$0xff]
        %v251 = vld [vmem:[%s237 + $0x60] sm:$0xff]
        %v252 = vld [vmem:[%s237 + $0x68] sm:$0xff]
        %v253 = vld [vmem:[%s237 + $0x70] sm:$0xff]
        %v254 = vld [vmem:[%s237 + $0x78] sm:$0xff]
        %v255 = vld [vmem:[%s237 + $0x80] sm:$0xff]
        %v256 = vld [vmem:[%s237 + $0x88] sm:$0xff]
        %v257 = vld [vmem:[%s237 + $0x90] sm:$0xff]
        %v258 = vld [vmem:[%s237 + $0x98] sm:$0xff]
        %v259 = vld [vmem:[%s237 + $0xa0] sm:$0xff]
        %v260 = vld [vmem:[%s237 + $0xa8] sm:$0xff]
        %v261 = vld [vmem:[%s237 + $0xb0] sm:$0xff]
        %v262 = vld [vmem:[%s237 + $0xb8] sm:$0xff]
        %v263 = vld [vmem:[%s237 + $0xc0] sm:$0xff]
        %v264 = vld [vmem:[%s237 + $0xc8] sm:$0xff]
        %v265 = vld [vmem:[%s237 + $0xd0] sm:$0xff]
        %v266 = vld [vmem:[%s237 + $0xd8] sm:$0xff]
        %v267 = vld [vmem:[%s237 + $0xe0] sm:$0xff]
        %v268 = vld [vmem:[%s237 + $0xe8] sm:$0xff]
        %v269 = vld [vmem:[%s237 + $0xf0] sm:$0xff]
        %v270 = vld [vmem:[%s237 + $0xf8] sm:$0xff]
        %v271 = vpack.c.bf16 %v240, %v239
        %v272 = vpack.c.bf16 %v242, %v241
        %v273 = vpack.c.bf16 %v244, %v243
        %v274 = vpack.c.bf16 %v246, %v245
        %v275 = vpack.c.bf16 %v248, %v247
        %v276 = vpack.c.bf16 %v250, %v249
        %v277 = vpack.c.bf16 %v252, %v251
        %v278 = vpack.c.bf16 %v254, %v253
        %v279 = vpack.c.bf16 %v256, %v255
        %v280 = vpack.c.bf16 %v258, %v257
        %v281 = vpack.c.bf16 %v260, %v259
        %v282 = vpack.c.bf16 %v262, %v261
        %v283 = vpack.c.bf16 %v264, %v263
        %v284 = vpack.c.bf16 %v266, %v265
        %v285 = vpack.c.bf16 %v268, %v267
        %v286 = vpack.c.bf16 %v270, %v269
        %v287 = vld [vmem:[%s1] sm:$0xf]
        %v288 = vld [vmem:[%s2] sm:$0x1]
        %v290 = vlaneseq
        %v291 = vshrl.u32 %v290, 7
        %v292 = vsub.s32 0, %v291
        %v293 = vrot.slane %v288, %v292
        %vm295 = vcmask 64512
        %v297 = vsel %vm295, %v271, 0
        %v300 = vsel %vm295, %v272, 0
        %v303 = vsel %vm295, %v273, 0
        %v306 = vsel %vm295, %v274, 0
        %v309 = vsel %vm295, %v275, 0
        %v312 = vsel %vm295, %v276, 0
        %v315 = vsel %vm295, %v277, 0
        %v318 = vsel %vm295, %v278, 0
        %v321 = vsel %vm295, %v279, 0
        %v324 = vsel %vm295, %v280, 0
        %v327 = vsel %vm295, %v281, 0
        %v330 = vsel %vm295, %v282, 0
        %v333 = vsel %vm295, %v283, 0
        %v336 = vsel %vm295, %v284, 0
        %v339 = vsel %vm295, %v285, 0
        %v342 = vsel %vm295, %v286, 0
        %vm344 = vcmask 1043456
        %v346 = vsel %vm344, %v287, 0
        %348 = vmatprep.subr.bf16.mxu0 0
        %349 = vmatpush1.bf16.msra.mxu0 0
        %350 = vmatprep.subr.bf16.mxu0 0
        %351 = vmatpush1.bf16.msra.mxu0 0
        %352 = vmatprep.subr.bf16.mxu0 0
        %353 = vmatpush1.bf16.msra.mxu0 0
        %354 = vmatprep.subr.bf16.mxu0 0
        %355 = vmatpush1.bf16.msra.mxu0 0
        %356 = vmatprep.subr.bf16.mxu0 0
        %357 = vmatpush1.bf16.msra.mxu0 0
        %358 = vmatprep.subr.bf16.mxu0 0
        %359 = vmatpush1.bf16.msra.mxu0 0
        %360 = vmatprep.subr.bf16.mxu0 0
        %361 = vmatpush1.bf16.msra.mxu0 0
        %362 = vmatprep.subr.bf16.mxu0 0
        %363 = vmatpush1.bf16.msra.mxu0 %v346
        %364 = vmatprep.subr.bf16.mxu0 0
        %365 = vmatpush2.bf16.msra.mxu0 0
        %366 = vmatprep.subr.bf16.mxu0 0
        %367 = vmatpush2.bf16.msra.mxu0 0
        %368 = vmatprep.subr.bf16.mxu0 0
        %369 = vmatpush2.bf16.msra.mxu0 0
        %370 = vmatprep.subr.bf16.mxu0 0
        %371 = vmatpush2.bf16.msra.mxu0 0
        %372 = vmatprep.subr.bf16.mxu0 0
        %373 = vmatpush2.bf16.msra.mxu0 0
        %374 = vmatprep.subr.bf16.mxu0 0
        %375 = vmatpush2.bf16.msra.mxu0 0
        %376 = vmatprep.subr.bf16.mxu0 0
        %377 = vmatpush2.bf16.msra.mxu0 0
        %378 = vmatprep.subr.bf16.mxu0 0
        %379 = vmatpush2.bf16.msra.mxu0 0
        %380 = vmatprep.mubr.bf16.mxu0 0
        %381 = vmatmul.mubr.bf16.gmra.mxu0 %v297
        %v382 = vpop.f32.mrf.mxu0
        %v383 = vadd.f32 %v293, %v382
        %v384 = vpop.f32.mrf.mxu0
        %v385 = vpop.f32.mrf.mxu0
        %v386 = vadd.f32 %v293, %v385
        %v387 = vpop.f32.mrf.mxu0
        %388 = vmatprep.mubr.bf16.mxu0 0
        %389 = vmatmul.mubr.bf16.gmra.mxu0 %v300
        %v390 = vpop.f32.mrf.mxu0
        %v391 = vadd.f32 %v293, %v390
        %v392 = vpop.f32.mrf.mxu0
        %v393 = vpop.f32.mrf.mxu0
        %v394 = vadd.f32 %v293, %v393
        %v395 = vpop.f32.mrf.mxu0
        %396 = vmatprep.mubr.bf16.mxu0 0
        %397 = vmatmul.mubr.bf16.gmra.mxu0 %v303
        %v398 = vpop.f32.mrf.mxu0
        %v399 = vadd.f32 %v293, %v398
        %v400 = vpop.f32.mrf.mxu0
        %v401 = vpop.f32.mrf.mxu0
        %v402 = vadd.f32 %v293, %v401
        %v403 = vpop.f32.mrf.mxu0
        %404 = vmatprep.mubr.bf16.mxu0 0
        %405 = vmatmul.mubr.bf16.gmra.mxu0 %v306
        %v406 = vpop.f32.mrf.mxu0
        %v407 = vadd.f32 %v293, %v406
        %v408 = vpop.f32.mrf.mxu0
        %v409 = vpop.f32.mrf.mxu0
        %v410 = vadd.f32 %v293, %v409
        %v411 = vpop.f32.mrf.mxu0
        %412 = vmatprep.mubr.bf16.mxu0 0
        %413 = vmatmul.mubr.bf16.gmra.mxu0 %v309
        %v414 = vpop.f32.mrf.mxu0
        %v415 = vadd.f32 %v293, %v414
        %v416 = vpop.f32.mrf.mxu0
        %v417 = vpop.f32.mrf.mxu0
        %v418 = vadd.f32 %v293, %v417
        %v419 = vpop.f32.mrf.mxu0
        %420 = vmatprep.mubr.bf16.mxu0 0
        %421 = vmatmul.mubr.bf16.gmra.mxu0 %v312
        %v422 = vpop.f32.mrf.mxu0
        %v423 = vadd.f32 %v293, %v422
        %v424 = vpop.f32.mrf.mxu0
        %v425 = vpop.f32.mrf.mxu0
        %v426 = vadd.f32 %v293, %v425
        %v427 = vpop.f32.mrf.mxu0
        %428 = vmatprep.mubr.bf16.mxu0 0
        %429 = vmatmul.mubr.bf16.gmra.mxu0 %v315
        %v430 = vpop.f32.mrf.mxu0
        %v431 = vadd.f32 %v293, %v430
        %v432 = vpop.f32.mrf.mxu0
        %v433 = vpop.f32.mrf.mxu0
        %v434 = vadd.f32 %v293, %v433
        %v435 = vpop.f32.mrf.mxu0
        %436 = vmatprep.mubr.bf16.mxu0 0
        %437 = vmatmul.mubr.bf16.gmra.mxu0 %v318
        %v438 = vpop.f32.mrf.mxu0
        %v439 = vadd.f32 %v293, %v438
        %v440 = vpop.f32.mrf.mxu0
        %v441 = vpop.f32.mrf.mxu0
        %v442 = vadd.f32 %v293, %v441
        %v443 = vpop.f32.mrf.mxu0
        %444 = vmatprep.mubr.bf16.mxu0 0
        %445 = vmatmul.mubr.bf16.gmra.mxu0 %v321
        %v446 = vpop.f32.mrf.mxu0
        %v447 = vadd.f32 %v293, %v446
        %v448 = vpop.f32.mrf.mxu0
        %v449 = vpop.f32.mrf.mxu0
        %v450 = vadd.f32 %v293, %v449
        %v451 = vpop.f32.mrf.mxu0
        %452 = vmatprep.mubr.bf16.mxu0 0
        %453 = vmatmul.mubr.bf16.gmra.mxu0 %v324
        %v454 = vpop.f32.mrf.mxu0
        %v455 = vadd.f32 %v293, %v454
        %v456 = vpop.f32.mrf.mxu0
        %v457 = vpop.f32.mrf.mxu0
        %v458 = vadd.f32 %v293, %v457
        %v459 = vpop.f32.mrf.mxu0
        %460 = vmatprep.mubr.bf16.mxu0 0
        %461 = vmatmul.mubr.bf16.gmra.mxu0 %v327
        %v462 = vpop.f32.mrf.mxu0
        %v463 = vadd.f32 %v293, %v462
        %v464 = vpop.f32.mrf.mxu0
        %v465 = vpop.f32.mrf.mxu0
        %v466 = vadd.f32 %v293, %v465
        %v467 = vpop.f32.mrf.mxu0
        %468 = vmatprep.mubr.bf16.mxu0 0
        %469 = vmatmul.mubr.bf16.gmra.mxu0 %v330
        %v470 = vpop.f32.mrf.mxu0
        %v471 = vadd.f32 %v293, %v470
        %v472 = vpop.f32.mrf.mxu0
        %v473 = vpop.f32.mrf.mxu0
        %v474 = vadd.f32 %v293, %v473
        %v475 = vpop.f32.mrf.mxu0
        %476 = vmatprep.mubr.bf16.mxu0 0
        %477 = vmatmul.mubr.bf16.gmra.mxu0 %v333
        %v478 = vpop.f32.mrf.mxu0
        %v479 = vadd.f32 %v293, %v478
        %v480 = vpop.f32.mrf.mxu0
        %v481 = vpop.f32.mrf.mxu0
        %v482 = vadd.f32 %v293, %v481
        %v483 = vpop.f32.mrf.mxu0
        %484 = vmatprep.mubr.bf16.mxu0 0
        %485 = vmatmul.mubr.bf16.gmra.mxu0 %v336
        %v486 = vpop.f32.mrf.mxu0
        %v487 = vadd.f32 %v293, %v486
        %v488 = vpop.f32.mrf.mxu0
        %v489 = vpop.f32.mrf.mxu0
        %v490 = vadd.f32 %v293, %v489
        %v491 = vpop.f32.mrf.mxu0
        %492 = vmatprep.mubr.bf16.mxu0 0
        %493 = vmatmul.mubr.bf16.gmra.mxu0 %v339
        %v494 = vpop.f32.mrf.mxu0
        %v495 = vadd.f32 %v293, %v494
        %v496 = vpop.f32.mrf.mxu0
        %v497 = vpop.f32.mrf.mxu0
        %v498 = vadd.f32 %v293, %v497
        %v499 = vpop.f32.mrf.mxu0
        %500 = vmatprep.mubr.bf16.mxu0 0
        %501 = vmatmul.mubr.bf16.gmra.mxu0 %v342
        %v502 = vpop.f32.mrf.mxu0
        %v503 = vadd.f32 %v293, %v502
        %v504 = vpop.f32.mrf.mxu0
        %v505 = vpop.f32.mrf.mxu0
        %v506 = vadd.f32 %v293, %v505
        %v507 = vpop.f32.mrf.mxu0
        %508 = vdwg.mxu0
        %v509 = vxor.u32 %v383, 2147483648
        %v510 = vxor.u32 %v386, 2147483648
        %v511 = vxor.u32 %v391, 2147483648
        %v512 = vxor.u32 %v394, 2147483648
        %v513 = vxor.u32 %v399, 2147483648
        %v514 = vxor.u32 %v402, 2147483648
        %v515 = vxor.u32 %v407, 2147483648
        %v516 = vxor.u32 %v410, 2147483648
        %v517 = vxor.u32 %v415, 2147483648
        %v518 = vxor.u32 %v418, 2147483648
        %v519 = vxor.u32 %v423, 2147483648
        %v520 = vxor.u32 %v426, 2147483648
        %v521 = vxor.u32 %v431, 2147483648
        %v522 = vxor.u32 %v434, 2147483648
        %v523 = vxor.u32 %v439, 2147483648
        %v524 = vxor.u32 %v442, 2147483648
        %v525 = vxor.u32 %v447, 2147483648
        %v526 = vxor.u32 %v450, 2147483648
        %v527 = vxor.u32 %v455, 2147483648
        %v528 = vxor.u32 %v458, 2147483648
        %v529 = vxor.u32 %v463, 2147483648
        %v530 = vxor.u32 %v466, 2147483648
        %v531 = vxor.u32 %v471, 2147483648
        %v532 = vxor.u32 %v474, 2147483648
        %v533 = vxor.u32 %v479, 2147483648
        %v534 = vxor.u32 %v482, 2147483648
        %v535 = vxor.u32 %v487, 2147483648
        %v536 = vxor.u32 %v490, 2147483648
        %v537 = vxor.u32 %v495, 2147483648
        %v538 = vxor.u32 %v498, 2147483648
        %v539 = vxor.u32 %v503, 2147483648
        %v540 = vxor.u32 %v506, 2147483648
        %v541 = vmul.f32 %v509, 1.442695
        %v542 = vpow.pop %v541
        %v543 = vmul.f32 %v510, 1.442695
        %v544 = vpow.pop %v543
        %v545 = vmul.f32 %v511, 1.442695
        %v546 = vpow.pop %v545
        %v547 = vmul.f32 %v512, 1.442695
        %v548 = vpow.pop %v547
        %v549 = vmul.f32 %v513, 1.442695
        %v550 = vpow.pop %v549
        %v551 = vmul.f32 %v514, 1.442695
        %v552 = vpow.pop %v551
        %v553 = vmul.f32 %v515, 1.442695
        %v554 = vpow.pop %v553
        %v555 = vmul.f32 %v516, 1.442695
        %v556 = vpow.pop %v555
        %v557 = vmul.f32 %v517, 1.442695
        %v558 = vpow.pop %v557
        %v559 = vmul.f32 %v518, 1.442695
        %v560 = vpow.pop %v559
        %v561 = vmul.f32 %v519, 1.442695
        %v562 = vpow.pop %v561
        %v563 = vmul.f32 %v520, 1.442695
        %v564 = vpow.pop %v563
        %v565 = vmul.f32 %v521, 1.442695
        %v566 = vpow.pop %v565
        %v567 = vmul.f32 %v522, 1.442695
        %v568 = vpow.pop %v567
        %v569 = vmul.f32 %v523, 1.442695
        %v570 = vpow.pop %v569
        %v571 = vmul.f32 %v524, 1.442695
        %v572 = vpow.pop %v571
        %v573 = vmul.f32 %v525, 1.442695
        %v574 = vpow.pop %v573
        %v575 = vmul.f32 %v526, 1.442695
        %v576 = vpow.pop %v575
        %v577 = vmul.f32 %v527, 1.442695
        %v578 = vpow.pop %v577
        %v579 = vmul.f32 %v528, 1.442695
        %v580 = vpow.pop %v579
        %v581 = vmul.f32 %v529, 1.442695
        %v582 = vpow.pop %v581
        %v583 = vmul.f32 %v530, 1.442695
        %v584 = vpow.pop %v583
        %v585 = vmul.f32 %v531, 1.442695
        %v586 = vpow.pop %v585
        %v587 = vmul.f32 %v532, 1.442695
        %v588 = vpow.pop %v587
        %v589 = vmul.f32 %v533, 1.442695
        %v590 = vpow.pop %v589
        %v591 = vmul.f32 %v534, 1.442695
        %v592 = vpow.pop %v591
        %v593 = vmul.f32 %v535, 1.442695
        %v594 = vpow.pop %v593
        %v595 = vmul.f32 %v536, 1.442695
        %v596 = vpow.pop %v595
        %v597 = vmul.f32 %v537, 1.442695
        %v598 = vpow.pop %v597
        %v599 = vmul.f32 %v538, 1.442695
        %v600 = vpow.pop %v599
        %v601 = vmul.f32 %v539, 1.442695
        %v602 = vpow.pop %v601
        %v603 = vmul.f32 %v540, 1.442695
        %v604 = vpow.pop %v603
        %v605 = vadd.f32 %v542, 1.0
        %v606 = vadd.f32 %v544, 1.0
        %v607 = vadd.f32 %v546, 1.0
        %v608 = vadd.f32 %v548, 1.0
        %v609 = vadd.f32 %v550, 1.0
        %v610 = vadd.f32 %v552, 1.0
        %v611 = vadd.f32 %v554, 1.0
        %v612 = vadd.f32 %v556, 1.0
        %v613 = vadd.f32 %v558, 1.0
        %v614 = vadd.f32 %v560, 1.0
        %v615 = vadd.f32 %v562, 1.0
        %v616 = vadd.f32 %v564, 1.0
        %v617 = vadd.f32 %v566, 1.0
        %v618 = vadd.f32 %v568, 1.0
        %v619 = vadd.f32 %v570, 1.0
        %v620 = vadd.f32 %v572, 1.0
        %v621 = vadd.f32 %v574, 1.0
        %v622 = vadd.f32 %v576, 1.0
        %v623 = vadd.f32 %v578, 1.0
        %v624 = vadd.f32 %v580, 1.0
        %v625 = vadd.f32 %v582, 1.0
        %v626 = vadd.f32 %v584, 1.0
        %v627 = vadd.f32 %v586, 1.0
        %v628 = vadd.f32 %v588, 1.0
        %v629 = vadd.f32 %v590, 1.0
        %v630 = vadd.f32 %v592, 1.0
        %v631 = vadd.f32 %v594, 1.0
        %v632 = vadd.f32 %v596, 1.0
        %v633 = vadd.f32 %v598, 1.0
        %v634 = vadd.f32 %v600, 1.0
        %v635 = vadd.f32 %v602, 1.0
        %v636 = vadd.f32 %v604, 1.0
        %v637 = vrcp.pop %v605
        %v638 = vmul.f32 1.0, %v637
        %v639 = vrcp.pop %v606
        %v640 = vmul.f32 1.0, %v639
        %v641 = vrcp.pop %v607
        %v642 = vmul.f32 1.0, %v641
        %v643 = vrcp.pop %v608
        %v644 = vmul.f32 1.0, %v643
        %v645 = vrcp.pop %v609
        %v646 = vmul.f32 1.0, %v645
        %v647 = vrcp.pop %v610
        %v648 = vmul.f32 1.0, %v647
        %v649 = vrcp.pop %v611
        %v650 = vmul.f32 1.0, %v649
        %v651 = vrcp.pop %v612
        %v652 = vmul.f32 1.0, %v651
        %v653 = vrcp.pop %v613
        %v654 = vmul.f32 1.0, %v653
        %v655 = vrcp.pop %v614
        %v656 = vmul.f32 1.0, %v655
        %v657 = vrcp.pop %v615
        %v658 = vmul.f32 1.0, %v657
        %v659 = vrcp.pop %v616
        %v660 = vmul.f32 1.0, %v659
        %v661 = vrcp.pop %v617
        %v662 = vmul.f32 1.0, %v661
        %v663 = vrcp.pop %v618
        %v664 = vmul.f32 1.0, %v663
        %v665 = vrcp.pop %v619
        %v666 = vmul.f32 1.0, %v665
        %v667 = vrcp.pop %v620
        %v668 = vmul.f32 1.0, %v667
        %v669 = vrcp.pop %v621
        %v670 = vmul.f32 1.0, %v669
        %v671 = vrcp.pop %v622
        %v672 = vmul.f32 1.0, %v671
        %v673 = vrcp.pop %v623
        %v674 = vmul.f32 1.0, %v673
        %v675 = vrcp.pop %v624
        %v676 = vmul.f32 1.0, %v675
        %v677 = vrcp.pop %v625
        %v678 = vmul.f32 1.0, %v677
        %v679 = vrcp.pop %v626
        %v680 = vmul.f32 1.0, %v679
        %v681 = vrcp.pop %v627
        %v682 = vmul.f32 1.0, %v681
        %v683 = vrcp.pop %v628
        %v684 = vmul.f32 1.0, %v683
        %v685 = vrcp.pop %v629
        %v686 = vmul.f32 1.0, %v685
        %v687 = vrcp.pop %v630
        %v688 = vmul.f32 1.0, %v687
        %v689 = vrcp.pop %v631
        %v690 = vmul.f32 1.0, %v689
        %v691 = vrcp.pop %v632
        %v692 = vmul.f32 1.0, %v691
        %v693 = vrcp.pop %v633
        %v694 = vmul.f32 1.0, %v693
        %v695 = vrcp.pop %v634
        %v696 = vmul.f32 1.0, %v695
        %v697 = vrcp.pop %v635
        %v698 = vmul.f32 1.0, %v697
        %v699 = vrcp.pop %v636
        %v700 = vmul.f32 1.0, %v699
        %v701 = vmul.f32 %v383, %v638
        %v702 = vmul.f32 %v386, %v640
        %v703 = vmul.f32 %v391, %v642
        %v704 = vmul.f32 %v394, %v644
        %v705 = vmul.f32 %v399, %v646
        %v706 = vmul.f32 %v402, %v648
        %v707 = vmul.f32 %v407, %v650
        %v708 = vmul.f32 %v410, %v652
        %v709 = vmul.f32 %v415, %v654
        %v710 = vmul.f32 %v418, %v656
        %v711 = vmul.f32 %v423, %v658
        %v712 = vmul.f32 %v426, %v660
        %v713 = vmul.f32 %v431, %v662
        %v714 = vmul.f32 %v434, %v664
        %v715 = vmul.f32 %v439, %v666
        %v716 = vmul.f32 %v442, %v668
        %v717 = vmul.f32 %v447, %v670
        %v718 = vmul.f32 %v450, %v672
        %v719 = vmul.f32 %v455, %v674
        %v720 = vmul.f32 %v458, %v676
        %v721 = vmul.f32 %v463, %v678
        %v722 = vmul.f32 %v466, %v680
        %v723 = vmul.f32 %v471, %v682
        %v724 = vmul.f32 %v474, %v684
        %v725 = vmul.f32 %v479, %v686
        %v726 = vmul.f32 %v482, %v688
        %v727 = vmul.f32 %v487, %v690
        %v728 = vmul.f32 %v490, %v692
        %v729 = vmul.f32 %v495, %v694
        %v730 = vmul.f32 %v498, %v696
        %v731 = vmul.f32 %v503, %v698
        %v732 = vmul.f32 %v506, %v700
        %v733 = vlaneseq
        %v734 = vshrl.u32 %v733, 7
        %v735 = vadd.s32 %v734, 8
        %v736 = vadd.s32 %v734, 16
        %v737 = vadd.s32 %v734, 24
        %v738 = vadd.s32 %v734, 32
        %v739 = vadd.s32 %v734, 40
        %v740 = vadd.s32 %v734, 48
        %v741 = vadd.s32 %v734, 56
        %v742 = vadd.s32 %v734, 64
        %v743 = vadd.s32 %v734, 72
        %v744 = vadd.s32 %v734, 80
        %v745 = vadd.s32 %v734, 88
        %v746 = vadd.s32 %v734, 96
        %v747 = vadd.s32 %v734, 104
        %v748 = vadd.s32 %v734, 112
        %v749 = vadd.s32 %v734, 120
        %v750 = vadd.s32 %v734, 128
        %v751 = vadd.s32 %v734, 136
        %v752 = vadd.s32 %v734, 144
        %v753 = vadd.s32 %v734, 152
        %v754 = vadd.s32 %v734, 160
        %v755 = vadd.s32 %v734, 168
        %v756 = vadd.s32 %v734, 176
        %v757 = vadd.s32 %v734, 184
        %v758 = vadd.s32 %v734, 192
        %v759 = vadd.s32 %v734, 200
        %v760 = vadd.s32 %v734, 208
        %v761 = vadd.s32 %v734, 216
        %v762 = vadd.s32 %v734, 224
        %v763 = vadd.s32 %v734, 232
        %v764 = vadd.s32 %v734, 240
        %v765 = vadd.s32 %v734, 248
        %vm766 = vcmp.lt.s32.totalorder %v734, 0
        %v767 = vsub.s32 0, %v734
        %v768 = vsel %vm766, %v767, %v734
        %v769 = vshrl.u32 %v768, 4
        %v770 = vand.u32 %v768, 15
        %v771 = vsub.s32 0, %v770
        %v772 = vsel %vm766, %v771, %v770
        %vm773 = vcmp.lt.s32.totalorder %v735, 0
        %v774 = vsub.s32 0, %v735
        %v775 = vsel %vm773, %v774, %v735
        %v776 = vshrl.u32 %v775, 4
        %v777 = vand.u32 %v775, 15
        %v778 = vsub.s32 0, %v777
        %v779 = vsel %vm773, %v778, %v777
        %vm780 = vcmp.lt.s32.totalorder %v736, 0
        %v781 = vsub.s32 0, %v736
        %v782 = vsel %vm780, %v781, %v736
        %v783 = vshrl.u32 %v782, 4
        %v784 = vand.u32 %v782, 15
        %v785 = vsub.s32 0, %v784
        %v786 = vsel %vm780, %v785, %v784
        %vm787 = vcmp.lt.s32.totalorder %v737, 0
        %v788 = vsub.s32 0, %v737
        %v789 = vsel %vm787, %v788, %v737
        %v790 = vshrl.u32 %v789, 4
        %v791 = vand.u32 %v789, 15
        %v792 = vsub.s32 0, %v791
        %v793 = vsel %vm787, %v792, %v791
        %vm794 = vcmp.lt.s32.totalorder %v738, 0
        %v795 = vsub.s32 0, %v738
        %v796 = vsel %vm794, %v795, %v738
        %v797 = vshrl.u32 %v796, 4
        %v798 = vand.u32 %v796, 15
        %v799 = vsub.s32 0, %v798
        %v800 = vsel %vm794, %v799, %v798
        %vm801 = vcmp.lt.s32.totalorder %v739, 0
        %v802 = vsub.s32 0, %v739
        %v803 = vsel %vm801, %v802, %v739
        %v804 = vshrl.u32 %v803, 4
        %v805 = vand.u32 %v803, 15
        %v806 = vsub.s32 0, %v805
        %v807 = vsel %vm801, %v806, %v805
        %vm808 = vcmp.lt.s32.totalorder %v740, 0
        %v809 = vsub.s32 0, %v740
        %v810 = vsel %vm808, %v809, %v740
        %v811 = vshrl.u32 %v810, 4
        %v812 = vand.u32 %v810, 15
        %v813 = vsub.s32 0, %v812
        %v814 = vsel %vm808, %v813, %v812
        %vm815 = vcmp.lt.s32.totalorder %v741, 0
        %v816 = vsub.s32 0, %v741
        %v817 = vsel %vm815, %v816, %v741
        %v818 = vshrl.u32 %v817, 4
        %v819 = vand.u32 %v817, 15
        %v820 = vsub.s32 0, %v819
        %v821 = vsel %vm815, %v820, %v819
        %vm822 = vcmp.lt.s32.totalorder %v742, 0
        %v823 = vsub.s32 0, %v742
        %v824 = vsel %vm822, %v823, %v742
        %v825 = vshrl.u32 %v824, 4
        %v826 = vand.u32 %v824, 15
        %v827 = vsub.s32 0, %v826
        %v828 = vsel %vm822, %v827, %v826
        %vm829 = vcmp.lt.s32.totalorder %v743, 0
        %v830 = vsub.s32 0, %v743
        %v831 = vsel %vm829, %v830, %v743
        %v832 = vshrl.u32 %v831, 4
        %v833 = vand.u32 %v831, 15
        %v834 = vsub.s32 0, %v833
        %v835 = vsel %vm829, %v834, %v833
        %vm836 = vcmp.lt.s32.totalorder %v744, 0
        %v837 = vsub.s32 0, %v744
        %v838 = vsel %vm836, %v837, %v744
        %v839 = vshrl.u32 %v838, 4
        %v840 = vand.u32 %v838, 15
        %v841 = vsub.s32 0, %v840
        %v842 = vsel %vm836, %v841, %v840
        %vm843 = vcmp.lt.s32.totalorder %v745, 0
        %v844 = vsub.s32 0, %v745
        %v845 = vsel %vm843, %v844, %v745
        %v846 = vshrl.u32 %v845, 4
        %v847 = vand.u32 %v845, 15
        %v848 = vsub.s32 0, %v847
        %v849 = vsel %vm843, %v848, %v847
        %vm850 = vcmp.lt.s32.totalorder %v746, 0
        %v851 = vsub.s32 0, %v746
        %v852 = vsel %vm850, %v851, %v746
        %v853 = vshrl.u32 %v852, 4
        %v854 = vand.u32 %v852, 15
        %v855 = vsub.s32 0, %v854
        %v856 = vsel %vm850, %v855, %v854
        %vm857 = vcmp.lt.s32.totalorder %v747, 0
        %v858 = vsub.s32 0, %v747
        %v859 = vsel %vm857, %v858, %v747
        %v860 = vshrl.u32 %v859, 4
        %v861 = vand.u32 %v859, 15
        %v862 = vsub.s32 0, %v861
        %v863 = vsel %vm857, %v862, %v861
        %vm864 = vcmp.lt.s32.totalorder %v748, 0
        %v865 = vsub.s32 0, %v748
        %v866 = vsel %vm864, %v865, %v748
        %v867 = vshrl.u32 %v866, 4
        %v868 = vand.u32 %v866, 15
        %v869 = vsub.s32 0, %v868
        %v870 = vsel %vm864, %v869, %v868
        %vm871 = vcmp.lt.s32.totalorder %v749, 0
        %v872 = vsub.s32 0, %v749
        %v873 = vsel %vm871, %v872, %v749
        %v874 = vshrl.u32 %v873, 4
        %v875 = vand.u32 %v873, 15
        %v876 = vsub.s32 0, %v875
        %v877 = vsel %vm871, %v876, %v875
        %vm878 = vcmp.lt.s32.totalorder %v750, 0
        %v879 = vsub.s32 0, %v750
        %v880 = vsel %vm878, %v879, %v750
        %v881 = vshrl.u32 %v880, 4
        %v882 = vand.u32 %v880, 15
        %v883 = vsub.s32 0, %v882
        %v884 = vsel %vm878, %v883, %v882
        %vm885 = vcmp.lt.s32.totalorder %v751, 0
        %v886 = vsub.s32 0, %v751
        %v887 = vsel %vm885, %v886, %v751
        %v888 = vshrl.u32 %v887, 4
        %v889 = vand.u32 %v887, 15
        %v890 = vsub.s32 0, %v889
        %v891 = vsel %vm885, %v890, %v889
        %vm892 = vcmp.lt.s32.totalorder %v752, 0
        %v893 = vsub.s32 0, %v752
        %v894 = vsel %vm892, %v893, %v752
        %v895 = vshrl.u32 %v894, 4
        %v896 = vand.u32 %v894, 15
        %v897 = vsub.s32 0, %v896
        %v898 = vsel %vm892, %v897, %v896
        %vm899 = vcmp.lt.s32.totalorder %v753, 0
        %v900 = vsub.s32 0, %v753
        %v901 = vsel %vm899, %v900, %v753
        %v902 = vshrl.u32 %v901, 4
        %v903 = vand.u32 %v901, 15
        %v904 = vsub.s32 0, %v903
        %v905 = vsel %vm899, %v904, %v903
        %vm906 = vcmp.lt.s32.totalorder %v754, 0
        %v907 = vsub.s32 0, %v754
        %v908 = vsel %vm906, %v907, %v754
        %v909 = vshrl.u32 %v908, 4
        %v910 = vand.u32 %v908, 15
        %v911 = vsub.s32 0, %v910
        %v912 = vsel %vm906, %v911, %v910
        %vm913 = vcmp.lt.s32.totalorder %v755, 0
        %v914 = vsub.s32 0, %v755
        %v915 = vsel %vm913, %v914, %v755
        %v916 = vshrl.u32 %v915, 4
        %v917 = vand.u32 %v915, 15
        %v918 = vsub.s32 0, %v917
        %v919 = vsel %vm913, %v918, %v917
        %vm920 = vcmp.lt.s32.totalorder %v756, 0
        %v921 = vsub.s32 0, %v756
        %v922 = vsel %vm920, %v921, %v756
        %v923 = vshrl.u32 %v922, 4
        %v924 = vand.u32 %v922, 15
        %v925 = vsub.s32 0, %v924
        %v926 = vsel %vm920, %v925, %v924
        %vm927 = vcmp.lt.s32.totalorder %v757, 0
        %v928 = vsub.s32 0, %v757
        %v929 = vsel %vm927, %v928, %v757
        %v930 = vshrl.u32 %v929, 4
        %v931 = vand.u32 %v929, 15
        %v932 = vsub.s32 0, %v931
        %v933 = vsel %vm927, %v932, %v931
        %vm934 = vcmp.lt.s32.totalorder %v758, 0
        %v935 = vsub.s32 0, %v758
        %v936 = vsel %vm934, %v935, %v758
        %v937 = vshrl.u32 %v936, 4
        %v938 = vand.u32 %v936, 15
        %v939 = vsub.s32 0, %v938
        %v940 = vsel %vm934, %v939, %v938
        %vm941 = vcmp.lt.s32.totalorder %v759, 0
        %v942 = vsub.s32 0, %v759
        %v943 = vsel %vm941, %v942, %v759
        %v944 = vshrl.u32 %v943, 4
        %v945 = vand.u32 %v943, 15
        %v946 = vsub.s32 0, %v945
        %v947 = vsel %vm941, %v946, %v945
        %vm948 = vcmp.lt.s32.totalorder %v760, 0
        %v949 = vsub.s32 0, %v760
        %v950 = vsel %vm948, %v949, %v760
        %v951 = vshrl.u32 %v950, 4
        %v952 = vand.u32 %v950, 15
        %v953 = vsub.s32 0, %v952
        %v954 = vsel %vm948, %v953, %v952
        %vm955 = vcmp.lt.s32.totalorder %v761, 0
        %v956 = vsub.s32 0, %v761
        %v957 = vsel %vm955, %v956, %v761
        %v958 = vshrl.u32 %v957, 4
        %v959 = vand.u32 %v957, 15
        %v960 = vsub.s32 0, %v959
        %v961 = vsel %vm955, %v960, %v959
        %vm962 = vcmp.lt.s32.totalorder %v762, 0
        %v963 = vsub.s32 0, %v762
        %v964 = vsel %vm962, %v963, %v762
        %v965 = vshrl.u32 %v964, 4
        %v966 = vand.u32 %v964, 15
        %v967 = vsub.s32 0, %v966
        %v968 = vsel %vm962, %v967, %v966
        %vm969 = vcmp.lt.s32.totalorder %v763, 0
        %v970 = vsub.s32 0, %v763
        %v971 = vsel %vm969, %v970, %v763
        %v972 = vshrl.u32 %v971, 4
        %v973 = vand.u32 %v971, 15
        %v974 = vsub.s32 0, %v973
        %v975 = vsel %vm969, %v974, %v973
        %vm976 = vcmp.lt.s32.totalorder %v764, 0
        %v977 = vsub.s32 0, %v764
        %v978 = vsel %vm976, %v977, %v764
        %v979 = vshrl.u32 %v978, 4
        %v980 = vand.u32 %v978, 15
        %v981 = vsub.s32 0, %v980
        %v982 = vsel %vm976, %v981, %v980
        %vm983 = vcmp.lt.s32.totalorder %v765, 0
        %v984 = vsub.s32 0, %v765
        %v985 = vsel %vm983, %v984, %v765
        %v986 = vshrl.u32 %v985, 4
        %v987 = vand.u32 %v985, 15
        %v988 = vsub.s32 0, %v987
        %v989 = vsel %vm983, %v988, %v987
        %vm990 = vcmp.ne.s32.totalorder %v772, 0
        %vm991 = vcmp.ne.s32.totalorder %v779, 0
        %vm992 = vcmp.ne.s32.totalorder %v786, 0
        %vm993 = vcmp.ne.s32.totalorder %v793, 0
        %vm994 = vcmp.ne.s32.totalorder %v800, 0
        %vm995 = vcmp.ne.s32.totalorder %v807, 0
        %vm996 = vcmp.ne.s32.totalorder %v814, 0
        %vm997 = vcmp.ne.s32.totalorder %v821, 0
        %vm998 = vcmp.ne.s32.totalorder %v828, 0
        %vm999 = vcmp.ne.s32.totalorder %v835, 0
        %vm1000 = vcmp.ne.s32.totalorder %v842, 0
        %vm1001 = vcmp.ne.s32.totalorder %v849, 0
        %vm1002 = vcmp.ne.s32.totalorder %v856, 0
        %vm1003 = vcmp.ne.s32.totalorder %v863, 0
        %vm1004 = vcmp.ne.s32.totalorder %v870, 0
        %vm1005 = vcmp.ne.s32.totalorder %v877, 0
        %vm1006 = vcmp.ne.s32.totalorder %v884, 0
        %vm1007 = vcmp.ne.s32.totalorder %v891, 0
        %vm1008 = vcmp.ne.s32.totalorder %v898, 0
        %vm1009 = vcmp.ne.s32.totalorder %v905, 0
        %vm1010 = vcmp.ne.s32.totalorder %v912, 0
        %vm1011 = vcmp.ne.s32.totalorder %v919, 0
        %vm1012 = vcmp.ne.s32.totalorder %v926, 0
        %vm1013 = vcmp.ne.s32.totalorder %v933, 0
        %vm1014 = vcmp.ne.s32.totalorder %v940, 0
        %vm1015 = vcmp.ne.s32.totalorder %v947, 0
        %vm1016 = vcmp.ne.s32.totalorder %v954, 0
        %vm1017 = vcmp.ne.s32.totalorder %v961, 0
        %vm1018 = vcmp.ne.s32.totalorder %v968, 0
        %vm1019 = vcmp.ne.s32.totalorder %v975, 0
        %vm1020 = vcmp.ne.s32.totalorder %v982, 0
        %vm1021 = vcmp.ne.s32.totalorder %v989, 0
        %vm1022 = vcmp.lt.s32.totalorder %v772, 0
        %vm1023 = vcmp.lt.s32.totalorder %v779, 0
        %vm1024 = vcmp.lt.s32.totalorder %v786, 0
        %vm1025 = vcmp.lt.s32.totalorder %v793, 0
        %vm1026 = vcmp.lt.s32.totalorder %v800, 0
        %vm1027 = vcmp.lt.s32.totalorder %v807, 0
        %vm1028 = vcmp.lt.s32.totalorder %v814, 0
        %vm1029 = vcmp.lt.s32.totalorder %v821, 0
        %vm1030 = vcmp.lt.s32.totalorder %v828, 0
        %vm1031 = vcmp.lt.s32.totalorder %v835, 0
        %vm1032 = vcmp.lt.s32.totalorder %v842, 0
        %vm1033 = vcmp.lt.s32.totalorder %v849, 0
        %vm1034 = vcmp.lt.s32.totalorder %v856, 0
        %vm1035 = vcmp.lt.s32.totalorder %v863, 0
        %vm1036 = vcmp.lt.s32.totalorder %v870, 0
        %vm1037 = vcmp.lt.s32.totalorder %v877, 0
        %vm1038 = vcmp.lt.s32.totalorder %v884, 0
        %vm1039 = vcmp.lt.s32.totalorder %v891, 0
        %vm1040 = vcmp.lt.s32.totalorder %v898, 0
        %vm1041 = vcmp.lt.s32.totalorder %v905, 0
        %vm1042 = vcmp.lt.s32.totalorder %v912, 0
        %vm1043 = vcmp.lt.s32.totalorder %v919, 0
        %vm1044 = vcmp.lt.s32.totalorder %v926, 0
        %vm1045 = vcmp.lt.s32.totalorder %v933, 0
        %vm1046 = vcmp.lt.s32.totalorder %v940, 0
        %vm1047 = vcmp.lt.s32.totalorder %v947, 0
        %vm1048 = vcmp.lt.s32.totalorder %v954, 0
        %vm1049 = vcmp.lt.s32.totalorder %v961, 0
        %vm1050 = vcmp.lt.s32.totalorder %v968, 0
        %vm1051 = vcmp.lt.s32.totalorder %v975, 0
        %vm1052 = vcmp.lt.s32.totalorder %v982, 0
        %vm1053 = vcmp.lt.s32.totalorder %v989, 0
        %vm1054 = vmand %vm1022, %vm990
        %vm1055 = vmand %vm1023, %vm991
        %vm1056 = vmand %vm1024, %vm992
        %vm1057 = vmand %vm1025, %vm993
        %vm1058 = vmand %vm1026, %vm994
        %vm1059 = vmand %vm1027, %vm995
        %vm1060 = vmand %vm1028, %vm996
        %vm1061 = vmand %vm1029, %vm997
        %vm1062 = vmand %vm1030, %vm998
        %vm1063 = vmand %vm1031, %vm999
        %vm1064 = vmand %vm1032, %vm1000
        %vm1065 = vmand %vm1033, %vm1001
        %vm1066 = vmand %vm1034, %vm1002
        %vm1067 = vmand %vm1035, %vm1003
        %vm1068 = vmand %vm1036, %vm1004
        %vm1069 = vmand %vm1037, %vm1005
        %vm1070 = vmand %vm1038, %vm1006
        %vm1071 = vmand %vm1039, %vm1007
        %vm1072 = vmand %vm1040, %vm1008
        %vm1073 = vmand %vm1041, %vm1009
        %vm1074 = vmand %vm1042, %vm1010
        %vm1075 = vmand %vm1043, %vm1011
        %vm1076 = vmand %vm1044, %vm1012
        %vm1077 = vmand %vm1045, %vm1013
        %vm1078 = vmand %vm1046, %vm1014
        %vm1079 = vmand %vm1047, %vm1015
        %vm1080 = vmand %vm1048, %vm1016
        %vm1081 = vmand %vm1049, %vm1017
        %vm1082 = vmand %vm1050, %vm1018
        %vm1083 = vmand %vm1051, %vm1019
        %vm1084 = vmand %vm1052, %vm1020
        %vm1085 = vmand %vm1053, %vm1021
        %v1086 = vadd.s32 %v772, 16
        %v1087 = vadd.s32 %v779, 16
        %v1088 = vadd.s32 %v786, 16
        %v1089 = vadd.s32 %v793, 16
        %v1090 = vadd.s32 %v800, 16
        %v1091 = vadd.s32 %v807, 16
        %v1092 = vadd.s32 %v814, 16
        %v1093 = vadd.s32 %v821, 16
        %v1094 = vadd.s32 %v828, 16
        %v1095 = vadd.s32 %v835, 16
        %v1096 = vadd.s32 %v842, 16
        %v1097 = vadd.s32 %v849, 16
        %v1098 = vadd.s32 %v856, 16
        %v1099 = vadd.s32 %v863, 16
        %v1100 = vadd.s32 %v870, 16
        %v1101 = vadd.s32 %v877, 16
        %v1102 = vadd.s32 %v884, 16
        %v1103 = vadd.s32 %v891, 16
        %v1104 = vadd.s32 %v898, 16
        %v1105 = vadd.s32 %v905, 16
        %v1106 = vadd.s32 %v912, 16
        %v1107 = vadd.s32 %v919, 16
        %v1108 = vadd.s32 %v926, 16
        %v1109 = vadd.s32 %v933, 16
        %v1110 = vadd.s32 %v940, 16
        %v1111 = vadd.s32 %v947, 16
        %v1112 = vadd.s32 %v954, 16
        %v1113 = vadd.s32 %v961, 16
        %v1114 = vadd.s32 %v968, 16
        %v1115 = vadd.s32 %v975, 16
        %v1116 = vadd.s32 %v982, 16
        %v1117 = vadd.s32 %v989, 16
        %v1118 = vsel %vm1054, %v1086, %v772
        %v1119 = vsel %vm1055, %v1087, %v779
        %v1120 = vsel %vm1056, %v1088, %v786
        %v1121 = vsel %vm1057, %v1089, %v793
        %v1122 = vsel %vm1058, %v1090, %v800
        %v1123 = vsel %vm1059, %v1091, %v807
        %v1124 = vsel %vm1060, %v1092, %v814
        %v1125 = vsel %vm1061, %v1093, %v821
        %v1126 = vsel %vm1062, %v1094, %v828
        %v1127 = vsel %vm1063, %v1095, %v835
        %v1128 = vsel %vm1064, %v1096, %v842
        %v1129 = vsel %vm1065, %v1097, %v849
        %v1130 = vsel %vm1066, %v1098, %v856
        %v1131 = vsel %vm1067, %v1099, %v863
        %v1132 = vsel %vm1068, %v1100, %v870
        %v1133 = vsel %vm1069, %v1101, %v877
        %v1134 = vsel %vm1070, %v1102, %v884
        %v1135 = vsel %vm1071, %v1103, %v891
        %v1136 = vsel %vm1072, %v1104, %v898
        %v1137 = vsel %vm1073, %v1105, %v905
        %v1138 = vsel %vm1074, %v1106, %v912
        %v1139 = vsel %vm1075, %v1107, %v919
        %v1140 = vsel %vm1076, %v1108, %v926
        %v1141 = vsel %vm1077, %v1109, %v933
        %v1142 = vsel %vm1078, %v1110, %v940
        %v1143 = vsel %vm1079, %v1111, %v947
        %v1144 = vsel %vm1080, %v1112, %v954
        %v1145 = vsel %vm1081, %v1113, %v961
        %v1146 = vsel %vm1082, %v1114, %v968
        %v1147 = vsel %vm1083, %v1115, %v975
        %v1148 = vsel %vm1084, %v1116, %v982
        %v1149 = vsel %vm1085, %v1117, %v989
        %v1150 = vrot.slane %v701, 7
        %v1151 = vrot.slane %v702, 7
        %v1152 = vrot.slane %v703, 7
        %v1153 = vrot.slane %v704, 7
        %v1154 = vrot.slane %v705, 7
        %v1155 = vrot.slane %v706, 7
        %v1156 = vrot.slane %v707, 7
        %v1157 = vrot.slane %v708, 7
        %v1158 = vrot.slane %v709, 7
        %v1159 = vrot.slane %v710, 7
        %v1160 = vrot.slane %v711, 7
        %v1161 = vrot.slane %v712, 7
        %v1162 = vrot.slane %v713, 7
        %v1163 = vrot.slane %v714, 7
        %v1164 = vrot.slane %v715, 7
        %v1165 = vrot.slane %v716, 7
        %v1166 = vrot.slane %v717, 7
        %v1167 = vrot.slane %v718, 7
        %v1168 = vrot.slane %v719, 7
        %v1169 = vrot.slane %v720, 7
        %v1170 = vrot.slane %v721, 7
        %v1171 = vrot.slane %v722, 7
        %v1172 = vrot.slane %v723, 7
        %v1173 = vrot.slane %v724, 7
        %v1174 = vrot.slane %v725, 7
        %v1175 = vrot.slane %v726, 7
        %v1176 = vrot.slane %v727, 7
        %v1177 = vrot.slane %v728, 7
        %v1178 = vrot.slane %v729, 7
        %v1179 = vrot.slane %v730, 7
        %v1180 = vrot.slane %v731, 7
        %v1181 = vrot.slane %v732, 7
        %vm1182 = vcmp.lt.s32.totalorder %v734, 1
        %v1183 = vsel %vm1182, %v1180, %v1181
        %v1184 = vsel %vm1182, %v1179, %v1180
        %v1185 = vsel %vm1182, %v1178, %v1179
        %v1186 = vsel %vm1182, %v1177, %v1178
        %v1187 = vsel %vm1182, %v1176, %v1177
        %v1188 = vsel %vm1182, %v1175, %v1176
        %v1189 = vsel %vm1182, %v1174, %v1175
        %v1190 = vsel %vm1182, %v1173, %v1174
        %v1191 = vsel %vm1182, %v1172, %v1173
        %v1192 = vsel %vm1182, %v1171, %v1172
        %v1193 = vsel %vm1182, %v1170, %v1171
        %v1194 = vsel %vm1182, %v1169, %v1170
        %v1195 = vsel %vm1182, %v1168, %v1169
        %v1196 = vsel %vm1182, %v1167, %v1168
        %v1197 = vsel %vm1182, %v1166, %v1167
        %v1198 = vsel %vm1182, %v1165, %v1166
        %v1199 = vsel %vm1182, %v1164, %v1165
        %v1200 = vsel %vm1182, %v1163, %v1164
        %v1201 = vsel %vm1182, %v1162, %v1163
        %v1202 = vsel %vm1182, %v1161, %v1162
        %v1203 = vsel %vm1182, %v1160, %v1161
        %v1204 = vsel %vm1182, %v1159, %v1160
        %v1205 = vsel %vm1182, %v1158, %v1159
        %v1206 = vsel %vm1182, %v1157, %v1158
        %v1207 = vsel %vm1182, %v1156, %v1157
        %v1208 = vsel %vm1182, %v1155, %v1156
        %v1209 = vsel %vm1182, %v1154, %v1155
        %v1210 = vsel %vm1182, %v1153, %v1154
        %v1211 = vsel %vm1182, %v1152, %v1153
        %v1212 = vsel %vm1182, %v1151, %v1152
        %v1213 = vsel %vm1182, %v1150, %v1151
        %v1214 = vsel %vm1182, %v1181, %v1150
        %vm1215 = vcmp.ge.s32.totalorder %v734, 16
        %vm1216 = vcmp.ge.s32.totalorder %v735, 16
        %vm1217 = vcmp.ge.s32.totalorder %v736, 16
        %vm1218 = vcmp.ge.s32.totalorder %v737, 16
        %vm1219 = vcmp.ge.s32.totalorder %v738, 16
        %vm1220 = vcmp.ge.s32.totalorder %v739, 16
        %vm1221 = vcmp.ge.s32.totalorder %v740, 16
        %vm1222 = vcmp.ge.s32.totalorder %v741, 16
        %vm1223 = vcmp.ge.s32.totalorder %v742, 16
        %vm1224 = vcmp.ge.s32.totalorder %v743, 16
        %vm1225 = vcmp.ge.s32.totalorder %v744, 16
        %vm1226 = vcmp.ge.s32.totalorder %v745, 16
        %vm1227 = vcmp.ge.s32.totalorder %v746, 16
        %vm1228 = vcmp.ge.s32.totalorder %v747, 16
        %vm1229 = vcmp.ge.s32.totalorder %v748, 16
        %vm1230 = vcmp.ge.s32.totalorder %v749, 16
        %vm1231 = vcmp.ge.s32.totalorder %v750, 16
        %vm1232 = vcmp.ge.s32.totalorder %v751, 16
        %vm1233 = vcmp.ge.s32.totalorder %v752, 16
        %vm1234 = vcmp.ge.s32.totalorder %v753, 16
        %vm1235 = vcmp.ge.s32.totalorder %v754, 16
        %vm1236 = vcmp.ge.s32.totalorder %v755, 16
        %vm1237 = vcmp.ge.s32.totalorder %v756, 16
        %vm1238 = vcmp.ge.s32.totalorder %v757, 16
        %vm1239 = vcmp.ge.s32.totalorder %v758, 16
        %vm1240 = vcmp.ge.s32.totalorder %v759, 16
        %vm1241 = vcmp.ge.s32.totalorder %v760, 16
        %vm1242 = vcmp.ge.s32.totalorder %v761, 16
        %vm1243 = vcmp.ge.s32.totalorder %v762, 16
        %vm1244 = vcmp.ge.s32.totalorder %v763, 16
        %vm1245 = vcmp.ge.s32.totalorder %v764, 16
        %vm1246 = vcmp.ge.s32.totalorder %v765, 16
        %vm1247 = vcmp.ge.s32.totalorder %v1118, 1
        %vm1248 = vcmp.ge.s32.totalorder %v1119, 1
        %vm1249 = vcmp.ge.s32.totalorder %v1120, 1
        %vm1250 = vcmp.ge.s32.totalorder %v1121, 1
        %vm1251 = vcmp.ge.s32.totalorder %v1122, 1
        %vm1252 = vcmp.ge.s32.totalorder %v1123, 1
        %vm1253 = vcmp.ge.s32.totalorder %v1124, 1
        %vm1254 = vcmp.ge.s32.totalorder %v1125, 1
        %vm1255 = vcmp.ge.s32.totalorder %v1126, 1
        %vm1256 = vcmp.ge.s32.totalorder %v1127, 1
        %vm1257 = vcmp.ge.s32.totalorder %v1128, 1
        %vm1258 = vcmp.ge.s32.totalorder %v1129, 1
        %vm1259 = vcmp.ge.s32.totalorder %v1130, 1
        %vm1260 = vcmp.ge.s32.totalorder %v1131, 1
        %vm1261 = vcmp.ge.s32.totalorder %v1132, 1
        %vm1262 = vcmp.ge.s32.totalorder %v1133, 1
        %vm1263 = vcmp.ge.s32.totalorder %v1134, 1
        %vm1264 = vcmp.ge.s32.totalorder %v1135, 1
        %vm1265 = vcmp.ge.s32.totalorder %v1136, 1
        %vm1266 = vcmp.ge.s32.totalorder %v1137, 1
        %vm1267 = vcmp.ge.s32.totalorder %v1138, 1
        %vm1268 = vcmp.ge.s32.totalorder %v1139, 1
        %vm1269 = vcmp.ge.s32.totalorder %v1140, 1
        %vm1270 = vcmp.ge.s32.totalorder %v1141, 1
        %vm1271 = vcmp.ge.s32.totalorder %v1142, 1
        %vm1272 = vcmp.ge.s32.totalorder %v1143, 1
        %vm1273 = vcmp.ge.s32.totalorder %v1144, 1
        %vm1274 = vcmp.ge.s32.totalorder %v1145, 1
        %vm1275 = vcmp.ge.s32.totalorder %v1146, 1
        %vm1276 = vcmp.ge.s32.totalorder %v1147, 1
        %vm1277 = vcmp.ge.s32.totalorder %v1148, 1
        %vm1278 = vcmp.ge.s32.totalorder %v1149, 1
        %vm1279 = vmand %vm1215, %vm1247
        %vm1280 = vmand %vm1216, %vm1248
        %vm1281 = vmand %vm1217, %vm1249
        %vm1282 = vmand %vm1218, %vm1250
        %vm1283 = vmand %vm1219, %vm1251
        %vm1284 = vmand %vm1220, %vm1252
        %vm1285 = vmand %vm1221, %vm1253
        %vm1286 = vmand %vm1222, %vm1254
        %vm1287 = vmand %vm1223, %vm1255
        %vm1288 = vmand %vm1224, %vm1256
        %vm1289 = vmand %vm1225, %vm1257
        %vm1290 = vmand %vm1226, %vm1258
        %vm1291 = vmand %vm1227, %vm1259
        %vm1292 = vmand %vm1228, %vm1260
        %vm1293 = vmand %vm1229, %vm1261
        %vm1294 = vmand %vm1230, %vm1262
        %vm1295 = vmand %vm1231, %vm1263
        %vm1296 = vmand %vm1232, %vm1264
        %vm1297 = vmand %vm1233, %vm1265
        %vm1298 = vmand %vm1234, %vm1266
        %vm1299 = vmand %vm1235, %vm1267
        %vm1300 = vmand %vm1236, %vm1268
        %vm1301 = vmand %vm1237, %vm1269
        %vm1302 = vmand %vm1238, %vm1270
        %vm1303 = vmand %vm1239, %vm1271
        %vm1304 = vmand %vm1240, %vm1272
        %vm1305 = vmand %vm1241, %vm1273
        %vm1306 = vmand %vm1242, %vm1274
        %vm1307 = vmand %vm1243, %vm1275
        %vm1308 = vmand %vm1244, %vm1276
        %vm1309 = vmand %vm1245, %vm1277
        %vm1310 = vmand %vm1246, %vm1278
        %v1311 = vsel %vm1279, 1, 0
        %v1312 = vsel %vm1280, 1, 0
        %v1313 = vsel %vm1281, 1, 0
        %v1314 = vsel %vm1282, 1, 0
        %v1315 = vsel %vm1283, 1, 0
        %v1316 = vsel %vm1284, 1, 0
        %v1317 = vsel %vm1285, 1, 0
        %v1318 = vsel %vm1286, 1, 0
        %v1319 = vsel %vm1287, 1, 0
        %v1320 = vsel %vm1288, 1, 0
        %v1321 = vsel %vm1289, 1, 0
        %v1322 = vsel %vm1290, 1, 0
        %v1323 = vsel %vm1291, 1, 0
        %v1324 = vsel %vm1292, 1, 0
        %v1325 = vsel %vm1293, 1, 0
        %v1326 = vsel %vm1294, 1, 0
        %v1327 = vsel %vm1295, 1, 0
        %v1328 = vsel %vm1296, 1, 0
        %v1329 = vsel %vm1297, 1, 0
        %v1330 = vsel %vm1298, 1, 0
        %v1331 = vsel %vm1299, 1, 0
        %v1332 = vsel %vm1300, 1, 0
        %v1333 = vsel %vm1301, 1, 0
        %v1334 = vsel %vm1302, 1, 0
        %v1335 = vsel %vm1303, 1, 0
        %v1336 = vsel %vm1304, 1, 0
        %v1337 = vsel %vm1305, 1, 0
        %v1338 = vsel %vm1306, 1, 0
        %v1339 = vsel %vm1307, 1, 0
        %v1340 = vsel %vm1308, 1, 0
        %v1341 = vsel %vm1309, 1, 0
        %v1342 = vsel %vm1310, 1, 0
        %vm1343 = vcmp.eq.s32.totalorder %v1311, 1
        %vm1344 = vcmp.eq.s32.totalorder %v1312, 1
        %vm1345 = vcmp.eq.s32.totalorder %v1313, 1
        %vm1346 = vcmp.eq.s32.totalorder %v1314, 1
        %vm1347 = vcmp.eq.s32.totalorder %v1315, 1
        %vm1348 = vcmp.eq.s32.totalorder %v1316, 1
        %vm1349 = vcmp.eq.s32.totalorder %v1317, 1
        %vm1350 = vcmp.eq.s32.totalorder %v1318, 1
        %vm1351 = vcmp.eq.s32.totalorder %v1319, 1
        %vm1352 = vcmp.eq.s32.totalorder %v1320, 1
        %vm1353 = vcmp.eq.s32.totalorder %v1321, 1
        %vm1354 = vcmp.eq.s32.totalorder %v1322, 1
        %vm1355 = vcmp.eq.s32.totalorder %v1323, 1
        %vm1356 = vcmp.eq.s32.totalorder %v1324, 1
        %vm1357 = vcmp.eq.s32.totalorder %v1325, 1
        %vm1358 = vcmp.eq.s32.totalorder %v1326, 1
        %vm1359 = vcmp.eq.s32.totalorder %v1327, 1
        %vm1360 = vcmp.eq.s32.totalorder %v1328, 1
        %vm1361 = vcmp.eq.s32.totalorder %v1329, 1
        %vm1362 = vcmp.eq.s32.totalorder %v1330, 1
        %vm1363 = vcmp.eq.s32.totalorder %v1331, 1
        %vm1364 = vcmp.eq.s32.totalorder %v1332, 1
        %vm1365 = vcmp.eq.s32.totalorder %v1333, 1
        %vm1366 = vcmp.eq.s32.totalorder %v1334, 1
        %vm1367 = vcmp.eq.s32.totalorder %v1335, 1
        %vm1368 = vcmp.eq.s32.totalorder %v1336, 1
        %vm1369 = vcmp.eq.s32.totalorder %v1337, 1
        %vm1370 = vcmp.eq.s32.totalorder %v1338, 1
        %vm1371 = vcmp.eq.s32.totalorder %v1339, 1
        %vm1372 = vcmp.eq.s32.totalorder %v1340, 1
        %vm1373 = vcmp.eq.s32.totalorder %v1341, 1
        %vm1374 = vcmp.eq.s32.totalorder %v1342, 1
        %v1375 = vsel %vm1343, %v1184, 0.0
        %v1376 = vsel %vm1344, %v1183, 0.0
        %v1377 = vsel %vm1345, %v1214, 0.0
        %v1378 = vsel %vm1346, %v1213, 0.0
        %v1379 = vsel %vm1347, %v1212, 0.0
        %v1380 = vsel %vm1348, %v1211, 0.0
        %v1381 = vsel %vm1349, %v1210, 0.0
        %v1382 = vsel %vm1350, %v1209, 0.0
        %v1383 = vsel %vm1351, %v1208, 0.0
        %v1384 = vsel %vm1352, %v1207, 0.0
        %v1385 = vsel %vm1353, %v1206, 0.0
        %v1386 = vsel %vm1354, %v1205, 0.0
        %v1387 = vsel %vm1355, %v1204, 0.0
        %v1388 = vsel %vm1356, %v1203, 0.0
        %v1389 = vsel %vm1357, %v1202, 0.0
        %v1390 = vsel %vm1358, %v1201, 0.0
        %v1391 = vsel %vm1359, %v1200, 0.0
        %v1392 = vsel %vm1360, %v1199, 0.0
        %v1393 = vsel %vm1361, %v1198, 0.0
        %v1394 = vsel %vm1362, %v1197, 0.0
        %v1395 = vsel %vm1363, %v1196, 0.0
        %v1396 = vsel %vm1364, %v1195, 0.0
        %v1397 = vsel %vm1365, %v1194, 0.0
        %v1398 = vsel %vm1366, %v1193, 0.0
        %v1399 = vsel %vm1367, %v1192, 0.0
        %v1400 = vsel %vm1368, %v1191, 0.0
        %v1401 = vsel %vm1369, %v1190, 0.0
        %v1402 = vsel %vm1370, %v1189, 0.0
        %v1403 = vsel %vm1371, %v1188, 0.0
        %v1404 = vsel %vm1372, %v1187, 0.0
        %v1405 = vsel %vm1373, %v1186, 0.0
        %v1406 = vsel %vm1374, %v1185, 0.0
        %v1407 = vsel %vm1215, 1, 0
        %v1408 = vsel %vm1216, 1, 0
        %v1409 = vsel %vm1217, 1, 0
        %v1410 = vsel %vm1218, 1, 0
        %v1411 = vsel %vm1219, 1, 0
        %v1412 = vsel %vm1220, 1, 0
        %v1413 = vsel %vm1221, 1, 0
        %v1414 = vsel %vm1222, 1, 0
        %v1415 = vsel %vm1223, 1, 0
        %v1416 = vsel %vm1224, 1, 0
        %v1417 = vsel %vm1225, 1, 0
        %v1418 = vsel %vm1226, 1, 0
        %v1419 = vsel %vm1227, 1, 0
        %v1420 = vsel %vm1228, 1, 0
        %v1421 = vsel %vm1229, 1, 0
        %v1422 = vsel %vm1230, 1, 0
        %v1423 = vsel %vm1231, 1, 0
        %v1424 = vsel %vm1232, 1, 0
        %v1425 = vsel %vm1233, 1, 0
        %v1426 = vsel %vm1234, 1, 0
        %v1427 = vsel %vm1235, 1, 0
        %v1428 = vsel %vm1236, 1, 0
        %v1429 = vsel %vm1237, 1, 0
        %v1430 = vsel %vm1238, 1, 0
        %v1431 = vsel %vm1239, 1, 0
        %v1432 = vsel %vm1240, 1, 0
        %v1433 = vsel %vm1241, 1, 0
        %v1434 = vsel %vm1242, 1, 0
        %v1435 = vsel %vm1243, 1, 0
        %v1436 = vsel %vm1244, 1, 0
        %v1437 = vsel %vm1245, 1, 0
        %v1438 = vsel %vm1246, 1, 0
        %vm1439 = vcmp.eq.s32.totalorder %v1407, 1
        %vm1440 = vcmp.eq.s32.totalorder %v1408, 1
        %vm1441 = vcmp.eq.s32.totalorder %v1409, 1
        %vm1442 = vcmp.eq.s32.totalorder %v1410, 1
        %vm1443 = vcmp.eq.s32.totalorder %v1411, 1
        %vm1444 = vcmp.eq.s32.totalorder %v1412, 1
        %vm1445 = vcmp.eq.s32.totalorder %v1413, 1
        %vm1446 = vcmp.eq.s32.totalorder %v1414, 1
        %vm1447 = vcmp.eq.s32.totalorder %v1415, 1
        %vm1448 = vcmp.eq.s32.totalorder %v1416, 1
        %vm1449 = vcmp.eq.s32.totalorder %v1417, 1
        %vm1450 = vcmp.eq.s32.totalorder %v1418, 1
        %vm1451 = vcmp.eq.s32.totalorder %v1419, 1
        %vm1452 = vcmp.eq.s32.totalorder %v1420, 1
        %vm1453 = vcmp.eq.s32.totalorder %v1421, 1
        %vm1454 = vcmp.eq.s32.totalorder %v1422, 1
        %vm1455 = vcmp.eq.s32.totalorder %v1423, 1
        %vm1456 = vcmp.eq.s32.totalorder %v1424, 1
        %vm1457 = vcmp.eq.s32.totalorder %v1425, 1
        %vm1458 = vcmp.eq.s32.totalorder %v1426, 1
        %vm1459 = vcmp.eq.s32.totalorder %v1427, 1
        %vm1460 = vcmp.eq.s32.totalorder %v1428, 1
        %vm1461 = vcmp.eq.s32.totalorder %v1429, 1
        %vm1462 = vcmp.eq.s32.totalorder %v1430, 1
        %vm1463 = vcmp.eq.s32.totalorder %v1431, 1
        %vm1464 = vcmp.eq.s32.totalorder %v1432, 1
        %vm1465 = vcmp.eq.s32.totalorder %v1433, 1
        %vm1466 = vcmp.eq.s32.totalorder %v1434, 1
        %vm1467 = vcmp.eq.s32.totalorder %v1435, 1
        %vm1468 = vcmp.eq.s32.totalorder %v1436, 1
        %vm1469 = vcmp.eq.s32.totalorder %v1437, 1
        %vm1470 = vcmp.eq.s32.totalorder %v1438, 1
        %v1471 = vsel %vm1439, %v731, 0.0
        %v1472 = vsel %vm1440, %v732, 0.0
        %v1473 = vsel %vm1441, %v701, 0.0
        %v1474 = vsel %vm1442, %v702, 0.0
        %v1475 = vsel %vm1443, %v703, 0.0
        %v1476 = vsel %vm1444, %v704, 0.0
        %v1477 = vsel %vm1445, %v705, 0.0
        %v1478 = vsel %vm1446, %v706, 0.0
        %v1479 = vsel %vm1447, %v707, 0.0
        %v1480 = vsel %vm1448, %v708, 0.0
        %v1481 = vsel %vm1449, %v709, 0.0
        %v1482 = vsel %vm1450, %v710, 0.0
        %v1483 = vsel %vm1451, %v711, 0.0
        %v1484 = vsel %vm1452, %v712, 0.0
        %v1485 = vsel %vm1453, %v713, 0.0
        %v1486 = vsel %vm1454, %v714, 0.0
        %v1487 = vsel %vm1455, %v715, 0.0
        %v1488 = vsel %vm1456, %v716, 0.0
        %v1489 = vsel %vm1457, %v717, 0.0
        %v1490 = vsel %vm1458, %v718, 0.0
        %v1491 = vsel %vm1459, %v719, 0.0
        %v1492 = vsel %vm1460, %v720, 0.0
        %v1493 = vsel %vm1461, %v721, 0.0
        %v1494 = vsel %vm1462, %v722, 0.0
        %v1495 = vsel %vm1463, %v723, 0.0
        %v1496 = vsel %vm1464, %v724, 0.0
        %v1497 = vsel %vm1465, %v725, 0.0
        %v1498 = vsel %vm1466, %v726, 0.0
        %v1499 = vsel %vm1467, %v727, 0.0
        %v1500 = vsel %vm1468, %v728, 0.0
        %v1501 = vsel %vm1469, %v729, 0.0
        %v1502 = vsel %vm1470, %v730, 0.0
        %v1503 = vrot.slane %v701, 1
        %v1504 = vrot.slane %v702, 1
        %v1505 = vrot.slane %v703, 1
        %v1506 = vrot.slane %v704, 1
        %v1507 = vrot.slane %v705, 1
        %v1508 = vrot.slane %v706, 1
        %v1509 = vrot.slane %v707, 1
        %v1510 = vrot.slane %v708, 1
        %v1511 = vrot.slane %v709, 1
        %v1512 = vrot.slane %v710, 1
        %v1513 = vrot.slane %v711, 1
        %v1514 = vrot.slane %v712, 1
        %v1515 = vrot.slane %v713, 1
        %v1516 = vrot.slane %v714, 1
        %v1517 = vrot.slane %v715, 1
        %v1518 = vrot.slane %v716, 1
        %v1519 = vrot.slane %v717, 1
        %v1520 = vrot.slane %v718, 1
        %v1521 = vrot.slane %v719, 1
        %v1522 = vrot.slane %v720, 1
        %v1523 = vrot.slane %v721, 1
        %v1524 = vrot.slane %v722, 1
        %v1525 = vrot.slane %v723, 1
        %v1526 = vrot.slane %v724, 1
        %v1527 = vrot.slane %v725, 1
        %v1528 = vrot.slane %v726, 1
        %v1529 = vrot.slane %v727, 1
        %v1530 = vrot.slane %v728, 1
        %v1531 = vrot.slane %v729, 1
        %v1532 = vrot.slane %v730, 1
        %v1533 = vrot.slane %v731, 1
        %v1534 = vrot.slane %v732, 1
        %vm1535 = vcmp.lt.s32.totalorder %v734, 7
        %v1536 = vsel %vm1535, %v1533, %v1534
        %v1537 = vsel %vm1535, %v1532, %v1533
        %v1538 = vsel %vm1535, %v1531, %v1532
        %v1539 = vsel %vm1535, %v1530, %v1531
        %v1540 = vsel %vm1535, %v1529, %v1530
        %v1541 = vsel %vm1535, %v1528, %v1529
        %v1542 = vsel %vm1535, %v1527, %v1528
        %v1543 = vsel %vm1535, %v1526, %v1527
        %v1544 = vsel %vm1535, %v1525, %v1526
        %v1545 = vsel %vm1535, %v1524, %v1525
        %v1546 = vsel %vm1535, %v1523, %v1524
        %v1547 = vsel %vm1535, %v1522, %v1523
        %v1548 = vsel %vm1535, %v1521, %v1522
        %v1549 = vsel %vm1535, %v1520, %v1521
        %v1550 = vsel %vm1535, %v1519, %v1520
        %v1551 = vsel %vm1535, %v1518, %v1519
        %v1552 = vsel %vm1535, %v1517, %v1518
        %v1553 = vsel %vm1535, %v1516, %v1517
        %v1554 = vsel %vm1535, %v1515, %v1516
        %v1555 = vsel %vm1535, %v1514, %v1515
        %v1556 = vsel %vm1535, %v1513, %v1514
        %v1557 = vsel %vm1535, %v1512, %v1513
        %v1558 = vsel %vm1535, %v1511, %v1512
        %v1559 = vsel %vm1535, %v1510, %v1511
        %v1560 = vsel %vm1535, %v1509, %v1510
        %v1561 = vsel %vm1535, %v1508, %v1509
        %v1562 = vsel %vm1535, %v1507, %v1508
        %v1563 = vsel %vm1535, %v1506, %v1507
        %v1564 = vsel %vm1535, %v1505, %v1506
        %v1565 = vsel %vm1535, %v1504, %v1505
        %v1566 = vsel %vm1535, %v1503, %v1504
        %v1567 = vsel %vm1535, %v1534, %v1503
        %vm1568 = vcmp.le.s32.totalorder %v1118, 14
        %vm1569 = vcmp.le.s32.totalorder %v1119, 14
        %vm1570 = vcmp.le.s32.totalorder %v1120, 14
        %vm1571 = vcmp.le.s32.totalorder %v1121, 14
        %vm1572 = vcmp.le.s32.totalorder %v1122, 14
        %vm1573 = vcmp.le.s32.totalorder %v1123, 14
        %vm1574 = vcmp.le.s32.totalorder %v1124, 14
        %vm1575 = vcmp.le.s32.totalorder %v1125, 14
        %vm1576 = vcmp.le.s32.totalorder %v1126, 14
        %vm1577 = vcmp.le.s32.totalorder %v1127, 14
        %vm1578 = vcmp.le.s32.totalorder %v1128, 14
        %vm1579 = vcmp.le.s32.totalorder %v1129, 14
        %vm1580 = vcmp.le.s32.totalorder %v1130, 14
        %vm1581 = vcmp.le.s32.totalorder %v1131, 14
        %vm1582 = vcmp.le.s32.totalorder %v1132, 14
        %vm1583 = vcmp.le.s32.totalorder %v1133, 14
        %vm1584 = vcmp.le.s32.totalorder %v1134, 14
        %vm1585 = vcmp.le.s32.totalorder %v1135, 14
        %vm1586 = vcmp.le.s32.totalorder %v1136, 14
        %vm1587 = vcmp.le.s32.totalorder %v1137, 14
        %vm1588 = vcmp.le.s32.totalorder %v1138, 14
        %vm1589 = vcmp.le.s32.totalorder %v1139, 14
        %vm1590 = vcmp.le.s32.totalorder %v1140, 14
        %vm1591 = vcmp.le.s32.totalorder %v1141, 14
        %vm1592 = vcmp.le.s32.totalorder %v1142, 14
        %vm1593 = vcmp.le.s32.totalorder %v1143, 14
        %vm1594 = vcmp.le.s32.totalorder %v1144, 14
        %vm1595 = vcmp.le.s32.totalorder %v1145, 14
        %vm1596 = vcmp.le.s32.totalorder %v1146, 14
        %vm1597 = vcmp.le.s32.totalorder %v1147, 14
        %vm1598 = vcmp.le.s32.totalorder %v1148, 14
        %vm1599 = vcmp.le.s32.totalorder %v1149, 14
        %vm1600 = vmand %vm1215, %vm1568
        %vm1601 = vmand %vm1216, %vm1569
        %vm1602 = vmand %vm1217, %vm1570
        %vm1603 = vmand %vm1218, %vm1571
        %vm1604 = vmand %vm1219, %vm1572
        %vm1605 = vmand %vm1220, %vm1573
        %vm1606 = vmand %vm1221, %vm1574
        %vm1607 = vmand %vm1222, %vm1575
        %vm1608 = vmand %vm1223, %vm1576
        %vm1609 = vmand %vm1224, %vm1577
        %vm1610 = vmand %vm1225, %vm1578
        %vm1611 = vmand %vm1226, %vm1579
        %vm1612 = vmand %vm1227, %vm1580
        %vm1613 = vmand %vm1228, %vm1581
        %vm1614 = vmand %vm1229, %vm1582
        %vm1615 = vmand %vm1230, %vm1583
        %vm1616 = vmand %vm1231, %vm1584
        %vm1617 = vmand %vm1232, %vm1585
        %vm1618 = vmand %vm1233, %vm1586
        %vm1619 = vmand %vm1234, %vm1587
        %vm1620 = vmand %vm1235, %vm1588
        %vm1621 = vmand %vm1236, %vm1589
        %vm1622 = vmand %vm1237, %vm1590
        %vm1623 = vmand %vm1238, %vm1591
        %vm1624 = vmand %vm1239, %vm1592
        %vm1625 = vmand %vm1240, %vm1593
        %vm1626 = vmand %vm1241, %vm1594
        %vm1627 = vmand %vm1242, %vm1595
        %vm1628 = vmand %vm1243, %vm1596
        %vm1629 = vmand %vm1244, %vm1597
        %vm1630 = vmand %vm1245, %vm1598
        %vm1631 = vmand %vm1246, %vm1599
        %v1632 = vsel %vm1600, 1, 0
        %v1633 = vsel %vm1601, 1, 0
        %v1634 = vsel %vm1602, 1, 0
        %v1635 = vsel %vm1603, 1, 0
        %v1636 = vsel %vm1604, 1, 0
        %v1637 = vsel %vm1605, 1, 0
        %v1638 = vsel %vm1606, 1, 0
        %v1639 = vsel %vm1607, 1, 0
        %v1640 = vsel %vm1608, 1, 0
        %v1641 = vsel %vm1609, 1, 0
        %v1642 = vsel %vm1610, 1, 0
        %v1643 = vsel %vm1611, 1, 0
        %v1644 = vsel %vm1612, 1, 0
        %v1645 = vsel %vm1613, 1, 0
        %v1646 = vsel %vm1614, 1, 0
        %v1647 = vsel %vm1615, 1, 0
        %v1648 = vsel %vm1616, 1, 0
        %v1649 = vsel %vm1617, 1, 0
        %v1650 = vsel %vm1618, 1, 0
        %v1651 = vsel %vm1619, 1, 0
        %v1652 = vsel %vm1620, 1, 0
        %v1653 = vsel %vm1621, 1, 0
        %v1654 = vsel %vm1622, 1, 0
        %v1655 = vsel %vm1623, 1, 0
        %v1656 = vsel %vm1624, 1, 0
        %v1657 = vsel %vm1625, 1, 0
        %v1658 = vsel %vm1626, 1, 0
        %v1659 = vsel %vm1627, 1, 0
        %v1660 = vsel %vm1628, 1, 0
        %v1661 = vsel %vm1629, 1, 0
        %v1662 = vsel %vm1630, 1, 0
        %v1663 = vsel %vm1631, 1, 0
        %vm1664 = vcmp.eq.s32.totalorder %v1632, 1
        %vm1665 = vcmp.eq.s32.totalorder %v1633, 1
        %vm1666 = vcmp.eq.s32.totalorder %v1634, 1
        %vm1667 = vcmp.eq.s32.totalorder %v1635, 1
        %vm1668 = vcmp.eq.s32.totalorder %v1636, 1
        %vm1669 = vcmp.eq.s32.totalorder %v1637, 1
        %vm1670 = vcmp.eq.s32.totalorder %v1638, 1
        %vm1671 = vcmp.eq.s32.totalorder %v1639, 1
        %vm1672 = vcmp.eq.s32.totalorder %v1640, 1
        %vm1673 = vcmp.eq.s32.totalorder %v1641, 1
        %vm1674 = vcmp.eq.s32.totalorder %v1642, 1
        %vm1675 = vcmp.eq.s32.totalorder %v1643, 1
        %vm1676 = vcmp.eq.s32.totalorder %v1644, 1
        %vm1677 = vcmp.eq.s32.totalorder %v1645, 1
        %vm1678 = vcmp.eq.s32.totalorder %v1646, 1
        %vm1679 = vcmp.eq.s32.totalorder %v1647, 1
        %vm1680 = vcmp.eq.s32.totalorder %v1648, 1
        %vm1681 = vcmp.eq.s32.totalorder %v1649, 1
        %vm1682 = vcmp.eq.s32.totalorder %v1650, 1
        %vm1683 = vcmp.eq.s32.totalorder %v1651, 1
        %vm1684 = vcmp.eq.s32.totalorder %v1652, 1
        %vm1685 = vcmp.eq.s32.totalorder %v1653, 1
        %vm1686 = vcmp.eq.s32.totalorder %v1654, 1
        %vm1687 = vcmp.eq.s32.totalorder %v1655, 1
        %vm1688 = vcmp.eq.s32.totalorder %v1656, 1
        %vm1689 = vcmp.eq.s32.totalorder %v1657, 1
        %vm1690 = vcmp.eq.s32.totalorder %v1658, 1
        %vm1691 = vcmp.eq.s32.totalorder %v1659, 1
        %vm1692 = vcmp.eq.s32.totalorder %v1660, 1
        %vm1693 = vcmp.eq.s32.totalorder %v1661, 1
        %vm1694 = vcmp.eq.s32.totalorder %v1662, 1
        %vm1695 = vcmp.eq.s32.totalorder %v1663, 1
        %v1696 = vsel %vm1664, %v1536, 0.0
        %v1697 = vsel %vm1665, %v1567, 0.0
        %v1698 = vsel %vm1666, %v1566, 0.0
        %v1699 = vsel %vm1667, %v1565, 0.0
        %v1700 = vsel %vm1668, %v1564, 0.0
        %v1701 = vsel %vm1669, %v1563, 0.0
        %v1702 = vsel %vm1670, %v1562, 0.0
        %v1703 = vsel %vm1671, %v1561, 0.0
        %v1704 = vsel %vm1672, %v1560, 0.0
        %v1705 = vsel %vm1673, %v1559, 0.0
        %v1706 = vsel %vm1674, %v1558, 0.0
        %v1707 = vsel %vm1675, %v1557, 0.0
        %v1708 = vsel %vm1676, %v1556, 0.0
        %v1709 = vsel %vm1677, %v1555, 0.0
        %v1710 = vsel %vm1678, %v1554, 0.0
        %v1711 = vsel %vm1679, %v1553, 0.0
        %v1712 = vsel %vm1680, %v1552, 0.0
        %v1713 = vsel %vm1681, %v1551, 0.0
        %v1714 = vsel %vm1682, %v1550, 0.0
        %v1715 = vsel %vm1683, %v1549, 0.0
        %v1716 = vsel %vm1684, %v1548, 0.0
        %v1717 = vsel %vm1685, %v1547, 0.0
        %v1718 = vsel %vm1686, %v1546, 0.0
        %v1719 = vsel %vm1687, %v1545, 0.0
        %v1720 = vsel %vm1688, %v1544, 0.0
        %v1721 = vsel %vm1689, %v1543, 0.0
        %v1722 = vsel %vm1690, %v1542, 0.0
        %v1723 = vsel %vm1691, %v1541, 0.0
        %v1724 = vsel %vm1692, %v1540, 0.0
        %v1725 = vsel %vm1693, %v1539, 0.0
        %v1726 = vsel %vm1694, %v1538, 0.0
        %v1727 = vsel %vm1695, %v1537, 0.0
        %v1728 = vsel %vm1247, 1, 0
        %v1729 = vsel %vm1248, 1, 0
        %v1730 = vsel %vm1249, 1, 0
        %v1731 = vsel %vm1250, 1, 0
        %v1732 = vsel %vm1251, 1, 0
        %v1733 = vsel %vm1252, 1, 0
        %v1734 = vsel %vm1253, 1, 0
        %v1735 = vsel %vm1254, 1, 0
        %v1736 = vsel %vm1255, 1, 0
        %v1737 = vsel %vm1256, 1, 0
        %v1738 = vsel %vm1257, 1, 0
        %v1739 = vsel %vm1258, 1, 0
        %v1740 = vsel %vm1259, 1, 0
        %v1741 = vsel %vm1260, 1, 0
        %v1742 = vsel %vm1261, 1, 0
        %v1743 = vsel %vm1262, 1, 0
        %v1744 = vsel %vm1263, 1, 0
        %v1745 = vsel %vm1264, 1, 0
        %v1746 = vsel %vm1265, 1, 0
        %v1747 = vsel %vm1266, 1, 0
        %v1748 = vsel %vm1267, 1, 0
        %v1749 = vsel %vm1268, 1, 0
        %v1750 = vsel %vm1269, 1, 0
        %v1751 = vsel %vm1270, 1, 0
        %v1752 = vsel %vm1271, 1, 0
        %v1753 = vsel %vm1272, 1, 0
        %v1754 = vsel %vm1273, 1, 0
        %v1755 = vsel %vm1274, 1, 0
        %v1756 = vsel %vm1275, 1, 0
        %v1757 = vsel %vm1276, 1, 0
        %v1758 = vsel %vm1277, 1, 0
        %v1759 = vsel %vm1278, 1, 0
        %vm1760 = vcmp.eq.s32.totalorder %v1728, 1
        %vm1761 = vcmp.eq.s32.totalorder %v1729, 1
        %vm1762 = vcmp.eq.s32.totalorder %v1730, 1
        %vm1763 = vcmp.eq.s32.totalorder %v1731, 1
        %vm1764 = vcmp.eq.s32.totalorder %v1732, 1
        %vm1765 = vcmp.eq.s32.totalorder %v1733, 1
        %vm1766 = vcmp.eq.s32.totalorder %v1734, 1
        %vm1767 = vcmp.eq.s32.totalorder %v1735, 1
        %vm1768 = vcmp.eq.s32.totalorder %v1736, 1
        %vm1769 = vcmp.eq.s32.totalorder %v1737, 1
        %vm1770 = vcmp.eq.s32.totalorder %v1738, 1
        %vm1771 = vcmp.eq.s32.totalorder %v1739, 1
        %vm1772 = vcmp.eq.s32.totalorder %v1740, 1
        %vm1773 = vcmp.eq.s32.totalorder %v1741, 1
        %vm1774 = vcmp.eq.s32.totalorder %v1742, 1
        %vm1775 = vcmp.eq.s32.totalorder %v1743, 1
        %vm1776 = vcmp.eq.s32.totalorder %v1744, 1
        %vm1777 = vcmp.eq.s32.totalorder %v1745, 1
        %vm1778 = vcmp.eq.s32.totalorder %v1746, 1
        %vm1779 = vcmp.eq.s32.totalorder %v1747, 1
        %vm1780 = vcmp.eq.s32.totalorder %v1748, 1
        %vm1781 = vcmp.eq.s32.totalorder %v1749, 1
        %vm1782 = vcmp.eq.s32.totalorder %v1750, 1
        %vm1783 = vcmp.eq.s32.totalorder %v1751, 1
        %vm1784 = vcmp.eq.s32.totalorder %v1752, 1
        %vm1785 = vcmp.eq.s32.totalorder %v1753, 1
        %vm1786 = vcmp.eq.s32.totalorder %v1754, 1
        %vm1787 = vcmp.eq.s32.totalorder %v1755, 1
        %vm1788 = vcmp.eq.s32.totalorder %v1756, 1
        %vm1789 = vcmp.eq.s32.totalorder %v1757, 1
        %vm1790 = vcmp.eq.s32.totalorder %v1758, 1
        %vm1791 = vcmp.eq.s32.totalorder %v1759, 1
        %v1792 = vsel %vm1760, %v1214, 0.0
        %v1793 = vsel %vm1761, %v1213, 0.0
        %v1794 = vsel %vm1762, %v1212, 0.0
        %v1795 = vsel %vm1763, %v1211, 0.0
        %v1796 = vsel %vm1764, %v1210, 0.0
        %v1797 = vsel %vm1765, %v1209, 0.0
        %v1798 = vsel %vm1766, %v1208, 0.0
        %v1799 = vsel %vm1767, %v1207, 0.0
        %v1800 = vsel %vm1768, %v1206, 0.0
        %v1801 = vsel %vm1769, %v1205, 0.0
        %v1802 = vsel %vm1770, %v1204, 0.0
        %v1803 = vsel %vm1771, %v1203, 0.0
        %v1804 = vsel %vm1772, %v1202, 0.0
        %v1805 = vsel %vm1773, %v1201, 0.0
        %v1806 = vsel %vm1774, %v1200, 0.0
        %v1807 = vsel %vm1775, %v1199, 0.0
        %v1808 = vsel %vm1776, %v1198, 0.0
        %v1809 = vsel %vm1777, %v1197, 0.0
        %v1810 = vsel %vm1778, %v1196, 0.0
        %v1811 = vsel %vm1779, %v1195, 0.0
        %v1812 = vsel %vm1780, %v1194, 0.0
        %v1813 = vsel %vm1781, %v1193, 0.0
        %v1814 = vsel %vm1782, %v1192, 0.0
        %v1815 = vsel %vm1783, %v1191, 0.0
        %v1816 = vsel %vm1784, %v1190, 0.0
        %v1817 = vsel %vm1785, %v1189, 0.0
        %v1818 = vsel %vm1786, %v1188, 0.0
        %v1819 = vsel %vm1787, %v1187, 0.0
        %v1820 = vsel %vm1788, %v1186, 0.0
        %v1821 = vsel %vm1789, %v1185, 0.0
        %v1822 = vsel %vm1790, %v1184, 0.0
        %v1823 = vsel %vm1791, %v1183, 0.0
        %v1824 = vsel %vm1568, 1, 0
        %v1825 = vsel %vm1569, 1, 0
        %v1826 = vsel %vm1570, 1, 0
        %v1827 = vsel %vm1571, 1, 0
        %v1828 = vsel %vm1572, 1, 0
        %v1829 = vsel %vm1573, 1, 0
        %v1830 = vsel %vm1574, 1, 0
        %v1831 = vsel %vm1575, 1, 0
        %v1832 = vsel %vm1576, 1, 0
        %v1833 = vsel %vm1577, 1, 0
        %v1834 = vsel %vm1578, 1, 0
        %v1835 = vsel %vm1579, 1, 0
        %v1836 = vsel %vm1580, 1, 0
        %v1837 = vsel %vm1581, 1, 0
        %v1838 = vsel %vm1582, 1, 0
        %v1839 = vsel %vm1583, 1, 0
        %v1840 = vsel %vm1584, 1, 0
        %v1841 = vsel %vm1585, 1, 0
        %v1842 = vsel %vm1586, 1, 0
        %v1843 = vsel %vm1587, 1, 0
        %v1844 = vsel %vm1588, 1, 0
        %v1845 = vsel %vm1589, 1, 0
        %v1846 = vsel %vm1590, 1, 0
        %v1847 = vsel %vm1591, 1, 0
        %v1848 = vsel %vm1592, 1, 0
        %v1849 = vsel %vm1593, 1, 0
        %v1850 = vsel %vm1594, 1, 0
        %v1851 = vsel %vm1595, 1, 0
        %v1852 = vsel %vm1596, 1, 0
        %v1853 = vsel %vm1597, 1, 0
        %v1854 = vsel %vm1598, 1, 0
        %v1855 = vsel %vm1599, 1, 0
        %vm1856 = vcmp.eq.s32.totalorder %v1824, 1
        %vm1857 = vcmp.eq.s32.totalorder %v1825, 1
        %vm1858 = vcmp.eq.s32.totalorder %v1826, 1
        %vm1859 = vcmp.eq.s32.totalorder %v1827, 1
        %vm1860 = vcmp.eq.s32.totalorder %v1828, 1
        %vm1861 = vcmp.eq.s32.totalorder %v1829, 1
        %vm1862 = vcmp.eq.s32.totalorder %v1830, 1
        %vm1863 = vcmp.eq.s32.totalorder %v1831, 1
        %vm1864 = vcmp.eq.s32.totalorder %v1832, 1
        %vm1865 = vcmp.eq.s32.totalorder %v1833, 1
        %vm1866 = vcmp.eq.s32.totalorder %v1834, 1
        %vm1867 = vcmp.eq.s32.totalorder %v1835, 1
        %vm1868 = vcmp.eq.s32.totalorder %v1836, 1
        %vm1869 = vcmp.eq.s32.totalorder %v1837, 1
        %vm1870 = vcmp.eq.s32.totalorder %v1838, 1
        %vm1871 = vcmp.eq.s32.totalorder %v1839, 1
        %vm1872 = vcmp.eq.s32.totalorder %v1840, 1
        %vm1873 = vcmp.eq.s32.totalorder %v1841, 1
        %vm1874 = vcmp.eq.s32.totalorder %v1842, 1
        %vm1875 = vcmp.eq.s32.totalorder %v1843, 1
        %vm1876 = vcmp.eq.s32.totalorder %v1844, 1
        %vm1877 = vcmp.eq.s32.totalorder %v1845, 1
        %vm1878 = vcmp.eq.s32.totalorder %v1846, 1
        %vm1879 = vcmp.eq.s32.totalorder %v1847, 1
        %vm1880 = vcmp.eq.s32.totalorder %v1848, 1
        %vm1881 = vcmp.eq.s32.totalorder %v1849, 1
        %vm1882 = vcmp.eq.s32.totalorder %v1850, 1
        %vm1883 = vcmp.eq.s32.totalorder %v1851, 1
        %vm1884 = vcmp.eq.s32.totalorder %v1852, 1
        %vm1885 = vcmp.eq.s32.totalorder %v1853, 1
        %vm1886 = vcmp.eq.s32.totalorder %v1854, 1
        %vm1887 = vcmp.eq.s32.totalorder %v1855, 1
        %v1888 = vsel %vm1856, %v1566, 0.0
        %v1889 = vsel %vm1857, %v1565, 0.0
        %v1890 = vsel %vm1858, %v1564, 0.0
        %v1891 = vsel %vm1859, %v1563, 0.0
        %v1892 = vsel %vm1860, %v1562, 0.0
        %v1893 = vsel %vm1861, %v1561, 0.0
        %v1894 = vsel %vm1862, %v1560, 0.0
        %v1895 = vsel %vm1863, %v1559, 0.0
        %v1896 = vsel %vm1864, %v1558, 0.0
        %v1897 = vsel %vm1865, %v1557, 0.0
        %v1898 = vsel %vm1866, %v1556, 0.0
        %v1899 = vsel %vm1867, %v1555, 0.0
        %v1900 = vsel %vm1868, %v1554, 0.0
        %v1901 = vsel %vm1869, %v1553, 0.0
        %v1902 = vsel %vm1870, %v1552, 0.0
        %v1903 = vsel %vm1871, %v1551, 0.0
        %v1904 = vsel %vm1872, %v1550, 0.0
        %v1905 = vsel %vm1873, %v1549, 0.0
        %v1906 = vsel %vm1874, %v1548, 0.0
        %v1907 = vsel %vm1875, %v1547, 0.0
        %v1908 = vsel %vm1876, %v1546, 0.0
        %v1909 = vsel %vm1877, %v1545, 0.0
        %v1910 = vsel %vm1878, %v1544, 0.0
        %v1911 = vsel %vm1879, %v1543, 0.0
        %v1912 = vsel %vm1880, %v1542, 0.0
        %v1913 = vsel %vm1881, %v1541, 0.0
        %v1914 = vsel %vm1882, %v1540, 0.0
        %v1915 = vsel %vm1883, %v1539, 0.0
        %v1916 = vsel %vm1884, %v1538, 0.0
        %v1917 = vsel %vm1885, %v1537, 0.0
        %v1918 = vsel %vm1886, %v1536, 0.0
        %v1919 = vsel %vm1887, %v1567, 0.0
        %vm1920 = vcmp.lt.s32.totalorder %v734, 240
        %vm1921 = vcmp.lt.s32.totalorder %v735, 240
        %vm1922 = vcmp.lt.s32.totalorder %v736, 240
        %vm1923 = vcmp.lt.s32.totalorder %v737, 240
        %vm1924 = vcmp.lt.s32.totalorder %v738, 240
        %vm1925 = vcmp.lt.s32.totalorder %v739, 240
        %vm1926 = vcmp.lt.s32.totalorder %v740, 240
        %vm1927 = vcmp.lt.s32.totalorder %v741, 240
        %vm1928 = vcmp.lt.s32.totalorder %v742, 240
        %vm1929 = vcmp.lt.s32.totalorder %v743, 240
        %vm1930 = vcmp.lt.s32.totalorder %v744, 240
        %vm1931 = vcmp.lt.s32.totalorder %v745, 240
        %vm1932 = vcmp.lt.s32.totalorder %v746, 240
        %vm1933 = vcmp.lt.s32.totalorder %v747, 240
        %vm1934 = vcmp.lt.s32.totalorder %v748, 240
        %vm1935 = vcmp.lt.s32.totalorder %v749, 240
        %vm1936 = vcmp.lt.s32.totalorder %v750, 240
        %vm1937 = vcmp.lt.s32.totalorder %v751, 240
        %vm1938 = vcmp.lt.s32.totalorder %v752, 240
        %vm1939 = vcmp.lt.s32.totalorder %v753, 240
        %vm1940 = vcmp.lt.s32.totalorder %v754, 240
        %vm1941 = vcmp.lt.s32.totalorder %v755, 240
        %vm1942 = vcmp.lt.s32.totalorder %v756, 240
        %vm1943 = vcmp.lt.s32.totalorder %v757, 240
        %vm1944 = vcmp.lt.s32.totalorder %v758, 240
        %vm1945 = vcmp.lt.s32.totalorder %v759, 240
        %vm1946 = vcmp.lt.s32.totalorder %v760, 240
        %vm1947 = vcmp.lt.s32.totalorder %v761, 240
        %vm1948 = vcmp.lt.s32.totalorder %v762, 240
        %vm1949 = vcmp.lt.s32.totalorder %v763, 240
        %vm1950 = vcmp.lt.s32.totalorder %v764, 240
        %vm1951 = vcmp.lt.s32.totalorder %v765, 240
        %vm1952 = vmand %vm1920, %vm1247
        %vm1953 = vmand %vm1921, %vm1248
        %vm1954 = vmand %vm1922, %vm1249
        %vm1955 = vmand %vm1923, %vm1250
        %vm1956 = vmand %vm1924, %vm1251
        %vm1957 = vmand %vm1925, %vm1252
        %vm1958 = vmand %vm1926, %vm1253
        %vm1959 = vmand %vm1927, %vm1254
        %vm1960 = vmand %vm1928, %vm1255
        %vm1961 = vmand %vm1929, %vm1256
        %vm1962 = vmand %vm1930, %vm1257
        %vm1963 = vmand %vm1931, %vm1258
        %vm1964 = vmand %vm1932, %vm1259
        %vm1965 = vmand %vm1933, %vm1260
        %vm1966 = vmand %vm1934, %vm1261
        %vm1967 = vmand %vm1935, %vm1262
        %vm1968 = vmand %vm1936, %vm1263
        %vm1969 = vmand %vm1937, %vm1264
        %vm1970 = vmand %vm1938, %vm1265
        %vm1971 = vmand %vm1939, %vm1266
        %vm1972 = vmand %vm1940, %vm1267
        %vm1973 = vmand %vm1941, %vm1268
        %vm1974 = vmand %vm1942, %vm1269
        %vm1975 = vmand %vm1943, %vm1270
        %vm1976 = vmand %vm1944, %vm1271
        %vm1977 = vmand %vm1945, %vm1272
        %vm1978 = vmand %vm1946, %vm1273
        %vm1979 = vmand %vm1947, %vm1274
        %vm1980 = vmand %vm1948, %vm1275
        %vm1981 = vmand %vm1949, %vm1276
        %vm1982 = vmand %vm1950, %vm1277
        %vm1983 = vmand %vm1951, %vm1278
        %v1984 = vsel %vm1952, 1, 0
        %v1985 = vsel %vm1953, 1, 0
        %v1986 = vsel %vm1954, 1, 0
        %v1987 = vsel %vm1955, 1, 0
        %v1988 = vsel %vm1956, 1, 0
        %v1989 = vsel %vm1957, 1, 0
        %v1990 = vsel %vm1958, 1, 0
        %v1991 = vsel %vm1959, 1, 0
        %v1992 = vsel %vm1960, 1, 0
        %v1993 = vsel %vm1961, 1, 0
        %v1994 = vsel %vm1962, 1, 0
        %v1995 = vsel %vm1963, 1, 0
        %v1996 = vsel %vm1964, 1, 0
        %v1997 = vsel %vm1965, 1, 0
        %v1998 = vsel %vm1966, 1, 0
        %v1999 = vsel %vm1967, 1, 0
        %v2000 = vsel %vm1968, 1, 0
        %v2001 = vsel %vm1969, 1, 0
        %v2002 = vsel %vm1970, 1, 0
        %v2003 = vsel %vm1971, 1, 0
        %v2004 = vsel %vm1972, 1, 0
        %v2005 = vsel %vm1973, 1, 0
        %v2006 = vsel %vm1974, 1, 0
        %v2007 = vsel %vm1975, 1, 0
        %v2008 = vsel %vm1976, 1, 0
        %v2009 = vsel %vm1977, 1, 0
        %v2010 = vsel %vm1978, 1, 0
        %v2011 = vsel %vm1979, 1, 0
        %v2012 = vsel %vm1980, 1, 0
        %v2013 = vsel %vm1981, 1, 0
        %v2014 = vsel %vm1982, 1, 0
        %v2015 = vsel %vm1983, 1, 0
        %vm2016 = vcmp.eq.s32.totalorder %v1984, 1
        %vm2017 = vcmp.eq.s32.totalorder %v1985, 1
        %vm2018 = vcmp.eq.s32.totalorder %v1986, 1
        %vm2019 = vcmp.eq.s32.totalorder %v1987, 1
        %vm2020 = vcmp.eq.s32.totalorder %v1988, 1
        %vm2021 = vcmp.eq.s32.totalorder %v1989, 1
        %vm2022 = vcmp.eq.s32.totalorder %v1990, 1
        %vm2023 = vcmp.eq.s32.totalorder %v1991, 1
        %vm2024 = vcmp.eq.s32.totalorder %v1992, 1
        %vm2025 = vcmp.eq.s32.totalorder %v1993, 1
        %vm2026 = vcmp.eq.s32.totalorder %v1994, 1
        %vm2027 = vcmp.eq.s32.totalorder %v1995, 1
        %vm2028 = vcmp.eq.s32.totalorder %v1996, 1
        %vm2029 = vcmp.eq.s32.totalorder %v1997, 1
        %vm2030 = vcmp.eq.s32.totalorder %v1998, 1
        %vm2031 = vcmp.eq.s32.totalorder %v1999, 1
        %vm2032 = vcmp.eq.s32.totalorder %v2000, 1
        %vm2033 = vcmp.eq.s32.totalorder %v2001, 1
        %vm2034 = vcmp.eq.s32.totalorder %v2002, 1
        %vm2035 = vcmp.eq.s32.totalorder %v2003, 1
        %vm2036 = vcmp.eq.s32.totalorder %v2004, 1
        %vm2037 = vcmp.eq.s32.totalorder %v2005, 1
        %vm2038 = vcmp.eq.s32.totalorder %v2006, 1
        %vm2039 = vcmp.eq.s32.totalorder %v2007, 1
        %vm2040 = vcmp.eq.s32.totalorder %v2008, 1
        %vm2041 = vcmp.eq.s32.totalorder %v2009, 1
        %vm2042 = vcmp.eq.s32.totalorder %v2010, 1
        %vm2043 = vcmp.eq.s32.totalorder %v2011, 1
        %vm2044 = vcmp.eq.s32.totalorder %v2012, 1
        %vm2045 = vcmp.eq.s32.totalorder %v2013, 1
        %vm2046 = vcmp.eq.s32.totalorder %v2014, 1
        %vm2047 = vcmp.eq.s32.totalorder %v2015, 1
        %v2048 = vsel %vm2016, %v1212, 0.0
        %v2049 = vsel %vm2017, %v1211, 0.0
        %v2050 = vsel %vm2018, %v1210, 0.0
        %v2051 = vsel %vm2019, %v1209, 0.0
        %v2052 = vsel %vm2020, %v1208, 0.0
        %v2053 = vsel %vm2021, %v1207, 0.0
        %v2054 = vsel %vm2022, %v1206, 0.0
        %v2055 = vsel %vm2023, %v1205, 0.0
        %v2056 = vsel %vm2024, %v1204, 0.0
        %v2057 = vsel %vm2025, %v1203, 0.0
        %v2058 = vsel %vm2026, %v1202, 0.0
        %v2059 = vsel %vm2027, %v1201, 0.0
        %v2060 = vsel %vm2028, %v1200, 0.0
        %v2061 = vsel %vm2029, %v1199, 0.0
        %v2062 = vsel %vm2030, %v1198, 0.0
        %v2063 = vsel %vm2031, %v1197, 0.0
        %v2064 = vsel %vm2032, %v1196, 0.0
        %v2065 = vsel %vm2033, %v1195, 0.0
        %v2066 = vsel %vm2034, %v1194, 0.0
        %v2067 = vsel %vm2035, %v1193, 0.0
        %v2068 = vsel %vm2036, %v1192, 0.0
        %v2069 = vsel %vm2037, %v1191, 0.0
        %v2070 = vsel %vm2038, %v1190, 0.0
        %v2071 = vsel %vm2039, %v1189, 0.0
        %v2072 = vsel %vm2040, %v1188, 0.0
        %v2073 = vsel %vm2041, %v1187, 0.0
        %v2074 = vsel %vm2042, %v1186, 0.0
        %v2075 = vsel %vm2043, %v1185, 0.0
        %v2076 = vsel %vm2044, %v1184, 0.0
        %v2077 = vsel %vm2045, %v1183, 0.0
        %v2078 = vsel %vm2046, %v1214, 0.0
        %v2079 = vsel %vm2047, %v1213, 0.0
        %v2080 = vsel %vm1920, 1, 0
        %v2081 = vsel %vm1921, 1, 0
        %v2082 = vsel %vm1922, 1, 0
        %v2083 = vsel %vm1923, 1, 0
        %v2084 = vsel %vm1924, 1, 0
        %v2085 = vsel %vm1925, 1, 0
        %v2086 = vsel %vm1926, 1, 0
        %v2087 = vsel %vm1927, 1, 0
        %v2088 = vsel %vm1928, 1, 0
        %v2089 = vsel %vm1929, 1, 0
        %v2090 = vsel %vm1930, 1, 0
        %v2091 = vsel %vm1931, 1, 0
        %v2092 = vsel %vm1932, 1, 0
        %v2093 = vsel %vm1933, 1, 0
        %v2094 = vsel %vm1934, 1, 0
        %v2095 = vsel %vm1935, 1, 0
        %v2096 = vsel %vm1936, 1, 0
        %v2097 = vsel %vm1937, 1, 0
        %v2098 = vsel %vm1938, 1, 0
        %v2099 = vsel %vm1939, 1, 0
        %v2100 = vsel %vm1940, 1, 0
        %v2101 = vsel %vm1941, 1, 0
        %v2102 = vsel %vm1942, 1, 0
        %v2103 = vsel %vm1943, 1, 0
        %v2104 = vsel %vm1944, 1, 0
        %v2105 = vsel %vm1945, 1, 0
        %v2106 = vsel %vm1946, 1, 0
        %v2107 = vsel %vm1947, 1, 0
        %v2108 = vsel %vm1948, 1, 0
        %v2109 = vsel %vm1949, 1, 0
        %v2110 = vsel %vm1950, 1, 0
        %v2111 = vsel %vm1951, 1, 0
        %vm2112 = vcmp.eq.s32.totalorder %v2080, 1
        %vm2113 = vcmp.eq.s32.totalorder %v2081, 1
        %vm2114 = vcmp.eq.s32.totalorder %v2082, 1
        %vm2115 = vcmp.eq.s32.totalorder %v2083, 1
        %vm2116 = vcmp.eq.s32.totalorder %v2084, 1
        %vm2117 = vcmp.eq.s32.totalorder %v2085, 1
        %vm2118 = vcmp.eq.s32.totalorder %v2086, 1
        %vm2119 = vcmp.eq.s32.totalorder %v2087, 1
        %vm2120 = vcmp.eq.s32.totalorder %v2088, 1
        %vm2121 = vcmp.eq.s32.totalorder %v2089, 1
        %vm2122 = vcmp.eq.s32.totalorder %v2090, 1
        %vm2123 = vcmp.eq.s32.totalorder %v2091, 1
        %vm2124 = vcmp.eq.s32.totalorder %v2092, 1
        %vm2125 = vcmp.eq.s32.totalorder %v2093, 1
        %vm2126 = vcmp.eq.s32.totalorder %v2094, 1
        %vm2127 = vcmp.eq.s32.totalorder %v2095, 1
        %vm2128 = vcmp.eq.s32.totalorder %v2096, 1
        %vm2129 = vcmp.eq.s32.totalorder %v2097, 1
        %vm2130 = vcmp.eq.s32.totalorder %v2098, 1
        %vm2131 = vcmp.eq.s32.totalorder %v2099, 1
        %vm2132 = vcmp.eq.s32.totalorder %v2100, 1
        %vm2133 = vcmp.eq.s32.totalorder %v2101, 1
        %vm2134 = vcmp.eq.s32.totalorder %v2102, 1
        %vm2135 = vcmp.eq.s32.totalorder %v2103, 1
        %vm2136 = vcmp.eq.s32.totalorder %v2104, 1
        %vm2137 = vcmp.eq.s32.totalorder %v2105, 1
        %vm2138 = vcmp.eq.s32.totalorder %v2106, 1
        %vm2139 = vcmp.eq.s32.totalorder %v2107, 1
        %vm2140 = vcmp.eq.s32.totalorder %v2108, 1
        %vm2141 = vcmp.eq.s32.totalorder %v2109, 1
        %vm2142 = vcmp.eq.s32.totalorder %v2110, 1
        %vm2143 = vcmp.eq.s32.totalorder %v2111, 1
        %v2144 = vsel %vm2112, %v703, 0.0
        %v2145 = vsel %vm2113, %v704, 0.0
        %v2146 = vsel %vm2114, %v705, 0.0
        %v2147 = vsel %vm2115, %v706, 0.0
        %v2148 = vsel %vm2116, %v707, 0.0
        %v2149 = vsel %vm2117, %v708, 0.0
        %v2150 = vsel %vm2118, %v709, 0.0
        %v2151 = vsel %vm2119, %v710, 0.0
        %v2152 = vsel %vm2120, %v711, 0.0
        %v2153 = vsel %vm2121, %v712, 0.0
        %v2154 = vsel %vm2122, %v713, 0.0
        %v2155 = vsel %vm2123, %v714, 0.0
        %v2156 = vsel %vm2124, %v715, 0.0
        %v2157 = vsel %vm2125, %v716, 0.0
        %v2158 = vsel %vm2126, %v717, 0.0
        %v2159 = vsel %vm2127, %v718, 0.0
        %v2160 = vsel %vm2128, %v719, 0.0
        %v2161 = vsel %vm2129, %v720, 0.0
        %v2162 = vsel %vm2130, %v721, 0.0
        %v2163 = vsel %vm2131, %v722, 0.0
        %v2164 = vsel %vm2132, %v723, 0.0
        %v2165 = vsel %vm2133, %v724, 0.0
        %v2166 = vsel %vm2134, %v725, 0.0
        %v2167 = vsel %vm2135, %v726, 0.0
        %v2168 = vsel %vm2136, %v727, 0.0
        %v2169 = vsel %vm2137, %v728, 0.0
        %v2170 = vsel %vm2138, %v729, 0.0
        %v2171 = vsel %vm2139, %v730, 0.0
        %v2172 = vsel %vm2140, %v731, 0.0
        %v2173 = vsel %vm2141, %v732, 0.0
        %v2174 = vsel %vm2142, %v701, 0.0
        %v2175 = vsel %vm2143, %v702, 0.0
        %vm2176 = vmand %vm1920, %vm1568
        %vm2177 = vmand %vm1921, %vm1569
        %vm2178 = vmand %vm1922, %vm1570
        %vm2179 = vmand %vm1923, %vm1571
        %vm2180 = vmand %vm1924, %vm1572
        %vm2181 = vmand %vm1925, %vm1573
        %vm2182 = vmand %vm1926, %vm1574
        %vm2183 = vmand %vm1927, %vm1575
        %vm2184 = vmand %vm1928, %vm1576
        %vm2185 = vmand %vm1929, %vm1577
        %vm2186 = vmand %vm1930, %vm1578
        %vm2187 = vmand %vm1931, %vm1579
        %vm2188 = vmand %vm1932, %vm1580
        %vm2189 = vmand %vm1933, %vm1581
        %vm2190 = vmand %vm1934, %vm1582
        %vm2191 = vmand %vm1935, %vm1583
        %vm2192 = vmand %vm1936, %vm1584
        %vm2193 = vmand %vm1937, %vm1585
        %vm2194 = vmand %vm1938, %vm1586
        %vm2195 = vmand %vm1939, %vm1587
        %vm2196 = vmand %vm1940, %vm1588
        %vm2197 = vmand %vm1941, %vm1589
        %vm2198 = vmand %vm1942, %vm1590
        %vm2199 = vmand %vm1943, %vm1591
        %vm2200 = vmand %vm1944, %vm1592
        %vm2201 = vmand %vm1945, %vm1593
        %vm2202 = vmand %vm1946, %vm1594
        %vm2203 = vmand %vm1947, %vm1595
        %vm2204 = vmand %vm1948, %vm1596
        %vm2205 = vmand %vm1949, %vm1597
        %vm2206 = vmand %vm1950, %vm1598
        %vm2207 = vmand %vm1951, %vm1599
        %v2208 = vsel %vm2176, 1, 0
        %v2209 = vsel %vm2177, 1, 0
        %v2210 = vsel %vm2178, 1, 0
        %v2211 = vsel %vm2179, 1, 0
        %v2212 = vsel %vm2180, 1, 0
        %v2213 = vsel %vm2181, 1, 0
        %v2214 = vsel %vm2182, 1, 0
        %v2215 = vsel %vm2183, 1, 0
        %v2216 = vsel %vm2184, 1, 0
        %v2217 = vsel %vm2185, 1, 0
        %v2218 = vsel %vm2186, 1, 0
        %v2219 = vsel %vm2187, 1, 0
        %v2220 = vsel %vm2188, 1, 0
        %v2221 = vsel %vm2189, 1, 0
        %v2222 = vsel %vm2190, 1, 0
        %v2223 = vsel %vm2191, 1, 0
        %v2224 = vsel %vm2192, 1, 0
        %v2225 = vsel %vm2193, 1, 0
        %v2226 = vsel %vm2194, 1, 0
        %v2227 = vsel %vm2195, 1, 0
        %v2228 = vsel %vm2196, 1, 0
        %v2229 = vsel %vm2197, 1, 0
        %v2230 = vsel %vm2198, 1, 0
        %v2231 = vsel %vm2199, 1, 0
        %v2232 = vsel %vm2200, 1, 0
        %v2233 = vsel %vm2201, 1, 0
        %v2234 = vsel %vm2202, 1, 0
        %v2235 = vsel %vm2203, 1, 0
        %v2236 = vsel %vm2204, 1, 0
        %v2237 = vsel %vm2205, 1, 0
        %v2238 = vsel %vm2206, 1, 0
        %v2239 = vsel %vm2207, 1, 0
        %vm2240 = vcmp.eq.s32.totalorder %v2208, 1
        %vm2241 = vcmp.eq.s32.totalorder %v2209, 1
        %vm2242 = vcmp.eq.s32.totalorder %v2210, 1
        %vm2243 = vcmp.eq.s32.totalorder %v2211, 1
        %vm2244 = vcmp.eq.s32.totalorder %v2212, 1
        %vm2245 = vcmp.eq.s32.totalorder %v2213, 1
        %vm2246 = vcmp.eq.s32.totalorder %v2214, 1
        %vm2247 = vcmp.eq.s32.totalorder %v2215, 1
        %vm2248 = vcmp.eq.s32.totalorder %v2216, 1
        %vm2249 = vcmp.eq.s32.totalorder %v2217, 1
        %vm2250 = vcmp.eq.s32.totalorder %v2218, 1
        %vm2251 = vcmp.eq.s32.totalorder %v2219, 1
        %vm2252 = vcmp.eq.s32.totalorder %v2220, 1
        %vm2253 = vcmp.eq.s32.totalorder %v2221, 1
        %vm2254 = vcmp.eq.s32.totalorder %v2222, 1
        %vm2255 = vcmp.eq.s32.totalorder %v2223, 1
        %vm2256 = vcmp.eq.s32.totalorder %v2224, 1
        %vm2257 = vcmp.eq.s32.totalorder %v2225, 1
        %vm2258 = vcmp.eq.s32.totalorder %v2226, 1
        %vm2259 = vcmp.eq.s32.totalorder %v2227, 1
        %vm2260 = vcmp.eq.s32.totalorder %v2228, 1
        %vm2261 = vcmp.eq.s32.totalorder %v2229, 1
        %vm2262 = vcmp.eq.s32.totalorder %v2230, 1
        %vm2263 = vcmp.eq.s32.totalorder %v2231, 1
        %vm2264 = vcmp.eq.s32.totalorder %v2232, 1
        %vm2265 = vcmp.eq.s32.totalorder %v2233, 1
        %vm2266 = vcmp.eq.s32.totalorder %v2234, 1
        %vm2267 = vcmp.eq.s32.totalorder %v2235, 1
        %vm2268 = vcmp.eq.s32.totalorder %v2236, 1
        %vm2269 = vcmp.eq.s32.totalorder %v2237, 1
        %vm2270 = vcmp.eq.s32.totalorder %v2238, 1
        %vm2271 = vcmp.eq.s32.totalorder %v2239, 1
        %v2272 = vsel %vm2240, %v1564, 0.0
        %v2273 = vsel %vm2241, %v1563, 0.0
        %v2274 = vsel %vm2242, %v1562, 0.0
        %v2275 = vsel %vm2243, %v1561, 0.0
        %v2276 = vsel %vm2244, %v1560, 0.0
        %v2277 = vsel %vm2245, %v1559, 0.0
        %v2278 = vsel %vm2246, %v1558, 0.0
        %v2279 = vsel %vm2247, %v1557, 0.0
        %v2280 = vsel %vm2248, %v1556, 0.0
        %v2281 = vsel %vm2249, %v1555, 0.0
        %v2282 = vsel %vm2250, %v1554, 0.0
        %v2283 = vsel %vm2251, %v1553, 0.0
        %v2284 = vsel %vm2252, %v1552, 0.0
        %v2285 = vsel %vm2253, %v1551, 0.0
        %v2286 = vsel %vm2254, %v1550, 0.0
        %v2287 = vsel %vm2255, %v1549, 0.0
        %v2288 = vsel %vm2256, %v1548, 0.0
        %v2289 = vsel %vm2257, %v1547, 0.0
        %v2290 = vsel %vm2258, %v1546, 0.0
        %v2291 = vsel %vm2259, %v1545, 0.0
        %v2292 = vsel %vm2260, %v1544, 0.0
        %v2293 = vsel %vm2261, %v1543, 0.0
        %v2294 = vsel %vm2262, %v1542, 0.0
        %v2295 = vsel %vm2263, %v1541, 0.0
        %v2296 = vsel %vm2264, %v1540, 0.0
        %v2297 = vsel %vm2265, %v1539, 0.0
        %v2298 = vsel %vm2266, %v1538, 0.0
        %v2299 = vsel %vm2267, %v1537, 0.0
        %v2300 = vsel %vm2268, %v1536, 0.0
        %v2301 = vsel %vm2269, %v1567, 0.0
        %v2302 = vsel %vm2270, %v1566, 0.0
        %v2303 = vsel %vm2271, %v1565, 0.0
        %v2304 = vpack.c.bf16 %v1376, %v1375
        %v2305 = vpack.c.bf16 %v1472, %v1471
        %v2306 = vpack.c.bf16 %v1697, %v1696
        %v2307 = vpack.c.bf16 %v1793, %v1792
        %v2308 = vpack.c.bf16 %v702, %v701
        %v2309 = vpack.c.bf16 %v1889, %v1888
        %v2310 = vpack.c.bf16 %v2049, %v2048
        %v2311 = vpack.c.bf16 %v2145, %v2144
        %v2312 = vpack.c.bf16 %v2273, %v2272
        %v2313 = vpack.c.bf16 %v1378, %v1377
        %v2314 = vpack.c.bf16 %v1474, %v1473
        %v2315 = vpack.c.bf16 %v1699, %v1698
        %v2316 = vpack.c.bf16 %v1795, %v1794
        %v2317 = vpack.c.bf16 %v704, %v703
        %v2318 = vpack.c.bf16 %v1891, %v1890
        %v2319 = vpack.c.bf16 %v2051, %v2050
        %v2320 = vpack.c.bf16 %v2147, %v2146
        %v2321 = vpack.c.bf16 %v2275, %v2274
        %v2322 = vpack.c.bf16 %v1380, %v1379
        %v2323 = vpack.c.bf16 %v1476, %v1475
        %v2324 = vpack.c.bf16 %v1701, %v1700
        %v2325 = vpack.c.bf16 %v1797, %v1796
        %v2326 = vpack.c.bf16 %v706, %v705
        %v2327 = vpack.c.bf16 %v1893, %v1892
        %v2328 = vpack.c.bf16 %v2053, %v2052
        %v2329 = vpack.c.bf16 %v2149, %v2148
        %v2330 = vpack.c.bf16 %v2277, %v2276
        %v2331 = vpack.c.bf16 %v1382, %v1381
        %v2332 = vpack.c.bf16 %v1478, %v1477
        %v2333 = vpack.c.bf16 %v1703, %v1702
        %v2334 = vpack.c.bf16 %v1799, %v1798
        %v2335 = vpack.c.bf16 %v708, %v707
        %v2336 = vpack.c.bf16 %v1895, %v1894
        %v2337 = vpack.c.bf16 %v2055, %v2054
        %v2338 = vpack.c.bf16 %v2151, %v2150
        %v2339 = vpack.c.bf16 %v2279, %v2278
        %v2340 = vpack.c.bf16 %v1384, %v1383
        %v2341 = vpack.c.bf16 %v1480, %v1479
        %v2342 = vpack.c.bf16 %v1705, %v1704
        %v2343 = vpack.c.bf16 %v1801, %v1800
        %v2344 = vpack.c.bf16 %v710, %v709
        %v2345 = vpack.c.bf16 %v1897, %v1896
        %v2346 = vpack.c.bf16 %v2057, %v2056
        %v2347 = vpack.c.bf16 %v2153, %v2152
        %v2348 = vpack.c.bf16 %v2281, %v2280
        %v2349 = vpack.c.bf16 %v1386, %v1385
        %v2350 = vpack.c.bf16 %v1482, %v1481
        %v2351 = vpack.c.bf16 %v1707, %v1706
        %v2352 = vpack.c.bf16 %v1803, %v1802
        %v2353 = vpack.c.bf16 %v712, %v711
        %v2354 = vpack.c.bf16 %v1899, %v1898
        %v2355 = vpack.c.bf16 %v2059, %v2058
        %v2356 = vpack.c.bf16 %v2155, %v2154
        %v2357 = vpack.c.bf16 %v2283, %v2282
        %v2358 = vpack.c.bf16 %v1388, %v1387
        %v2359 = vpack.c.bf16 %v1484, %v1483
        %v2360 = vpack.c.bf16 %v1709, %v1708
        %v2361 = vpack.c.bf16 %v1805, %v1804
        %v2362 = vpack.c.bf16 %v714, %v713
        %v2363 = vpack.c.bf16 %v1901, %v1900
        %v2364 = vpack.c.bf16 %v2061, %v2060
        %v2365 = vpack.c.bf16 %v2157, %v2156
        %v2366 = vpack.c.bf16 %v2285, %v2284
        %v2367 = vpack.c.bf16 %v1390, %v1389
        %v2368 = vpack.c.bf16 %v1486, %v1485
        %v2369 = vpack.c.bf16 %v1711, %v1710
        %v2370 = vpack.c.bf16 %v1807, %v1806
        %v2371 = vpack.c.bf16 %v716, %v715
        %v2372 = vpack.c.bf16 %v1903, %v1902
        %v2373 = vpack.c.bf16 %v2063, %v2062
        %v2374 = vpack.c.bf16 %v2159, %v2158
        %v2375 = vpack.c.bf16 %v2287, %v2286
        %v2376 = vpack.c.bf16 %v1392, %v1391
        %v2377 = vpack.c.bf16 %v1488, %v1487
        %v2378 = vpack.c.bf16 %v1713, %v1712
        %v2379 = vpack.c.bf16 %v1809, %v1808
        %v2380 = vpack.c.bf16 %v718, %v717
        %v2381 = vpack.c.bf16 %v1905, %v1904
        %v2382 = vpack.c.bf16 %v2065, %v2064
        %v2383 = vpack.c.bf16 %v2161, %v2160
        %v2384 = vpack.c.bf16 %v2289, %v2288
        %v2385 = vpack.c.bf16 %v1394, %v1393
        %v2386 = vpack.c.bf16 %v1490, %v1489
        %v2387 = vpack.c.bf16 %v1715, %v1714
        %v2388 = vpack.c.bf16 %v1811, %v1810
        %v2389 = vpack.c.bf16 %v720, %v719
        %v2390 = vpack.c.bf16 %v1907, %v1906
        %v2391 = vpack.c.bf16 %v2067, %v2066
        %v2392 = vpack.c.bf16 %v2163, %v2162
        %v2393 = vpack.c.bf16 %v2291, %v2290
        %v2394 = vpack.c.bf16 %v1396, %v1395
        %v2395 = vpack.c.bf16 %v1492, %v1491
        %v2396 = vpack.c.bf16 %v1717, %v1716
        %v2397 = vpack.c.bf16 %v1813, %v1812
        %v2398 = vpack.c.bf16 %v722, %v721
        %v2399 = vpack.c.bf16 %v1909, %v1908
        %v2400 = vpack.c.bf16 %v2069, %v2068
        %v2401 = vpack.c.bf16 %v2165, %v2164
        %v2402 = vpack.c.bf16 %v2293, %v2292
        %v2403 = vpack.c.bf16 %v1398, %v1397
        %v2404 = vpack.c.bf16 %v1494, %v1493
        %v2405 = vpack.c.bf16 %v1719, %v1718
        %v2406 = vpack.c.bf16 %v1815, %v1814
        %v2407 = vpack.c.bf16 %v724, %v723
        %v2408 = vpack.c.bf16 %v1911, %v1910
        %v2409 = vpack.c.bf16 %v2071, %v2070
        %v2410 = vpack.c.bf16 %v2167, %v2166
        %v2411 = vpack.c.bf16 %v2295, %v2294
        %v2412 = vpack.c.bf16 %v1400, %v1399
        %v2413 = vpack.c.bf16 %v1496, %v1495
        %v2414 = vpack.c.bf16 %v1721, %v1720
        %v2415 = vpack.c.bf16 %v1817, %v1816
        %v2416 = vpack.c.bf16 %v726, %v725
        %v2417 = vpack.c.bf16 %v1913, %v1912
        %v2418 = vpack.c.bf16 %v2073, %v2072
        %v2419 = vpack.c.bf16 %v2169, %v2168
        %v2420 = vpack.c.bf16 %v2297, %v2296
        %v2421 = vpack.c.bf16 %v1402, %v1401
        %v2422 = vpack.c.bf16 %v1498, %v1497
        %v2423 = vpack.c.bf16 %v1723, %v1722
        %v2424 = vpack.c.bf16 %v1819, %v1818
        %v2425 = vpack.c.bf16 %v728, %v727
        %v2426 = vpack.c.bf16 %v1915, %v1914
        %v2427 = vpack.c.bf16 %v2075, %v2074
        %v2428 = vpack.c.bf16 %v2171, %v2170
        %v2429 = vpack.c.bf16 %v2299, %v2298
        %v2430 = vpack.c.bf16 %v1404, %v1403
        %v2431 = vpack.c.bf16 %v1500, %v1499
        %v2432 = vpack.c.bf16 %v1725, %v1724
        %v2433 = vpack.c.bf16 %v1821, %v1820
        %v2434 = vpack.c.bf16 %v730, %v729
        %v2435 = vpack.c.bf16 %v1917, %v1916
        %v2436 = vpack.c.bf16 %v2077, %v2076
        %v2437 = vpack.c.bf16 %v2173, %v2172
        %v2438 = vpack.c.bf16 %v2301, %v2300
        %v2439 = vpack.c.bf16 %v1406, %v1405
        %v2440 = vpack.c.bf16 %v1502, %v1501
        %v2441 = vpack.c.bf16 %v1727, %v1726
        %v2442 = vpack.c.bf16 %v1823, %v1822
        %v2443 = vpack.c.bf16 %v732, %v731
        %v2444 = vpack.c.bf16 %v1919, %v1918
        %v2445 = vpack.c.bf16 %v2079, %v2078
        %v2446 = vpack.c.bf16 %v2175, %v2174
        %v2447 = vpack.c.bf16 %v2303, %v2302
        %v2448 = vld [vmem:[#allocation2] sm:$0xf]
        %v2449 = vld [vmem:[#allocation2 + $0x4] sm:$0xf]
        %v2450 = vld [vmem:[#allocation2 + $0x8] sm:$0xf]
        %v2451 = vld [vmem:[#allocation2 + $0xc] sm:$0xf]
        %v2452 = vld [vmem:[#allocation2 + $0x10] sm:$0xf]
        %v2453 = vld [vmem:[#allocation2 + $0x14] sm:$0xf]
        %v2454 = vld [vmem:[#allocation2 + $0x18] sm:$0xf]
        %v2455 = vld [vmem:[#allocation2 + $0x1c] sm:$0xf]
        %v2456 = vld [vmem:[#allocation2 + $0x20] sm:$0xf]
        %v2457 = vld [vmem:[#allocation2 + $0x24] sm:$0xf]
        %v2458 = vld [vmem:[#allocation2 + $0x28] sm:$0xf]
        %v2459 = vld [vmem:[#allocation2 + $0x2c] sm:$0xf]
        %v2460 = vld [vmem:[#allocation2 + $0x30] sm:$0xf]
        %v2461 = vld [vmem:[#allocation2 + $0x34] sm:$0xf]
        %v2462 = vld [vmem:[#allocation2 + $0x38] sm:$0xf]
        %v2463 = vld [vmem:[#allocation2 + $0x3c] sm:$0xf]
        %v2464 = vld [vmem:[#allocation2 + $0x40] sm:$0xf]
        %v2465 = vld [vmem:[#allocation2 + $0x44] sm:$0xf]
        %v2466 = vld [vmem:[#allocation2 + $0x48] sm:$0xf]
        %v2467 = vld [vmem:[#allocation2 + $0x4c] sm:$0xf]
        %v2468 = vld [vmem:[#allocation2 + $0x50] sm:$0xf]
        %v2469 = vld [vmem:[#allocation2 + $0x54] sm:$0xf]
        %v2470 = vld [vmem:[#allocation2 + $0x58] sm:$0xf]
        %v2471 = vld [vmem:[#allocation2 + $0x5c] sm:$0xf]
        %v2472 = vld [vmem:[#allocation2 + $0x60] sm:$0xf]
        %v2473 = vld [vmem:[#allocation2 + $0x64] sm:$0xf]
        %v2474 = vld [vmem:[#allocation2 + $0x68] sm:$0xf]
        %v2475 = vld [vmem:[#allocation2 + $0x6c] sm:$0xf]
        %v2476 = vld [vmem:[#allocation2 + $0x70] sm:$0xf]
        %v2477 = vld [vmem:[#allocation2 + $0x74] sm:$0xf]
        %v2478 = vld [vmem:[#allocation2 + $0x78] sm:$0xf]
        %v2479 = vld [vmem:[#allocation2 + $0x7c] sm:$0xf]
        %v2480 = vld [vmem:[#allocation2 + $0x80] sm:$0xf]
        %v2481 = vld [vmem:[#allocation2 + $0x84] sm:$0xf]
        %v2482 = vld [vmem:[#allocation2 + $0x88] sm:$0xf]
        %v2483 = vld [vmem:[#allocation2 + $0x8c] sm:$0xf]
        %v2484 = vld [vmem:[#allocation2 + $0x90] sm:$0xf]
        %v2485 = vld [vmem:[#allocation2 + $0x94] sm:$0xf]
        %v2486 = vld [vmem:[#allocation2 + $0x98] sm:$0xf]
        %v2487 = vld [vmem:[#allocation2 + $0x9c] sm:$0xf]
        %v2488 = vld [vmem:[#allocation2 + $0xa0] sm:$0xf]
        %v2489 = vld [vmem:[#allocation2 + $0xa4] sm:$0xf]
        %v2490 = vld [vmem:[#allocation2 + $0xa8] sm:$0xf]
        %v2491 = vld [vmem:[#allocation2 + $0xac] sm:$0xf]
        %v2492 = vld [vmem:[#allocation2 + $0xb0] sm:$0xf]
        %v2493 = vld [vmem:[#allocation2 + $0xb4] sm:$0xf]
        %v2494 = vld [vmem:[#allocation2 + $0xb8] sm:$0xf]
        %v2495 = vld [vmem:[#allocation2 + $0xbc] sm:$0xf]
        %v2496 = vld [vmem:[#allocation2 + $0xc0] sm:$0xf]
        %v2497 = vld [vmem:[#allocation2 + $0xc4] sm:$0xf]
        %v2498 = vld [vmem:[#allocation2 + $0xc8] sm:$0xf]
        %v2499 = vld [vmem:[#allocation2 + $0xcc] sm:$0xf]
        %v2500 = vld [vmem:[#allocation2 + $0xd0] sm:$0xf]
        %v2501 = vld [vmem:[#allocation2 + $0xd4] sm:$0xf]
        %v2502 = vld [vmem:[#allocation2 + $0xd8] sm:$0xf]
        %v2503 = vld [vmem:[#allocation2 + $0xdc] sm:$0xf]
        %v2504 = vld [vmem:[#allocation2 + $0xe0] sm:$0xf]
        %v2505 = vld [vmem:[#allocation2 + $0xe4] sm:$0xf]
        %v2506 = vld [vmem:[#allocation2 + $0xe8] sm:$0xf]
        %v2507 = vld [vmem:[#allocation2 + $0xec] sm:$0xf]
        %v2508 = vld [vmem:[#allocation2 + $0xf0] sm:$0xf]
        %v2509 = vld [vmem:[#allocation2 + $0xf4] sm:$0xf]
        %v2510 = vld [vmem:[#allocation2 + $0xf8] sm:$0xf]
        %v2511 = vld [vmem:[#allocation2 + $0xfc] sm:$0xf]
        %v2512 = vld [vmem:[#allocation2 + $0x100] sm:$0xf]
        %v2513 = vld [vmem:[#allocation2 + $0x104] sm:$0xf]
        %v2514 = vld [vmem:[#allocation2 + $0x108] sm:$0xf]
        %v2515 = vld [vmem:[#allocation2 + $0x10c] sm:$0xf]
        %v2516 = vld [vmem:[#allocation2 + $0x110] sm:$0xf]
        %v2517 = vld [vmem:[#allocation2 + $0x114] sm:$0xf]
        %v2518 = vld [vmem:[#allocation2 + $0x118] sm:$0xf]
        %v2519 = vld [vmem:[#allocation2 + $0x11c] sm:$0xf]
        %v2520 = vld [vmem:[#allocation2 + $0x120] sm:$0xf]
        %v2521 = vld [vmem:[#allocation2 + $0x124] sm:$0xf]
        %v2522 = vld [vmem:[#allocation2 + $0x128] sm:$0xf]
        %v2523 = vld [vmem:[#allocation2 + $0x12c] sm:$0xf]
        %v2524 = vld [vmem:[#allocation2 + $0x130] sm:$0xf]
        %v2525 = vld [vmem:[#allocation2 + $0x134] sm:$0xf]
        %v2526 = vld [vmem:[#allocation2 + $0x138] sm:$0xf]
        %v2527 = vld [vmem:[#allocation2 + $0x13c] sm:$0xf]
        %v2528 = vld [vmem:[#allocation2 + $0x140] sm:$0xf]
        %v2529 = vld [vmem:[#allocation2 + $0x144] sm:$0xf]
        %v2530 = vld [vmem:[#allocation2 + $0x148] sm:$0xf]
        %v2531 = vld [vmem:[#allocation2 + $0x14c] sm:$0xf]
        %v2532 = vld [vmem:[#allocation2 + $0x150] sm:$0xf]
        %v2533 = vld [vmem:[#allocation2 + $0x154] sm:$0xf]
        %v2534 = vld [vmem:[#allocation2 + $0x158] sm:$0xf]
        %v2535 = vld [vmem:[#allocation2 + $0x15c] sm:$0xf]
        %v2536 = vld [vmem:[#allocation2 + $0x160] sm:$0xf]
        %v2537 = vld [vmem:[#allocation2 + $0x164] sm:$0xf]
        %v2538 = vld [vmem:[#allocation2 + $0x168] sm:$0xf]
        %v2539 = vld [vmem:[#allocation2 + $0x16c] sm:$0xf]
        %v2540 = vld [vmem:[#allocation2 + $0x170] sm:$0xf]
        %v2541 = vld [vmem:[#allocation2 + $0x174] sm:$0xf]
        %v2542 = vld [vmem:[#allocation2 + $0x178] sm:$0xf]
        %v2543 = vld [vmem:[#allocation2 + $0x17c] sm:$0xf]
        %v2544 = vld [vmem:[#allocation2 + $0x180] sm:$0xf]
        %v2545 = vld [vmem:[#allocation2 + $0x184] sm:$0xf]
        %v2546 = vld [vmem:[#allocation2 + $0x188] sm:$0xf]
        %v2547 = vld [vmem:[#allocation2 + $0x18c] sm:$0xf]
        %v2548 = vld [vmem:[#allocation2 + $0x190] sm:$0xf]
        %v2549 = vld [vmem:[#allocation2 + $0x194] sm:$0xf]
        %v2550 = vld [vmem:[#allocation2 + $0x198] sm:$0xf]
        %v2551 = vld [vmem:[#allocation2 + $0x19c] sm:$0xf]
        %v2552 = vld [vmem:[#allocation2 + $0x1a0] sm:$0xf]
        %v2553 = vld [vmem:[#allocation2 + $0x1a4] sm:$0xf]
        %v2554 = vld [vmem:[#allocation2 + $0x1a8] sm:$0xf]
        %v2555 = vld [vmem:[#allocation2 + $0x1ac] sm:$0xf]
        %v2556 = vld [vmem:[#allocation2 + $0x1b0] sm:$0xf]
        %v2557 = vld [vmem:[#allocation2 + $0x1b4] sm:$0xf]
        %v2558 = vld [vmem:[#allocation2 + $0x1b8] sm:$0xf]
        %v2559 = vld [vmem:[#allocation2 + $0x1bc] sm:$0xf]
        %v2560 = vld [vmem:[#allocation2 + $0x1c0] sm:$0xf]
        %v2561 = vld [vmem:[#allocation2 + $0x1c4] sm:$0xf]
        %v2562 = vld [vmem:[#allocation2 + $0x1c8] sm:$0xf]
        %v2563 = vld [vmem:[#allocation2 + $0x1cc] sm:$0xf]
        %v2564 = vld [vmem:[#allocation2 + $0x1d0] sm:$0xf]
        %v2565 = vld [vmem:[#allocation2 + $0x1d4] sm:$0xf]
        %v2566 = vld [vmem:[#allocation2 + $0x1d8] sm:$0xf]
        %v2567 = vld [vmem:[#allocation2 + $0x1dc] sm:$0xf]
        %v2568 = vld [vmem:[#allocation2 + $0x1e0] sm:$0xf]
        %v2569 = vld [vmem:[#allocation2 + $0x1e4] sm:$0xf]
        %v2570 = vld [vmem:[#allocation2 + $0x1e8] sm:$0xf]
        %v2571 = vld [vmem:[#allocation2 + $0x1ec] sm:$0xf]
        %v2572 = vld [vmem:[#allocation2 + $0x1f0] sm:$0xf]
        %v2573 = vld [vmem:[#allocation2 + $0x1f4] sm:$0xf]
        %v2574 = vld [vmem:[#allocation2 + $0x1f8] sm:$0xf]
        %v2575 = vld [vmem:[#allocation2 + $0x1fc] sm:$0xf]
        %v2576 = vld [vmem:[#allocation2 + $0x200] sm:$0xf]
        %v2577 = vld [vmem:[#allocation2 + $0x204] sm:$0xf]
        %v2578 = vld [vmem:[#allocation2 + $0x208] sm:$0xf]
        %v2579 = vld [vmem:[#allocation2 + $0x20c] sm:$0xf]
        %v2580 = vld [vmem:[#allocation2 + $0x210] sm:$0xf]
        %v2581 = vld [vmem:[#allocation2 + $0x214] sm:$0xf]
        %v2582 = vld [vmem:[#allocation2 + $0x218] sm:$0xf]
        %v2583 = vld [vmem:[#allocation2 + $0x21c] sm:$0xf]
        %v2584 = vld [vmem:[#allocation2 + $0x220] sm:$0xf]
        %v2585 = vld [vmem:[#allocation2 + $0x224] sm:$0xf]
        %v2586 = vld [vmem:[#allocation2 + $0x228] sm:$0xf]
        %v2587 = vld [vmem:[#allocation2 + $0x22c] sm:$0xf]
        %v2588 = vld [vmem:[#allocation2 + $0x230] sm:$0xf]
        %v2589 = vld [vmem:[#allocation2 + $0x234] sm:$0xf]
        %v2590 = vld [vmem:[#allocation2 + $0x238] sm:$0xf]
        %v2591 = vld [vmem:[#allocation2 + $0x23c] sm:$0xf]
        %v2592 = vld [vmem:[%s4] sm:$0x1]
        %v2594 = vlaneseq
        %v2595 = vshrl.u32 %v2594, 7
        %v2596 = vsub.s32 0, %v2595
        %v2597 = vrot.slane %v2592, %v2596
        %v2743 = vunpack.c.l.b16 %v2448
        %v2744 = vunpack.c.l.b16 %v2449
        %v2745 = vunpack.c.l.b16 %v2450
        %v2746 = vunpack.c.l.b16 %v2451
        %v2747 = vunpack.c.l.b16 %v2452
        %v2748 = vunpack.c.l.b16 %v2453
        %v2749 = vunpack.c.l.b16 %v2454
        %v2750 = vunpack.c.l.b16 %v2455
        %v2751 = vunpack.c.l.b16 %v2456
        %v2752 = vunpack.c.l.b16 %v2457
        %v2753 = vunpack.c.l.b16 %v2458
        %v2754 = vunpack.c.l.b16 %v2459
        %v2755 = vunpack.c.l.b16 %v2460
        %v2756 = vunpack.c.l.b16 %v2461
        %v2757 = vunpack.c.l.b16 %v2462
        %v2758 = vunpack.c.l.b16 %v2463
        %v2759 = vunpack.c.l.b16 %v2464
        %v2760 = vunpack.c.l.b16 %v2465
        %v2761 = vunpack.c.l.b16 %v2466
        %v2762 = vunpack.c.l.b16 %v2467
        %v2763 = vunpack.c.l.b16 %v2468
        %v2764 = vunpack.c.l.b16 %v2469
        %v2765 = vunpack.c.l.b16 %v2470
        %v2766 = vunpack.c.l.b16 %v2471
        %v2767 = vunpack.c.l.b16 %v2472
        %v2768 = vunpack.c.l.b16 %v2473
        %v2769 = vunpack.c.l.b16 %v2474
        %v2770 = vunpack.c.l.b16 %v2475
        %v2771 = vunpack.c.l.b16 %v2476
        %v2772 = vunpack.c.l.b16 %v2477
        %v2773 = vunpack.c.l.b16 %v2478
        %v2774 = vunpack.c.l.b16 %v2479
        %v2775 = vunpack.c.l.b16 %v2480
        %v2776 = vunpack.c.l.b16 %v2481
        %v2777 = vunpack.c.l.b16 %v2482
        %v2778 = vunpack.c.l.b16 %v2483
        %v2779 = vunpack.c.l.b16 %v2484
        %v2780 = vunpack.c.l.b16 %v2485
        %v2781 = vunpack.c.l.b16 %v2486
        %v2782 = vunpack.c.l.b16 %v2487
        %v2783 = vunpack.c.l.b16 %v2488
        %v2784 = vunpack.c.l.b16 %v2489
        %v2785 = vunpack.c.l.b16 %v2490
        %v2786 = vunpack.c.l.b16 %v2491
        %v2787 = vunpack.c.l.b16 %v2492
        %v2788 = vunpack.c.l.b16 %v2493
        %v2789 = vunpack.c.l.b16 %v2494
        %v2790 = vunpack.c.l.b16 %v2495
        %v2791 = vunpack.c.l.b16 %v2496
        %v2792 = vunpack.c.l.b16 %v2497
        %v2793 = vunpack.c.l.b16 %v2498
        %v2794 = vunpack.c.l.b16 %v2499
        %v2795 = vunpack.c.l.b16 %v2500
        %v2796 = vunpack.c.l.b16 %v2501
        %v2797 = vunpack.c.l.b16 %v2502
        %v2798 = vunpack.c.l.b16 %v2503
        %v2799 = vunpack.c.l.b16 %v2504
        %v2800 = vunpack.c.l.b16 %v2505
        %v2801 = vunpack.c.l.b16 %v2506
        %v2802 = vunpack.c.l.b16 %v2507
        %v2803 = vunpack.c.l.b16 %v2508
        %v2804 = vunpack.c.l.b16 %v2509
        %v2805 = vunpack.c.l.b16 %v2510
        %v2806 = vunpack.c.l.b16 %v2511
        %v2807 = vunpack.c.l.b16 %v2512
        %v2808 = vunpack.c.l.b16 %v2513
        %v2809 = vunpack.c.l.b16 %v2514
        %v2810 = vunpack.c.l.b16 %v2515
        %v2811 = vunpack.c.l.b16 %v2516
        %v2812 = vunpack.c.l.b16 %v2517
        %v2813 = vunpack.c.l.b16 %v2518
        %v2814 = vunpack.c.l.b16 %v2519
        %v2815 = vunpack.c.l.b16 %v2520
        %v2816 = vunpack.c.l.b16 %v2521
        %v2817 = vunpack.c.l.b16 %v2522
        %v2818 = vunpack.c.l.b16 %v2523
        %v2819 = vunpack.c.l.b16 %v2524
        %v2820 = vunpack.c.l.b16 %v2525
        %v2821 = vunpack.c.l.b16 %v2526
        %v2822 = vunpack.c.l.b16 %v2527
        %v2823 = vunpack.c.l.b16 %v2528
        %v2824 = vunpack.c.l.b16 %v2529
        %v2825 = vunpack.c.l.b16 %v2530
        %v2826 = vunpack.c.l.b16 %v2531
        %v2827 = vunpack.c.l.b16 %v2532
        %v2828 = vunpack.c.l.b16 %v2533
        %v2829 = vunpack.c.l.b16 %v2534
        %v2830 = vunpack.c.l.b16 %v2535
        %v2831 = vunpack.c.l.b16 %v2536
        %v2832 = vunpack.c.l.b16 %v2537
        %v2833 = vunpack.c.l.b16 %v2538
        %v2834 = vunpack.c.l.b16 %v2539
        %v2835 = vunpack.c.l.b16 %v2540
        %v2836 = vunpack.c.l.b16 %v2541
        %v2837 = vunpack.c.l.b16 %v2542
        %v2838 = vunpack.c.l.b16 %v2543
        %v2839 = vunpack.c.l.b16 %v2544
        %v2840 = vunpack.c.l.b16 %v2545
        %v2841 = vunpack.c.l.b16 %v2546
        %v2842 = vunpack.c.l.b16 %v2547
        %v2843 = vunpack.c.l.b16 %v2548
        %v2844 = vunpack.c.l.b16 %v2549
        %v2845 = vunpack.c.l.b16 %v2550
        %v2846 = vunpack.c.l.b16 %v2551
        %v2847 = vunpack.c.l.b16 %v2552
        %v2848 = vunpack.c.l.b16 %v2553
        %v2849 = vunpack.c.l.b16 %v2554
        %v2850 = vunpack.c.l.b16 %v2555
        %v2851 = vunpack.c.l.b16 %v2556
        %v2852 = vunpack.c.l.b16 %v2557
        %v2853 = vunpack.c.l.b16 %v2558
        %v2854 = vunpack.c.l.b16 %v2559
        %v2855 = vunpack.c.l.b16 %v2560
        %v2856 = vunpack.c.l.b16 %v2561
        %v2857 = vunpack.c.l.b16 %v2562
        %v2858 = vunpack.c.l.b16 %v2563
        %v2859 = vunpack.c.l.b16 %v2564
        %v2860 = vunpack.c.l.b16 %v2565
        %v2861 = vunpack.c.l.b16 %v2566
        %v2862 = vunpack.c.l.b16 %v2567
        %v2863 = vunpack.c.l.b16 %v2568
        %v2864 = vunpack.c.l.b16 %v2569
        %v2865 = vunpack.c.l.b16 %v2570
        %v2866 = vunpack.c.l.b16 %v2571
        %v2867 = vunpack.c.l.b16 %v2572
        %v2868 = vunpack.c.l.b16 %v2573
        %v2869 = vunpack.c.l.b16 %v2574
        %v2870 = vunpack.c.l.b16 %v2575
        %v2871 = vunpack.c.l.b16 %v2576
        %v2872 = vunpack.c.l.b16 %v2577
        %v2873 = vunpack.c.l.b16 %v2578
        %v2874 = vunpack.c.l.b16 %v2579
        %v2875 = vunpack.c.l.b16 %v2580
        %v2876 = vunpack.c.l.b16 %v2581
        %v2877 = vunpack.c.l.b16 %v2582
        %v2878 = vunpack.c.l.b16 %v2583
        %v2879 = vunpack.c.l.b16 %v2584
        %v2880 = vunpack.c.l.b16 %v2585
        %v2881 = vunpack.c.l.b16 %v2586
        %v2882 = vunpack.c.l.b16 %v2587
        %v2883 = vunpack.c.l.b16 %v2588
        %v2884 = vunpack.c.l.b16 %v2589
        %v2885 = vunpack.c.l.b16 %v2590
        %v2886 = vunpack.c.l.b16 %v2591
        %v2887 = vpack.c.b16 %v2744, %v2743
        %v2888 = vpack.c.b16 %v2746, %v2745
        %v2889 = vpack.c.b16 %v2748, %v2747
        %v2890 = vpack.c.b16 %v2750, %v2749
        %v2891 = vpack.c.b16 %v2752, %v2751
        %v2892 = vpack.c.b16 %v2754, %v2753
        %v2893 = vpack.c.b16 %v2756, %v2755
        %v2894 = vpack.c.b16 %v2758, %v2757
        %v2895 = vpack.c.b16 %v2760, %v2759
        %v2896 = vpack.c.b16 %v2762, %v2761
        %v2897 = vpack.c.b16 %v2764, %v2763
        %v2898 = vpack.c.b16 %v2766, %v2765
        %v2899 = vpack.c.b16 %v2768, %v2767
        %v2900 = vpack.c.b16 %v2770, %v2769
        %v2901 = vpack.c.b16 %v2772, %v2771
        %v2902 = vpack.c.b16 %v2774, %v2773
        %v2903 = vpack.c.b16 %v2776, %v2775
        %v2904 = vpack.c.b16 %v2778, %v2777
        %v2905 = vpack.c.b16 %v2780, %v2779
        %v2906 = vpack.c.b16 %v2782, %v2781
        %v2907 = vpack.c.b16 %v2784, %v2783
        %v2908 = vpack.c.b16 %v2786, %v2785
        %v2909 = vpack.c.b16 %v2788, %v2787
        %v2910 = vpack.c.b16 %v2790, %v2789
        %v2911 = vpack.c.b16 %v2792, %v2791
        %v2912 = vpack.c.b16 %v2794, %v2793
        %v2913 = vpack.c.b16 %v2796, %v2795
        %v2914 = vpack.c.b16 %v2798, %v2797
        %v2915 = vpack.c.b16 %v2800, %v2799
        %v2916 = vpack.c.b16 %v2802, %v2801
        %v2917 = vpack.c.b16 %v2804, %v2803
        %v2918 = vpack.c.b16 %v2806, %v2805
        %v2919 = vpack.c.b16 %v2808, %v2807
        %v2920 = vpack.c.b16 %v2810, %v2809
        %v2921 = vpack.c.b16 %v2812, %v2811
        %v2922 = vpack.c.b16 %v2814, %v2813
        %v2923 = vpack.c.b16 %v2816, %v2815
        %v2924 = vpack.c.b16 %v2818, %v2817
        %v2925 = vpack.c.b16 %v2820, %v2819
        %v2926 = vpack.c.b16 %v2822, %v2821
        %v2927 = vpack.c.b16 %v2824, %v2823
        %v2928 = vpack.c.b16 %v2826, %v2825
        %v2929 = vpack.c.b16 %v2828, %v2827
        %v2930 = vpack.c.b16 %v2830, %v2829
        %v2931 = vpack.c.b16 %v2832, %v2831
        %v2932 = vpack.c.b16 %v2834, %v2833
        %v2933 = vpack.c.b16 %v2836, %v2835
        %v2934 = vpack.c.b16 %v2838, %v2837
        %v2935 = vpack.c.b16 %v2840, %v2839
        %v2936 = vpack.c.b16 %v2842, %v2841
        %v2937 = vpack.c.b16 %v2844, %v2843
        %v2938 = vpack.c.b16 %v2846, %v2845
        %v2939 = vpack.c.b16 %v2848, %v2847
        %v2940 = vpack.c.b16 %v2850, %v2849
        %v2941 = vpack.c.b16 %v2852, %v2851
        %v2942 = vpack.c.b16 %v2854, %v2853
        %v2943 = vpack.c.b16 %v2856, %v2855
        %v2944 = vpack.c.b16 %v2858, %v2857
        %v2945 = vpack.c.b16 %v2860, %v2859
        %v2946 = vpack.c.b16 %v2862, %v2861
        %v2947 = vpack.c.b16 %v2864, %v2863
        %v2948 = vpack.c.b16 %v2866, %v2865
        %v2949 = vpack.c.b16 %v2868, %v2867
        %v2950 = vpack.c.b16 %v2870, %v2869
        %v2951 = vpack.c.b16 %v2872, %v2871
        %v2952 = vpack.c.b16 %v2874, %v2873
        %v2953 = vpack.c.b16 %v2876, %v2875
        %v2954 = vpack.c.b16 %v2878, %v2877
        %v2955 = vpack.c.b16 %v2880, %v2879
        %v2956 = vpack.c.b16 %v2882, %v2881
        %v2957 = vpack.c.b16 %v2884, %v2883
        %v2958 = vpack.c.b16 %v2886, %v2885
        %3031 = vmatprep.subr.bf16.mxu0 0
        %3032 = vmatpush1.bf16.msra.mxu0 %v2894
        %3033 = vmatprep.subr.bf16.mxu0 0
        %3034 = vmatpush1.bf16.msra.mxu0 %v2893
        %3035 = vmatprep.subr.bf16.mxu0 0
        %3036 = vmatpush1.bf16.msra.mxu0 %v2892
        %3037 = vmatprep.subr.bf16.mxu0 0
        %3038 = vmatpush1.bf16.msra.mxu0 %v2891
        %3039 = vmatprep.subr.bf16.mxu0 0
        %3040 = vmatpush1.bf16.msra.mxu0 %v2890
        %3041 = vmatprep.subr.bf16.mxu0 0
        %3042 = vmatpush1.bf16.msra.mxu0 %v2889
        %3043 = vmatprep.subr.bf16.mxu0 0
        %3044 = vmatpush1.bf16.msra.mxu0 %v2888
        %3045 = vmatprep.subr.bf16.mxu0 0
        %3046 = vmatpush1.bf16.msra.mxu0 %v2887
        %3047 = vmatprep.subr.bf16.mxu0 0
        %3048 = vmatpush2.bf16.msra.mxu0 %v2902
        %3049 = vmatprep.subr.bf16.mxu0 0
        %3050 = vmatpush2.bf16.msra.mxu0 %v2901
        %3051 = vmatprep.subr.bf16.mxu0 0
        %3052 = vmatpush2.bf16.msra.mxu0 %v2900
        %3053 = vmatprep.subr.bf16.mxu0 0
        %3054 = vmatpush2.bf16.msra.mxu0 %v2899
        %3055 = vmatprep.subr.bf16.mxu0 0
        %3056 = vmatpush2.bf16.msra.mxu0 %v2898
        %3057 = vmatprep.subr.bf16.mxu0 0
        %3058 = vmatpush2.bf16.msra.mxu0 %v2897
        %3059 = vmatprep.subr.bf16.mxu0 0
        %3060 = vmatpush2.bf16.msra.mxu0 %v2896
        %3061 = vmatprep.subr.bf16.mxu0 0
        %3062 = vmatpush2.bf16.msra.mxu0 %v2895
        %3063 = vmatprep.mubr.bf16.mxu0 %v2305
        %3064 = vmatmul.mubr.bf16.gmra.mxu0 %v2304
        %v3065 = vpop.f32.mrf.mxu0
        %v3066 = vadd.f32 %v2597, %v3065
        %v3067 = vpop.f32.mrf.mxu0
        %v3068 = vpop.f32.mrf.mxu0
        %v3069 = vadd.f32 %v2597, %v3068
        %v3070 = vpop.f32.mrf.mxu0
        %3071 = vmatprep.mubr.bf16.mxu0 %v2314
        %3072 = vmatmul.mubr.bf16.gmra.mxu0 %v2313
        %v3073 = vpop.f32.mrf.mxu0
        %v3074 = vadd.f32 %v2597, %v3073
        %v3075 = vpop.f32.mrf.mxu0
        %v3076 = vpop.f32.mrf.mxu0
        %v3077 = vadd.f32 %v2597, %v3076
        %v3078 = vpop.f32.mrf.mxu0
        %3079 = vmatprep.mubr.bf16.mxu0 %v2323
        %3080 = vmatmul.mubr.bf16.gmra.mxu0 %v2322
        %v3081 = vpop.f32.mrf.mxu0
        %v3082 = vadd.f32 %v2597, %v3081
        %v3083 = vpop.f32.mrf.mxu0
        %v3084 = vpop.f32.mrf.mxu0
        %v3085 = vadd.f32 %v2597, %v3084
        %v3086 = vpop.f32.mrf.mxu0
        %3087 = vmatprep.mubr.bf16.mxu0 %v2332
        %3088 = vmatmul.mubr.bf16.gmra.mxu0 %v2331
        %v3089 = vpop.f32.mrf.mxu0
        %v3090 = vadd.f32 %v2597, %v3089
        %v3091 = vpop.f32.mrf.mxu0
        %v3092 = vpop.f32.mrf.mxu0
        %v3093 = vadd.f32 %v2597, %v3092
        %v3094 = vpop.f32.mrf.mxu0
        %3095 = vmatprep.mubr.bf16.mxu0 %v2341
        %3096 = vmatmul.mubr.bf16.gmra.mxu0 %v2340
        %v3097 = vpop.f32.mrf.mxu0
        %v3098 = vadd.f32 %v2597, %v3097
        %v3099 = vpop.f32.mrf.mxu0
        %v3100 = vpop.f32.mrf.mxu0
        %v3101 = vadd.f32 %v2597, %v3100
        %v3102 = vpop.f32.mrf.mxu0
        %3103 = vmatprep.mubr.bf16.mxu0 %v2350
        %3104 = vmatmul.mubr.bf16.gmra.mxu0 %v2349
        %v3105 = vpop.f32.mrf.mxu0
        %v3106 = vadd.f32 %v2597, %v3105
        %v3107 = vpop.f32.mrf.mxu0
        %v3108 = vpop.f32.mrf.mxu0
        %v3109 = vadd.f32 %v2597, %v3108
        %v3110 = vpop.f32.mrf.mxu0
        %3111 = vmatprep.mubr.bf16.mxu0 %v2359
        %3112 = vmatmul.mubr.bf16.gmra.mxu0 %v2358
        %v3113 = vpop.f32.mrf.mxu0
        %v3114 = vadd.f32 %v2597, %v3113
        %v3115 = vpop.f32.mrf.mxu0
        %v3116 = vpop.f32.mrf.mxu0
        %v3117 = vadd.f32 %v2597, %v3116
        %v3118 = vpop.f32.mrf.mxu0
        %3119 = vmatprep.mubr.bf16.mxu0 %v2368
        %3120 = vmatmul.mubr.bf16.gmra.mxu0 %v2367
        %v3121 = vpop.f32.mrf.mxu0
        %v3122 = vadd.f32 %v2597, %v3121
        %v3123 = vpop.f32.mrf.mxu0
        %v3124 = vpop.f32.mrf.mxu0
        %v3125 = vadd.f32 %v2597, %v3124
        %v3126 = vpop.f32.mrf.mxu0
        %3127 = vmatprep.mubr.bf16.mxu0 %v2377
        %3128 = vmatmul.mubr.bf16.gmra.mxu0 %v2376
        %v3129 = vpop.f32.mrf.mxu0
        %v3130 = vadd.f32 %v2597, %v3129
        %v3131 = vpop.f32.mrf.mxu0
        %v3132 = vpop.f32.mrf.mxu0
        %v3133 = vadd.f32 %v2597, %v3132
        %v3134 = vpop.f32.mrf.mxu0
        %3135 = vmatprep.mubr.bf16.mxu0 %v2386
        %3136 = vmatmul.mubr.bf16.gmra.mxu0 %v2385
        %v3137 = vpop.f32.mrf.mxu0
        %v3138 = vadd.f32 %v2597, %v3137
        %v3139 = vpop.f32.mrf.mxu0
        %v3140 = vpop.f32.mrf.mxu0
        %v3141 = vadd.f32 %v2597, %v3140
        %v3142 = vpop.f32.mrf.mxu0
        %3143 = vmatprep.mubr.bf16.mxu0 %v2395
        %3144 = vmatmul.mubr.bf16.gmra.mxu0 %v2394
        %v3145 = vpop.f32.mrf.mxu0
        %v3146 = vadd.f32 %v2597, %v3145
        %v3147 = vpop.f32.mrf.mxu0
        %v3148 = vpop.f32.mrf.mxu0
        %v3149 = vadd.f32 %v2597, %v3148
        %v3150 = vpop.f32.mrf.mxu0
        %3151 = vmatprep.mubr.bf16.mxu0 %v2404
        %3152 = vmatmul.mubr.bf16.gmra.mxu0 %v2403
        %v3153 = vpop.f32.mrf.mxu0
        %v3154 = vadd.f32 %v2597, %v3153
        %v3155 = vpop.f32.mrf.mxu0
        %v3156 = vpop.f32.mrf.mxu0
        %v3157 = vadd.f32 %v2597, %v3156
        %v3158 = vpop.f32.mrf.mxu0
        %3159 = vmatprep.mubr.bf16.mxu0 %v2413
        %3160 = vmatmul.mubr.bf16.gmra.mxu0 %v2412
        %v3161 = vpop.f32.mrf.mxu0
        %v3162 = vadd.f32 %v2597, %v3161
        %v3163 = vpop.f32.mrf.mxu0
        %v3164 = vpop.f32.mrf.mxu0
        %v3165 = vadd.f32 %v2597, %v3164
        %v3166 = vpop.f32.mrf.mxu0
        %3167 = vmatprep.mubr.bf16.mxu0 %v2422
        %3168 = vmatmul.mubr.bf16.gmra.mxu0 %v2421
        %v3169 = vpop.f32.mrf.mxu0
        %v3170 = vadd.f32 %v2597, %v3169
        %v3171 = vpop.f32.mrf.mxu0
        %v3172 = vpop.f32.mrf.mxu0
        %v3173 = vadd.f32 %v2597, %v3172
        %v3174 = vpop.f32.mrf.mxu0
        %3175 = vmatprep.mubr.bf16.mxu0 %v2431
        %3176 = vmatmul.mubr.bf16.gmra.mxu0 %v2430
        %v3177 = vpop.f32.mrf.mxu0
        %v3178 = vadd.f32 %v2597, %v3177
        %v3179 = vpop.f32.mrf.mxu0
        %v3180 = vpop.f32.mrf.mxu0
        %v3181 = vadd.f32 %v2597, %v3180
        %v3182 = vpop.f32.mrf.mxu0
        %3183 = vmatprep.mubr.bf16.mxu0 %v2440
        %3184 = vmatmul.mubr.bf16.gmra.mxu0 %v2439
        %v3185 = vpop.f32.mrf.mxu0
        %v3186 = vadd.f32 %v2597, %v3185
        %v3187 = vpop.f32.mrf.mxu0
        %v3188 = vpop.f32.mrf.mxu0
        %v3189 = vadd.f32 %v2597, %v3188
        %v3190 = vpop.f32.mrf.mxu0
        %3191 = vdwg.mxu0
        %3192 = vmatprep.subr.bf16.mxu0 0
        %3193 = vmatpush1.bf16.msra.mxu0 %v2910
        %3194 = vmatprep.subr.bf16.mxu0 0
        %3195 = vmatpush1.bf16.msra.mxu0 %v2909
        %3196 = vmatprep.subr.bf16.mxu0 0
        %3197 = vmatpush1.bf16.msra.mxu0 %v2908
        %3198 = vmatprep.subr.bf16.mxu0 0
        %3199 = vmatpush1.bf16.msra.mxu0 %v2907
        %3200 = vmatprep.subr.bf16.mxu0 0
        %3201 = vmatpush1.bf16.msra.mxu0 %v2906
        %3202 = vmatprep.subr.bf16.mxu0 0
        %3203 = vmatpush1.bf16.msra.mxu0 %v2905
        %3204 = vmatprep.subr.bf16.mxu0 0
        %3205 = vmatpush1.bf16.msra.mxu0 %v2904
        %3206 = vmatprep.subr.bf16.mxu0 0
        %3207 = vmatpush1.bf16.msra.mxu0 %v2903
        %3208 = vmatprep.subr.bf16.mxu0 0
        %3209 = vmatpush2.bf16.msra.mxu0 %v2918
        %3210 = vmatprep.subr.bf16.mxu0 0
        %3211 = vmatpush2.bf16.msra.mxu0 %v2917
        %3212 = vmatprep.subr.bf16.mxu0 0
        %3213 = vmatpush2.bf16.msra.mxu0 %v2916
        %3214 = vmatprep.subr.bf16.mxu0 0
        %3215 = vmatpush2.bf16.msra.mxu0 %v2915
        %3216 = vmatprep.subr.bf16.mxu0 0
        %3217 = vmatpush2.bf16.msra.mxu0 %v2914
        %3218 = vmatprep.subr.bf16.mxu0 0
        %3219 = vmatpush2.bf16.msra.mxu0 %v2913
        %3220 = vmatprep.subr.bf16.mxu0 0
        %3221 = vmatpush2.bf16.msra.mxu0 %v2912
        %3222 = vmatprep.subr.bf16.mxu0 0
        %3223 = vmatpush2.bf16.msra.mxu0 %v2911
        %3224 = vmatprep.mubr.bf16.mxu0 %v2307
        %3225 = vmatmul.mubr.bf16.gmra.mxu0 %v2306
        %v3226 = vpop.f32.mrf.mxu0
        %v3227 = vadd.f32 %v3066, %v3226
        %v3228 = vpop.f32.mrf.mxu0
        %v3229 = vpop.f32.mrf.mxu0
        %v3230 = vadd.f32 %v3069, %v3229
        %v3231 = vpop.f32.mrf.mxu0
        %3232 = vmatprep.mubr.bf16.mxu0 %v2316
        %3233 = vmatmul.mubr.bf16.gmra.mxu0 %v2315
        %v3234 = vpop.f32.mrf.mxu0
        %v3235 = vadd.f32 %v3074, %v3234
        %v3236 = vpop.f32.mrf.mxu0
        %v3237 = vpop.f32.mrf.mxu0
        %v3238 = vadd.f32 %v3077, %v3237
        %v3239 = vpop.f32.mrf.mxu0
        %3240 = vmatprep.mubr.bf16.mxu0 %v2325
        %3241 = vmatmul.mubr.bf16.gmra.mxu0 %v2324
        %v3242 = vpop.f32.mrf.mxu0
        %v3243 = vadd.f32 %v3082, %v3242
        %v3244 = vpop.f32.mrf.mxu0
        %v3245 = vpop.f32.mrf.mxu0
        %v3246 = vadd.f32 %v3085, %v3245
        %v3247 = vpop.f32.mrf.mxu0
        %3248 = vmatprep.mubr.bf16.mxu0 %v2334
        %3249 = vmatmul.mubr.bf16.gmra.mxu0 %v2333
        %v3250 = vpop.f32.mrf.mxu0
        %v3251 = vadd.f32 %v3090, %v3250
        %v3252 = vpop.f32.mrf.mxu0
        %v3253 = vpop.f32.mrf.mxu0
        %v3254 = vadd.f32 %v3093, %v3253
        %v3255 = vpop.f32.mrf.mxu0
        %3256 = vmatprep.mubr.bf16.mxu0 %v2343
        %3257 = vmatmul.mubr.bf16.gmra.mxu0 %v2342
        %v3258 = vpop.f32.mrf.mxu0
        %v3259 = vadd.f32 %v3098, %v3258
        %v3260 = vpop.f32.mrf.mxu0
        %v3261 = vpop.f32.mrf.mxu0
        %v3262 = vadd.f32 %v3101, %v3261
        %v3263 = vpop.f32.mrf.mxu0
        %3264 = vmatprep.mubr.bf16.mxu0 %v2352
        %3265 = vmatmul.mubr.bf16.gmra.mxu0 %v2351
        %v3266 = vpop.f32.mrf.mxu0
        %v3267 = vadd.f32 %v3106, %v3266
        %v3268 = vpop.f32.mrf.mxu0
        %v3269 = vpop.f32.mrf.mxu0
        %v3270 = vadd.f32 %v3109, %v3269
        %v3271 = vpop.f32.mrf.mxu0
        %3272 = vmatprep.mubr.bf16.mxu0 %v2361
        %3273 = vmatmul.mubr.bf16.gmra.mxu0 %v2360
        %v3274 = vpop.f32.mrf.mxu0
        %v3275 = vadd.f32 %v3114, %v3274
        %v3276 = vpop.f32.mrf.mxu0
        %v3277 = vpop.f32.mrf.mxu0
        %v3278 = vadd.f32 %v3117, %v3277
        %v3279 = vpop.f32.mrf.mxu0
        %3280 = vmatprep.mubr.bf16.mxu0 %v2370
        %3281 = vmatmul.mubr.bf16.gmra.mxu0 %v2369
        %v3282 = vpop.f32.mrf.mxu0
        %v3283 = vadd.f32 %v3122, %v3282
        %v3284 = vpop.f32.mrf.mxu0
        %v3285 = vpop.f32.mrf.mxu0
        %v3286 = vadd.f32 %v3125, %v3285
        %v3287 = vpop.f32.mrf.mxu0
        %3288 = vmatprep.mubr.bf16.mxu0 %v2379
        %3289 = vmatmul.mubr.bf16.gmra.mxu0 %v2378
        %v3290 = vpop.f32.mrf.mxu0
        %v3291 = vadd.f32 %v3130, %v3290
        %v3292 = vpop.f32.mrf.mxu0
        %v3293 = vpop.f32.mrf.mxu0
        %v3294 = vadd.f32 %v3133, %v3293
        %v3295 = vpop.f32.mrf.mxu0
        %3296 = vmatprep.mubr.bf16.mxu0 %v2388
        %3297 = vmatmul.mubr.bf16.gmra.mxu0 %v2387
        %v3298 = vpop.f32.mrf.mxu0
        %v3299 = vadd.f32 %v3138, %v3298
        %v3300 = vpop.f32.mrf.mxu0
        %v3301 = vpop.f32.mrf.mxu0
        %v3302 = vadd.f32 %v3141, %v3301
        %v3303 = vpop.f32.mrf.mxu0
        %3304 = vmatprep.mubr.bf16.mxu0 %v2397
        %3305 = vmatmul.mubr.bf16.gmra.mxu0 %v2396
        %v3306 = vpop.f32.mrf.mxu0
        %v3307 = vadd.f32 %v3146, %v3306
        %v3308 = vpop.f32.mrf.mxu0
        %v3309 = vpop.f32.mrf.mxu0
        %v3310 = vadd.f32 %v3149, %v3309
        %v3311 = vpop.f32.mrf.mxu0
        %3312 = vmatprep.mubr.bf16.mxu0 %v2406
        %3313 = vmatmul.mubr.bf16.gmra.mxu0 %v2405
        %v3314 = vpop.f32.mrf.mxu0
        %v3315 = vadd.f32 %v3154, %v3314
        %v3316 = vpop.f32.mrf.mxu0
        %v3317 = vpop.f32.mrf.mxu0
        %v3318 = vadd.f32 %v3157, %v3317
        %v3319 = vpop.f32.mrf.mxu0
        %3320 = vmatprep.mubr.bf16.mxu0 %v2415
        %3321 = vmatmul.mubr.bf16.gmra.mxu0 %v2414
        %v3322 = vpop.f32.mrf.mxu0
        %v3323 = vadd.f32 %v3162, %v3322
        %v3324 = vpop.f32.mrf.mxu0
        %v3325 = vpop.f32.mrf.mxu0
        %v3326 = vadd.f32 %v3165, %v3325
        %v3327 = vpop.f32.mrf.mxu0
        %3328 = vmatprep.mubr.bf16.mxu0 %v2424
        %3329 = vmatmul.mubr.bf16.gmra.mxu0 %v2423
        %v3330 = vpop.f32.mrf.mxu0
        %v3331 = vadd.f32 %v3170, %v3330
        %v3332 = vpop.f32.mrf.mxu0
        %v3333 = vpop.f32.mrf.mxu0
        %v3334 = vadd.f32 %v3173, %v3333
        %v3335 = vpop.f32.mrf.mxu0
        %3336 = vmatprep.mubr.bf16.mxu0 %v2433
        %3337 = vmatmul.mubr.bf16.gmra.mxu0 %v2432
        %v3338 = vpop.f32.mrf.mxu0
        %v3339 = vadd.f32 %v3178, %v3338
        %v3340 = vpop.f32.mrf.mxu0
        %v3341 = vpop.f32.mrf.mxu0
        %v3342 = vadd.f32 %v3181, %v3341
        %v3343 = vpop.f32.mrf.mxu0
        %3344 = vmatprep.mubr.bf16.mxu0 %v2442
        %3345 = vmatmul.mubr.bf16.gmra.mxu0 %v2441
        %v3346 = vpop.f32.mrf.mxu0
        %v3347 = vadd.f32 %v3186, %v3346
        %v3348 = vpop.f32.mrf.mxu0
        %v3349 = vpop.f32.mrf.mxu0
        %v3350 = vadd.f32 %v3189, %v3349
        %v3351 = vpop.f32.mrf.mxu0
        %3352 = vdwg.mxu0
        %3353 = vmatprep.subr.bf16.mxu0 0
        %3354 = vmatpush1.bf16.msra.mxu0 %v2926
        %3355 = vmatprep.subr.bf16.mxu0 0
        %3356 = vmatpush1.bf16.msra.mxu0 %v2925
        %3357 = vmatprep.subr.bf16.mxu0 0
        %3358 = vmatpush1.bf16.msra.mxu0 %v2924
        %3359 = vmatprep.subr.bf16.mxu0 0
        %3360 = vmatpush1.bf16.msra.mxu0 %v2923
        %3361 = vmatprep.subr.bf16.mxu0 0
        %3362 = vmatpush1.bf16.msra.mxu0 %v2922
        %3363 = vmatprep.subr.bf16.mxu0 0
        %3364 = vmatpush1.bf16.msra.mxu0 %v2921
        %3365 = vmatprep.subr.bf16.mxu0 0
        %3366 = vmatpush1.bf16.msra.mxu0 %v2920
        %3367 = vmatprep.subr.bf16.mxu0 0
        %3368 = vmatpush1.bf16.msra.mxu0 %v2919
        %3369 = vmatprep.subr.bf16.mxu0 0
        %3370 = vmatpush2.bf16.msra.mxu0 %v2934
        %3371 = vmatprep.subr.bf16.mxu0 0
        %3372 = vmatpush2.bf16.msra.mxu0 %v2933
        %3373 = vmatprep.subr.bf16.mxu0 0
        %3374 = vmatpush2.bf16.msra.mxu0 %v2932
        %3375 = vmatprep.subr.bf16.mxu0 0
        %3376 = vmatpush2.bf16.msra.mxu0 %v2931
        %3377 = vmatprep.subr.bf16.mxu0 0
        %3378 = vmatpush2.bf16.msra.mxu0 %v2930
        %3379 = vmatprep.subr.bf16.mxu0 0
        %3380 = vmatpush2.bf16.msra.mxu0 %v2929
        %3381 = vmatprep.subr.bf16.mxu0 0
        %3382 = vmatpush2.bf16.msra.mxu0 %v2928
        %3383 = vmatprep.subr.bf16.mxu0 0
        %3384 = vmatpush2.bf16.msra.mxu0 %v2927
        %3385 = vmatprep.mubr.bf16.mxu0 %v2309
        %3386 = vmatmul.mubr.bf16.gmra.mxu0 %v2308
        %v3387 = vpop.f32.mrf.mxu0
        %v3388 = vadd.f32 %v3227, %v3387
        %v3389 = vpop.f32.mrf.mxu0
        %v3390 = vpop.f32.mrf.mxu0
        %v3391 = vadd.f32 %v3230, %v3390
        %v3392 = vpop.f32.mrf.mxu0
        %3393 = vmatprep.mubr.bf16.mxu0 %v2318
        %3394 = vmatmul.mubr.bf16.gmra.mxu0 %v2317
        %v3395 = vpop.f32.mrf.mxu0
        %v3396 = vadd.f32 %v3235, %v3395
        %v3397 = vpop.f32.mrf.mxu0
        %v3398 = vpop.f32.mrf.mxu0
        %v3399 = vadd.f32 %v3238, %v3398
        %v3400 = vpop.f32.mrf.mxu0
        %3401 = vmatprep.mubr.bf16.mxu0 %v2327
        %3402 = vmatmul.mubr.bf16.gmra.mxu0 %v2326
        %v3403 = vpop.f32.mrf.mxu0
        %v3404 = vadd.f32 %v3243, %v3403
        %v3405 = vpop.f32.mrf.mxu0
        %v3406 = vpop.f32.mrf.mxu0
        %v3407 = vadd.f32 %v3246, %v3406
        %v3408 = vpop.f32.mrf.mxu0
        %3409 = vmatprep.mubr.bf16.mxu0 %v2336
        %3410 = vmatmul.mubr.bf16.gmra.mxu0 %v2335
        %v3411 = vpop.f32.mrf.mxu0
        %v3412 = vadd.f32 %v3251, %v3411
        %v3413 = vpop.f32.mrf.mxu0
        %v3414 = vpop.f32.mrf.mxu0
        %v3415 = vadd.f32 %v3254, %v3414
        %v3416 = vpop.f32.mrf.mxu0
        %3417 = vmatprep.mubr.bf16.mxu0 %v2345
        %3418 = vmatmul.mubr.bf16.gmra.mxu0 %v2344
        %v3419 = vpop.f32.mrf.mxu0
        %v3420 = vadd.f32 %v3259, %v3419
        %v3421 = vpop.f32.mrf.mxu0
        %v3422 = vpop.f32.mrf.mxu0
        %v3423 = vadd.f32 %v3262, %v3422
        %v3424 = vpop.f32.mrf.mxu0
        %3425 = vmatprep.mubr.bf16.mxu0 %v2354
        %3426 = vmatmul.mubr.bf16.gmra.mxu0 %v2353
        %v3427 = vpop.f32.mrf.mxu0
        %v3428 = vadd.f32 %v3267, %v3427
        %v3429 = vpop.f32.mrf.mxu0
        %v3430 = vpop.f32.mrf.mxu0
        %v3431 = vadd.f32 %v3270, %v3430
        %v3432 = vpop.f32.mrf.mxu0
        %3433 = vmatprep.mubr.bf16.mxu0 %v2363
        %3434 = vmatmul.mubr.bf16.gmra.mxu0 %v2362
        %v3435 = vpop.f32.mrf.mxu0
        %v3436 = vadd.f32 %v3275, %v3435
        %v3437 = vpop.f32.mrf.mxu0
        %v3438 = vpop.f32.mrf.mxu0
        %v3439 = vadd.f32 %v3278, %v3438
        %v3440 = vpop.f32.mrf.mxu0
        %3441 = vmatprep.mubr.bf16.mxu0 %v2372
        %3442 = vmatmul.mubr.bf16.gmra.mxu0 %v2371
        %v3443 = vpop.f32.mrf.mxu0
        %v3444 = vadd.f32 %v3283, %v3443
        %v3445 = vpop.f32.mrf.mxu0
        %v3446 = vpop.f32.mrf.mxu0
        %v3447 = vadd.f32 %v3286, %v3446
        %v3448 = vpop.f32.mrf.mxu0
        %3449 = vmatprep.mubr.bf16.mxu0 %v2381
        %3450 = vmatmul.mubr.bf16.gmra.mxu0 %v2380
        %v3451 = vpop.f32.mrf.mxu0
        %v3452 = vadd.f32 %v3291, %v3451
        %v3453 = vpop.f32.mrf.mxu0
        %v3454 = vpop.f32.mrf.mxu0
        %v3455 = vadd.f32 %v3294, %v3454
        %v3456 = vpop.f32.mrf.mxu0
        %3457 = vmatprep.mubr.bf16.mxu0 %v2390
        %3458 = vmatmul.mubr.bf16.gmra.mxu0 %v2389
        %v3459 = vpop.f32.mrf.mxu0
        %v3460 = vadd.f32 %v3299, %v3459
        %v3461 = vpop.f32.mrf.mxu0
        %v3462 = vpop.f32.mrf.mxu0
        %v3463 = vadd.f32 %v3302, %v3462
        %v3464 = vpop.f32.mrf.mxu0
        %3465 = vmatprep.mubr.bf16.mxu0 %v2399
        %3466 = vmatmul.mubr.bf16.gmra.mxu0 %v2398
        %v3467 = vpop.f32.mrf.mxu0
        %v3468 = vadd.f32 %v3307, %v3467
        %v3469 = vpop.f32.mrf.mxu0
        %v3470 = vpop.f32.mrf.mxu0
        %v3471 = vadd.f32 %v3310, %v3470
        %v3472 = vpop.f32.mrf.mxu0
        %3473 = vmatprep.mubr.bf16.mxu0 %v2408
        %3474 = vmatmul.mubr.bf16.gmra.mxu0 %v2407
        %v3475 = vpop.f32.mrf.mxu0
        %v3476 = vadd.f32 %v3315, %v3475
        %v3477 = vpop.f32.mrf.mxu0
        %v3478 = vpop.f32.mrf.mxu0
        %v3479 = vadd.f32 %v3318, %v3478
        %v3480 = vpop.f32.mrf.mxu0
        %3481 = vmatprep.mubr.bf16.mxu0 %v2417
        %3482 = vmatmul.mubr.bf16.gmra.mxu0 %v2416
        %v3483 = vpop.f32.mrf.mxu0
        %v3484 = vadd.f32 %v3323, %v3483
        %v3485 = vpop.f32.mrf.mxu0
        %v3486 = vpop.f32.mrf.mxu0
        %v3487 = vadd.f32 %v3326, %v3486
        %v3488 = vpop.f32.mrf.mxu0
        %3489 = vmatprep.mubr.bf16.mxu0 %v2426
        %3490 = vmatmul.mubr.bf16.gmra.mxu0 %v2425
        %v3491 = vpop.f32.mrf.mxu0
        %v3492 = vadd.f32 %v3331, %v3491
        %v3493 = vpop.f32.mrf.mxu0
        %v3494 = vpop.f32.mrf.mxu0
        %v3495 = vadd.f32 %v3334, %v3494
        %v3496 = vpop.f32.mrf.mxu0
        %3497 = vmatprep.mubr.bf16.mxu0 %v2435
        %3498 = vmatmul.mubr.bf16.gmra.mxu0 %v2434
        %v3499 = vpop.f32.mrf.mxu0
        %v3500 = vadd.f32 %v3339, %v3499
        %v3501 = vpop.f32.mrf.mxu0
        %v3502 = vpop.f32.mrf.mxu0
        %v3503 = vadd.f32 %v3342, %v3502
        %v3504 = vpop.f32.mrf.mxu0
        %3505 = vmatprep.mubr.bf16.mxu0 %v2444
        %3506 = vmatmul.mubr.bf16.gmra.mxu0 %v2443
        %v3507 = vpop.f32.mrf.mxu0
        %v3508 = vadd.f32 %v3347, %v3507
        %v3509 = vpop.f32.mrf.mxu0
        %v3510 = vpop.f32.mrf.mxu0
        %v3511 = vadd.f32 %v3350, %v3510
        %v3512 = vpop.f32.mrf.mxu0
        %3513 = vdwg.mxu0
        %3514 = vmatprep.subr.bf16.mxu0 0
        %3515 = vmatpush1.bf16.msra.mxu0 %v2942
        %3516 = vmatprep.subr.bf16.mxu0 0
        %3517 = vmatpush1.bf16.msra.mxu0 %v2941
        %3518 = vmatprep.subr.bf16.mxu0 0
        %3519 = vmatpush1.bf16.msra.mxu0 %v2940
        %3520 = vmatprep.subr.bf16.mxu0 0
        %3521 = vmatpush1.bf16.msra.mxu0 %v2939
        %3522 = vmatprep.subr.bf16.mxu0 0
        %3523 = vmatpush1.bf16.msra.mxu0 %v2938
        %3524 = vmatprep.subr.bf16.mxu0 0
        %3525 = vmatpush1.bf16.msra.mxu0 %v2937
        %3526 = vmatprep.subr.bf16.mxu0 0
        %3527 = vmatpush1.bf16.msra.mxu0 %v2936
        %3528 = vmatprep.subr.bf16.mxu0 0
        %3529 = vmatpush1.bf16.msra.mxu0 %v2935
        %3530 = vmatprep.subr.bf16.mxu0 0
        %3531 = vmatpush2.bf16.msra.mxu0 %v2950
        %3532 = vmatprep.subr.bf16.mxu0 0
        %3533 = vmatpush2.bf16.msra.mxu0 %v2949
        %3534 = vmatprep.subr.bf16.mxu0 0
        %3535 = vmatpush2.bf16.msra.mxu0 %v2948
        %3536 = vmatprep.subr.bf16.mxu0 0
        %3537 = vmatpush2.bf16.msra.mxu0 %v2947
        %3538 = vmatprep.subr.bf16.mxu0 0
        %3539 = vmatpush2.bf16.msra.mxu0 %v2946
        %3540 = vmatprep.subr.bf16.mxu0 0
        %3541 = vmatpush2.bf16.msra.mxu0 %v2945
        %3542 = vmatprep.subr.bf16.mxu0 0
        %3543 = vmatpush2.bf16.msra.mxu0 %v2944
        %3544 = vmatprep.subr.bf16.mxu0 0
        %3545 = vmatpush2.bf16.msra.mxu0 %v2943
        %3546 = vmatprep.mubr.bf16.mxu0 %v2311
        %3547 = vmatmul.mubr.bf16.gmra.mxu0 %v2310
        %v3548 = vpop.f32.mrf.mxu0
        %v3549 = vadd.f32 %v3388, %v3548
        %v3550 = vpop.f32.mrf.mxu0
        %v3551 = vpop.f32.mrf.mxu0
        %v3552 = vadd.f32 %v3391, %v3551
        %v3553 = vpop.f32.mrf.mxu0
        %3554 = vmatprep.mubr.bf16.mxu0 %v2320
        %3555 = vmatmul.mubr.bf16.gmra.mxu0 %v2319
        %v3556 = vpop.f32.mrf.mxu0
        %v3557 = vadd.f32 %v3396, %v3556
        %v3558 = vpop.f32.mrf.mxu0
        %v3559 = vpop.f32.mrf.mxu0
        %v3560 = vadd.f32 %v3399, %v3559
        %v3561 = vpop.f32.mrf.mxu0
        %3562 = vmatprep.mubr.bf16.mxu0 %v2329
        %3563 = vmatmul.mubr.bf16.gmra.mxu0 %v2328
        %v3564 = vpop.f32.mrf.mxu0
        %v3565 = vadd.f32 %v3404, %v3564
        %v3566 = vpop.f32.mrf.mxu0
        %v3567 = vpop.f32.mrf.mxu0
        %v3568 = vadd.f32 %v3407, %v3567
        %v3569 = vpop.f32.mrf.mxu0
        %3570 = vmatprep.mubr.bf16.mxu0 %v2338
        %3571 = vmatmul.mubr.bf16.gmra.mxu0 %v2337
        %v3572 = vpop.f32.mrf.mxu0
        %v3573 = vadd.f32 %v3412, %v3572
        %v3574 = vpop.f32.mrf.mxu0
        %v3575 = vpop.f32.mrf.mxu0
        %v3576 = vadd.f32 %v3415, %v3575
        %v3577 = vpop.f32.mrf.mxu0
        %3578 = vmatprep.mubr.bf16.mxu0 %v2347
        %3579 = vmatmul.mubr.bf16.gmra.mxu0 %v2346
        %v3580 = vpop.f32.mrf.mxu0
        %v3581 = vadd.f32 %v3420, %v3580
        %v3582 = vpop.f32.mrf.mxu0
        %v3583 = vpop.f32.mrf.mxu0
        %v3584 = vadd.f32 %v3423, %v3583
        %v3585 = vpop.f32.mrf.mxu0
        %3586 = vmatprep.mubr.bf16.mxu0 %v2356
        %3587 = vmatmul.mubr.bf16.gmra.mxu0 %v2355
        %v3588 = vpop.f32.mrf.mxu0
        %v3589 = vadd.f32 %v3428, %v3588
        %v3590 = vpop.f32.mrf.mxu0
        %v3591 = vpop.f32.mrf.mxu0
        %v3592 = vadd.f32 %v3431, %v3591
        %v3593 = vpop.f32.mrf.mxu0
        %3594 = vmatprep.mubr.bf16.mxu0 %v2365
        %3595 = vmatmul.mubr.bf16.gmra.mxu0 %v2364
        %v3596 = vpop.f32.mrf.mxu0
        %v3597 = vadd.f32 %v3436, %v3596
        %v3598 = vpop.f32.mrf.mxu0
        %v3599 = vpop.f32.mrf.mxu0
        %v3600 = vadd.f32 %v3439, %v3599
        %v3601 = vpop.f32.mrf.mxu0
        %3602 = vmatprep.mubr.bf16.mxu0 %v2374
        %3603 = vmatmul.mubr.bf16.gmra.mxu0 %v2373
        %v3604 = vpop.f32.mrf.mxu0
        %v3605 = vadd.f32 %v3444, %v3604
        %v3606 = vpop.f32.mrf.mxu0
        %v3607 = vpop.f32.mrf.mxu0
        %v3608 = vadd.f32 %v3447, %v3607
        %v3609 = vpop.f32.mrf.mxu0
        %3610 = vmatprep.mubr.bf16.mxu0 %v2383
        %3611 = vmatmul.mubr.bf16.gmra.mxu0 %v2382
        %v3612 = vpop.f32.mrf.mxu0
        %v3613 = vadd.f32 %v3452, %v3612
        %v3614 = vpop.f32.mrf.mxu0
        %v3615 = vpop.f32.mrf.mxu0
        %v3616 = vadd.f32 %v3455, %v3615
        %v3617 = vpop.f32.mrf.mxu0
        %3618 = vmatprep.mubr.bf16.mxu0 %v2392
        %3619 = vmatmul.mubr.bf16.gmra.mxu0 %v2391
        %v3620 = vpop.f32.mrf.mxu0
        %v3621 = vadd.f32 %v3460, %v3620
        %v3622 = vpop.f32.mrf.mxu0
        %v3623 = vpop.f32.mrf.mxu0
        %v3624 = vadd.f32 %v3463, %v3623
        %v3625 = vpop.f32.mrf.mxu0
        %3626 = vmatprep.mubr.bf16.mxu0 %v2401
        %3627 = vmatmul.mubr.bf16.gmra.mxu0 %v2400
        %v3628 = vpop.f32.mrf.mxu0
        %v3629 = vadd.f32 %v3468, %v3628
        %v3630 = vpop.f32.mrf.mxu0
        %v3631 = vpop.f32.mrf.mxu0
        %v3632 = vadd.f32 %v3471, %v3631
        %v3633 = vpop.f32.mrf.mxu0
        %3634 = vmatprep.mubr.bf16.mxu0 %v2410
        %3635 = vmatmul.mubr.bf16.gmra.mxu0 %v2409
        %v3636 = vpop.f32.mrf.mxu0
        %v3637 = vadd.f32 %v3476, %v3636
        %v3638 = vpop.f32.mrf.mxu0
        %v3639 = vpop.f32.mrf.mxu0
        %v3640 = vadd.f32 %v3479, %v3639
        %v3641 = vpop.f32.mrf.mxu0
        %3642 = vmatprep.mubr.bf16.mxu0 %v2419
        %3643 = vmatmul.mubr.bf16.gmra.mxu0 %v2418
        %v3644 = vpop.f32.mrf.mxu0
        %v3645 = vadd.f32 %v3484, %v3644
        %v3646 = vpop.f32.mrf.mxu0
        %v3647 = vpop.f32.mrf.mxu0
        %v3648 = vadd.f32 %v3487, %v3647
        %v3649 = vpop.f32.mrf.mxu0
        %3650 = vmatprep.mubr.bf16.mxu0 %v2428
        %3651 = vmatmul.mubr.bf16.gmra.mxu0 %v2427
        %v3652 = vpop.f32.mrf.mxu0
        %v3653 = vadd.f32 %v3492, %v3652
        %v3654 = vpop.f32.mrf.mxu0
        %v3655 = vpop.f32.mrf.mxu0
        %v3656 = vadd.f32 %v3495, %v3655
        %v3657 = vpop.f32.mrf.mxu0
        %3658 = vmatprep.mubr.bf16.mxu0 %v2437
        %3659 = vmatmul.mubr.bf16.gmra.mxu0 %v2436
        %v3660 = vpop.f32.mrf.mxu0
        %v3661 = vadd.f32 %v3500, %v3660
        %v3662 = vpop.f32.mrf.mxu0
        %v3663 = vpop.f32.mrf.mxu0
        %v3664 = vadd.f32 %v3503, %v3663
        %v3665 = vpop.f32.mrf.mxu0
        %3666 = vmatprep.mubr.bf16.mxu0 %v2446
        %3667 = vmatmul.mubr.bf16.gmra.mxu0 %v2445
        %v3668 = vpop.f32.mrf.mxu0
        %v3669 = vadd.f32 %v3508, %v3668
        %v3670 = vpop.f32.mrf.mxu0
        %v3671 = vpop.f32.mrf.mxu0
        %v3672 = vadd.f32 %v3511, %v3671
        %v3673 = vpop.f32.mrf.mxu0
        %3674 = vdwg.mxu0
        %3675 = vmatprep.subr.bf16.mxu0 0
        %3676 = vmatpush1.bf16.msra.mxu0 %v2958
        %3677 = vmatprep.subr.bf16.mxu0 0
        %3678 = vmatpush1.bf16.msra.mxu0 %v2957
        %3679 = vmatprep.subr.bf16.mxu0 0
        %3680 = vmatpush1.bf16.msra.mxu0 %v2956
        %3681 = vmatprep.subr.bf16.mxu0 0
        %3682 = vmatpush1.bf16.msra.mxu0 %v2955
        %3683 = vmatprep.subr.bf16.mxu0 0
        %3684 = vmatpush1.bf16.msra.mxu0 %v2954
        %3685 = vmatprep.subr.bf16.mxu0 0
        %3686 = vmatpush1.bf16.msra.mxu0 %v2953
        %3687 = vmatprep.subr.bf16.mxu0 0
        %3688 = vmatpush1.bf16.msra.mxu0 %v2952
        %3689 = vmatprep.subr.bf16.mxu0 0
        %3690 = vmatpush1.bf16.msra.mxu0 %v2951
        %3691 = vmatprep.subr.bf16.mxu0 0
        %3692 = vmatpush2.bf16.msra.mxu0 0
        %3693 = vmatprep.subr.bf16.mxu0 0
        %3694 = vmatpush2.bf16.msra.mxu0 0
        %3695 = vmatprep.subr.bf16.mxu0 0
        %3696 = vmatpush2.bf16.msra.mxu0 0
        %3697 = vmatprep.subr.bf16.mxu0 0
        %3698 = vmatpush2.bf16.msra.mxu0 0
        %3699 = vmatprep.subr.bf16.mxu0 0
        %3700 = vmatpush2.bf16.msra.mxu0 0
        %3701 = vmatprep.subr.bf16.mxu0 0
        %3702 = vmatpush2.bf16.msra.mxu0 0
        %3703 = vmatprep.subr.bf16.mxu0 0
        %3704 = vmatpush2.bf16.msra.mxu0 0
        %3705 = vmatprep.subr.bf16.mxu0 0
        %3706 = vmatpush2.bf16.msra.mxu0 0
        %3707 = vmatprep.mubr.bf16.mxu0 0
        %3708 = vmatmul.mubr.bf16.gmra.mxu0 %v2312
        %v3709 = vpop.f32.mrf.mxu0
        %v3710 = vadd.f32 %v3549, %v3709
        %v3711 = vpop.f32.mrf.mxu0
        %v3712 = vpop.f32.mrf.mxu0
        %v3713 = vadd.f32 %v3552, %v3712
        %v3714 = vpop.f32.mrf.mxu0
        %3715 = vmatprep.mubr.bf16.mxu0 0
        %3716 = vmatmul.mubr.bf16.gmra.mxu0 %v2321
        %v3717 = vpop.f32.mrf.mxu0
        %v3718 = vadd.f32 %v3557, %v3717
        %v3719 = vpop.f32.mrf.mxu0
        %v3720 = vpop.f32.mrf.mxu0
        %v3721 = vadd.f32 %v3560, %v3720
        %v3722 = vpop.f32.mrf.mxu0
        %3723 = vmatprep.mubr.bf16.mxu0 0
        %3724 = vmatmul.mubr.bf16.gmra.mxu0 %v2330
        %v3725 = vpop.f32.mrf.mxu0
        %v3726 = vadd.f32 %v3565, %v3725
        %v3727 = vpop.f32.mrf.mxu0
        %v3728 = vpop.f32.mrf.mxu0
        %v3729 = vadd.f32 %v3568, %v3728
        %v3730 = vpop.f32.mrf.mxu0
        %3731 = vmatprep.mubr.bf16.mxu0 0
        %3732 = vmatmul.mubr.bf16.gmra.mxu0 %v2339
        %v3733 = vpop.f32.mrf.mxu0
        %v3734 = vadd.f32 %v3573, %v3733
        %v3735 = vpop.f32.mrf.mxu0
        %v3736 = vpop.f32.mrf.mxu0
        %v3737 = vadd.f32 %v3576, %v3736
        %v3738 = vpop.f32.mrf.mxu0
        %3739 = vmatprep.mubr.bf16.mxu0 0
        %3740 = vmatmul.mubr.bf16.gmra.mxu0 %v2348
        %v3741 = vpop.f32.mrf.mxu0
        %v3742 = vadd.f32 %v3581, %v3741
        %v3743 = vpop.f32.mrf.mxu0
        %v3744 = vpop.f32.mrf.mxu0
        %v3745 = vadd.f32 %v3584, %v3744
        %v3746 = vpop.f32.mrf.mxu0
        %3747 = vmatprep.mubr.bf16.mxu0 0
        %3748 = vmatmul.mubr.bf16.gmra.mxu0 %v2357
        %v3749 = vpop.f32.mrf.mxu0
        %v3750 = vadd.f32 %v3589, %v3749
        %v3751 = vpop.f32.mrf.mxu0
        %v3752 = vpop.f32.mrf.mxu0
        %v3753 = vadd.f32 %v3592, %v3752
        %v3754 = vpop.f32.mrf.mxu0
        %3755 = vmatprep.mubr.bf16.mxu0 0
        %3756 = vmatmul.mubr.bf16.gmra.mxu0 %v2366
        %v3757 = vpop.f32.mrf.mxu0
        %v3758 = vadd.f32 %v3597, %v3757
        %v3759 = vpop.f32.mrf.mxu0
        %v3760 = vpop.f32.mrf.mxu0
        %v3761 = vadd.f32 %v3600, %v3760
        %v3762 = vpop.f32.mrf.mxu0
        %3763 = vmatprep.mubr.bf16.mxu0 0
        %3764 = vmatmul.mubr.bf16.gmra.mxu0 %v2375
        %v3765 = vpop.f32.mrf.mxu0
        %v3766 = vadd.f32 %v3605, %v3765
        %v3767 = vpop.f32.mrf.mxu0
        %v3768 = vpop.f32.mrf.mxu0
        %v3769 = vadd.f32 %v3608, %v3768
        %v3770 = vpop.f32.mrf.mxu0
        %3771 = vmatprep.mubr.bf16.mxu0 0
        %3772 = vmatmul.mubr.bf16.gmra.mxu0 %v2384
        %v3773 = vpop.f32.mrf.mxu0
        %v3774 = vadd.f32 %v3613, %v3773
        %v3775 = vpop.f32.mrf.mxu0
        %v3776 = vpop.f32.mrf.mxu0
        %v3777 = vadd.f32 %v3616, %v3776
        %v3778 = vpop.f32.mrf.mxu0
        %3779 = vmatprep.mubr.bf16.mxu0 0
        %3780 = vmatmul.mubr.bf16.gmra.mxu0 %v2393
        %v3781 = vpop.f32.mrf.mxu0
        %v3782 = vadd.f32 %v3621, %v3781
        %v3783 = vpop.f32.mrf.mxu0
        %v3784 = vpop.f32.mrf.mxu0
        %v3785 = vadd.f32 %v3624, %v3784
        %v3786 = vpop.f32.mrf.mxu0
        %3787 = vmatprep.mubr.bf16.mxu0 0
        %3788 = vmatmul.mubr.bf16.gmra.mxu0 %v2402
        %v3789 = vpop.f32.mrf.mxu0
        %v3790 = vadd.f32 %v3629, %v3789
        %v3791 = vpop.f32.mrf.mxu0
        %v3792 = vpop.f32.mrf.mxu0
        %v3793 = vadd.f32 %v3632, %v3792
        %v3794 = vpop.f32.mrf.mxu0
        %3795 = vmatprep.mubr.bf16.mxu0 0
        %3796 = vmatmul.mubr.bf16.gmra.mxu0 %v2411
        %v3797 = vpop.f32.mrf.mxu0
        %v3798 = vadd.f32 %v3637, %v3797
        %v3799 = vpop.f32.mrf.mxu0
        %v3800 = vpop.f32.mrf.mxu0
        %v3801 = vadd.f32 %v3640, %v3800
        %v3802 = vpop.f32.mrf.mxu0
        %3803 = vmatprep.mubr.bf16.mxu0 0
        %3804 = vmatmul.mubr.bf16.gmra.mxu0 %v2420
        %v3805 = vpop.f32.mrf.mxu0
        %v3806 = vadd.f32 %v3645, %v3805
        %v3807 = vpop.f32.mrf.mxu0
        %v3808 = vpop.f32.mrf.mxu0
        %v3809 = vadd.f32 %v3648, %v3808
        %v3810 = vpop.f32.mrf.mxu0
        %3811 = vmatprep.mubr.bf16.mxu0 0
        %3812 = vmatmul.mubr.bf16.gmra.mxu0 %v2429
        %v3813 = vpop.f32.mrf.mxu0
        %v3814 = vadd.f32 %v3653, %v3813
        %v3815 = vpop.f32.mrf.mxu0
        %v3816 = vpop.f32.mrf.mxu0
        %v3817 = vadd.f32 %v3656, %v3816
        %v3818 = vpop.f32.mrf.mxu0
        %3819 = vmatprep.mubr.bf16.mxu0 0
        %3820 = vmatmul.mubr.bf16.gmra.mxu0 %v2438
        %v3821 = vpop.f32.mrf.mxu0
        %v3822 = vadd.f32 %v3661, %v3821
        %v3823 = vpop.f32.mrf.mxu0
        %v3824 = vpop.f32.mrf.mxu0
        %v3825 = vadd.f32 %v3664, %v3824
        %v3826 = vpop.f32.mrf.mxu0
        %3827 = vmatprep.mubr.bf16.mxu0 0
        %3828 = vmatmul.mubr.bf16.gmra.mxu0 %v2447
        %v3829 = vpop.f32.mrf.mxu0
        %v3830 = vadd.f32 %v3669, %v3829
        %v3831 = vpop.f32.mrf.mxu0
        %v3832 = vpop.f32.mrf.mxu0
        %v3833 = vadd.f32 %v3672, %v3832
        %v3834 = vpop.f32.mrf.mxu0
        %3835 = vdwg.mxu0
        %v3836 = vxor.u32 %v3710, 2147483648
        %v3837 = vxor.u32 %v3713, 2147483648
        %v3838 = vxor.u32 %v3718, 2147483648
        %v3839 = vxor.u32 %v3721, 2147483648
        %v3840 = vxor.u32 %v3726, 2147483648
        %v3841 = vxor.u32 %v3729, 2147483648
        %v3842 = vxor.u32 %v3734, 2147483648
        %v3843 = vxor.u32 %v3737, 2147483648
        %v3844 = vxor.u32 %v3742, 2147483648
        %v3845 = vxor.u32 %v3745, 2147483648
        %v3846 = vxor.u32 %v3750, 2147483648
        %v3847 = vxor.u32 %v3753, 2147483648
        %v3848 = vxor.u32 %v3758, 2147483648
        %v3849 = vxor.u32 %v3761, 2147483648
        %v3850 = vxor.u32 %v3766, 2147483648
        %v3851 = vxor.u32 %v3769, 2147483648
        %v3852 = vxor.u32 %v3774, 2147483648
        %v3853 = vxor.u32 %v3777, 2147483648
        %v3854 = vxor.u32 %v3782, 2147483648
        %v3855 = vxor.u32 %v3785, 2147483648
        %v3856 = vxor.u32 %v3790, 2147483648
        %v3857 = vxor.u32 %v3793, 2147483648
        %v3858 = vxor.u32 %v3798, 2147483648
        %v3859 = vxor.u32 %v3801, 2147483648
        %v3860 = vxor.u32 %v3806, 2147483648
        %v3861 = vxor.u32 %v3809, 2147483648
        %v3862 = vxor.u32 %v3814, 2147483648
        %v3863 = vxor.u32 %v3817, 2147483648
        %v3864 = vxor.u32 %v3822, 2147483648
        %v3865 = vxor.u32 %v3825, 2147483648
        %v3866 = vxor.u32 %v3830, 2147483648
        %v3867 = vxor.u32 %v3833, 2147483648
        %v3868 = vmul.f32 %v3836, 1.442695
        %v3869 = vpow.pop %v3868
        %v3870 = vmul.f32 %v3837, 1.442695
        %v3871 = vpow.pop %v3870
        %v3872 = vmul.f32 %v3838, 1.442695
        %v3873 = vpow.pop %v3872
        %v3874 = vmul.f32 %v3839, 1.442695
        %v3875 = vpow.pop %v3874
        %v3876 = vmul.f32 %v3840, 1.442695
        %v3877 = vpow.pop %v3876
        %v3878 = vmul.f32 %v3841, 1.442695
        %v3879 = vpow.pop %v3878
        %v3880 = vmul.f32 %v3842, 1.442695
        %v3881 = vpow.pop %v3880
        %v3882 = vmul.f32 %v3843, 1.442695
        %v3883 = vpow.pop %v3882
        %v3884 = vmul.f32 %v3844, 1.442695
        %v3885 = vpow.pop %v3884
        %v3886 = vmul.f32 %v3845, 1.442695
        %v3887 = vpow.pop %v3886
        %v3888 = vmul.f32 %v3846, 1.442695
        %v3889 = vpow.pop %v3888
        %v3890 = vmul.f32 %v3847, 1.442695
        %v3891 = vpow.pop %v3890
        %v3892 = vmul.f32 %v3848, 1.442695
        %v3893 = vpow.pop %v3892
        %v3894 = vmul.f32 %v3849, 1.442695
        %v3895 = vpow.pop %v3894
        %v3896 = vmul.f32 %v3850, 1.442695
        %v3897 = vpow.pop %v3896
        %v3898 = vmul.f32 %v3851, 1.442695
        %v3899 = vpow.pop %v3898
        %v3900 = vmul.f32 %v3852, 1.442695
        %v3901 = vpow.pop %v3900
        %v3902 = vmul.f32 %v3853, 1.442695
        %v3903 = vpow.pop %v3902
        %v3904 = vmul.f32 %v3854, 1.442695
        %v3905 = vpow.pop %v3904
        %v3906 = vmul.f32 %v3855, 1.442695
        %v3907 = vpow.pop %v3906
        %v3908 = vmul.f32 %v3856, 1.442695
        %v3909 = vpow.pop %v3908
        %v3910 = vmul.f32 %v3857, 1.442695
        %v3911 = vpow.pop %v3910
        %v3912 = vmul.f32 %v3858, 1.442695
        %v3913 = vpow.pop %v3912
        %v3914 = vmul.f32 %v3859, 1.442695
        %v3915 = vpow.pop %v3914
        %v3916 = vmul.f32 %v3860, 1.442695
        %v3917 = vpow.pop %v3916
        %v3918 = vmul.f32 %v3861, 1.442695
        %v3919 = vpow.pop %v3918
        %v3920 = vmul.f32 %v3862, 1.442695
        %v3921 = vpow.pop %v3920
        %v3922 = vmul.f32 %v3863, 1.442695
        %v3923 = vpow.pop %v3922
        %v3924 = vmul.f32 %v3864, 1.442695
        %v3925 = vpow.pop %v3924
        %v3926 = vmul.f32 %v3865, 1.442695
        %v3927 = vpow.pop %v3926
        %v3928 = vmul.f32 %v3866, 1.442695
        %v3929 = vpow.pop %v3928
        %v3930 = vmul.f32 %v3867, 1.442695
        %v3931 = vpow.pop %v3930
        %v3932 = vadd.f32 %v3869, 1.0
        %v3933 = vadd.f32 %v3871, 1.0
        %v3934 = vadd.f32 %v3873, 1.0
        %v3935 = vadd.f32 %v3875, 1.0
        %v3936 = vadd.f32 %v3877, 1.0
        %v3937 = vadd.f32 %v3879, 1.0
        %v3938 = vadd.f32 %v3881, 1.0
        %v3939 = vadd.f32 %v3883, 1.0
        %v3940 = vadd.f32 %v3885, 1.0
        %v3941 = vadd.f32 %v3887, 1.0
        %v3942 = vadd.f32 %v3889, 1.0
        %v3943 = vadd.f32 %v3891, 1.0
        %v3944 = vadd.f32 %v3893, 1.0
        %v3945 = vadd.f32 %v3895, 1.0
        %v3946 = vadd.f32 %v3897, 1.0
        %v3947 = vadd.f32 %v3899, 1.0
        %v3948 = vadd.f32 %v3901, 1.0
        %v3949 = vadd.f32 %v3903, 1.0
        %v3950 = vadd.f32 %v3905, 1.0
        %v3951 = vadd.f32 %v3907, 1.0
        %v3952 = vadd.f32 %v3909, 1.0
        %v3953 = vadd.f32 %v3911, 1.0
        %v3954 = vadd.f32 %v3913, 1.0
        %v3955 = vadd.f32 %v3915, 1.0
        %v3956 = vadd.f32 %v3917, 1.0
        %v3957 = vadd.f32 %v3919, 1.0
        %v3958 = vadd.f32 %v3921, 1.0
        %v3959 = vadd.f32 %v3923, 1.0
        %v3960 = vadd.f32 %v3925, 1.0
        %v3961 = vadd.f32 %v3927, 1.0
        %v3962 = vadd.f32 %v3929, 1.0
        %v3963 = vadd.f32 %v3931, 1.0
        %v3964 = vrcp.pop %v3932
        %v3965 = vmul.f32 1.0, %v3964
        %v3966 = vrcp.pop %v3933
        %v3967 = vmul.f32 1.0, %v3966
        %v3968 = vrcp.pop %v3934
        %v3969 = vmul.f32 1.0, %v3968
        %v3970 = vrcp.pop %v3935
        %v3971 = vmul.f32 1.0, %v3970
        %v3972 = vrcp.pop %v3936
        %v3973 = vmul.f32 1.0, %v3972
        %v3974 = vrcp.pop %v3937
        %v3975 = vmul.f32 1.0, %v3974
        %v3976 = vrcp.pop %v3938
        %v3977 = vmul.f32 1.0, %v3976
        %v3978 = vrcp.pop %v3939
        %v3979 = vmul.f32 1.0, %v3978
        %v3980 = vrcp.pop %v3940
        %v3981 = vmul.f32 1.0, %v3980
        %v3982 = vrcp.pop %v3941
        %v3983 = vmul.f32 1.0, %v3982
        %v3984 = vrcp.pop %v3942
        %v3985 = vmul.f32 1.0, %v3984
        %v3986 = vrcp.pop %v3943
        %v3987 = vmul.f32 1.0, %v3986
        %v3988 = vrcp.pop %v3944
        %v3989 = vmul.f32 1.0, %v3988
        %v3990 = vrcp.pop %v3945
        %v3991 = vmul.f32 1.0, %v3990
        %v3992 = vrcp.pop %v3946
        %v3993 = vmul.f32 1.0, %v3992
        %v3994 = vrcp.pop %v3947
        %v3995 = vmul.f32 1.0, %v3994
        %v3996 = vrcp.pop %v3948
        %v3997 = vmul.f32 1.0, %v3996
        %v3998 = vrcp.pop %v3949
        %v3999 = vmul.f32 1.0, %v3998
        %v4000 = vrcp.pop %v3950
        %v4001 = vmul.f32 1.0, %v4000
        %v4002 = vrcp.pop %v3951
        %v4003 = vmul.f32 1.0, %v4002
        %v4004 = vrcp.pop %v3952
        %v4005 = vmul.f32 1.0, %v4004
        %v4006 = vrcp.pop %v3953
        %v4007 = vmul.f32 1.0, %v4006
        %v4008 = vrcp.pop %v3954
        %v4009 = vmul.f32 1.0, %v4008
        %v4010 = vrcp.pop %v3955
        %v4011 = vmul.f32 1.0, %v4010
        %v4012 = vrcp.pop %v3956
        %v4013 = vmul.f32 1.0, %v4012
        %v4014 = vrcp.pop %v3957
        %v4015 = vmul.f32 1.0, %v4014
        %v4016 = vrcp.pop %v3958
        %v4017 = vmul.f32 1.0, %v4016
        %v4018 = vrcp.pop %v3959
        %v4019 = vmul.f32 1.0, %v4018
        %v4020 = vrcp.pop %v3960
        %v4021 = vmul.f32 1.0, %v4020
        %v4022 = vrcp.pop %v3961
        %v4023 = vmul.f32 1.0, %v4022
        %v4024 = vrcp.pop %v3962
        %v4025 = vmul.f32 1.0, %v4024
        %v4026 = vrcp.pop %v3963
        %v4027 = vmul.f32 1.0, %v4026
        %v4028 = vmul.f32 %v3710, %v3965
        %v4029 = vmul.f32 %v3713, %v3967
        %v4030 = vmul.f32 %v3718, %v3969
        %v4031 = vmul.f32 %v3721, %v3971
        %v4032 = vmul.f32 %v3726, %v3973
        %v4033 = vmul.f32 %v3729, %v3975
        %v4034 = vmul.f32 %v3734, %v3977
        %v4035 = vmul.f32 %v3737, %v3979
        %v4036 = vmul.f32 %v3742, %v3981
        %v4037 = vmul.f32 %v3745, %v3983
        %v4038 = vmul.f32 %v3750, %v3985
        %v4039 = vmul.f32 %v3753, %v3987
        %v4040 = vmul.f32 %v3758, %v3989
        %v4041 = vmul.f32 %v3761, %v3991
        %v4042 = vmul.f32 %v3766, %v3993
        %v4043 = vmul.f32 %v3769, %v3995
        %v4044 = vmul.f32 %v3774, %v3997
        %v4045 = vmul.f32 %v3777, %v3999
        %v4046 = vmul.f32 %v3782, %v4001
        %v4047 = vmul.f32 %v3785, %v4003
        %v4048 = vmul.f32 %v3790, %v4005
        %v4049 = vmul.f32 %v3793, %v4007
        %v4050 = vmul.f32 %v3798, %v4009
        %v4051 = vmul.f32 %v3801, %v4011
        %v4052 = vmul.f32 %v3806, %v4013
        %v4053 = vmul.f32 %v3809, %v4015
        %v4054 = vmul.f32 %v3814, %v4017
        %v4055 = vmul.f32 %v3817, %v4019
        %v4056 = vmul.f32 %v3822, %v4021
        %v4057 = vmul.f32 %v3825, %v4023
        %v4058 = vmul.f32 %v3830, %v4025
        %v4059 = vmul.f32 %v3833, %v4027
        %v4060 = vsel %vm295, %v239, 0.0
        %v4061 = vsel %vm295, %v240, 0.0
        %v4062 = vsel %vm295, %v241, 0.0
        %v4063 = vsel %vm295, %v242, 0.0
        %v4064 = vsel %vm295, %v243, 0.0
        %v4065 = vsel %vm295, %v244, 0.0
        %v4066 = vsel %vm295, %v245, 0.0
        %v4067 = vsel %vm295, %v246, 0.0
        %v4068 = vsel %vm295, %v247, 0.0
        %v4069 = vsel %vm295, %v248, 0.0
        %v4070 = vsel %vm295, %v249, 0.0
        %v4071 = vsel %vm295, %v250, 0.0
        %v4072 = vsel %vm295, %v251, 0.0
        %v4073 = vsel %vm295, %v252, 0.0
        %v4074 = vsel %vm295, %v253, 0.0
        %v4075 = vsel %vm295, %v254, 0.0
        %v4076 = vsel %vm295, %v255, 0.0
        %v4077 = vsel %vm295, %v256, 0.0
        %v4078 = vsel %vm295, %v257, 0.0
        %v4079 = vsel %vm295, %v258, 0.0
        %v4080 = vsel %vm295, %v259, 0.0
        %v4081 = vsel %vm295, %v260, 0.0
        %v4082 = vsel %vm295, %v261, 0.0
        %v4083 = vsel %vm295, %v262, 0.0
        %v4084 = vsel %vm295, %v263, 0.0
        %v4085 = vsel %vm295, %v264, 0.0
        %v4086 = vsel %vm295, %v265, 0.0
        %v4087 = vsel %vm295, %v266, 0.0
        %v4088 = vsel %vm295, %v267, 0.0
        %v4089 = vsel %vm295, %v268, 0.0
        %v4090 = vsel %vm295, %v269, 0.0
        %v4091 = vsel %vm295, %v270, 0.0
        %v4092 = vadd.f32 %v4028, %v4060
        %v4093 = vadd.f32 %v4029, %v4061
        %v4094 = vadd.f32 %v4030, %v4062
        %v4095 = vadd.f32 %v4031, %v4063
        %v4096 = vadd.f32 %v4032, %v4064
        %v4097 = vadd.f32 %v4033, %v4065
        %v4098 = vadd.f32 %v4034, %v4066
        %v4099 = vadd.f32 %v4035, %v4067
        %v4100 = vadd.f32 %v4036, %v4068
        %v4101 = vadd.f32 %v4037, %v4069
        %v4102 = vadd.f32 %v4038, %v4070
        %v4103 = vadd.f32 %v4039, %v4071
        %v4104 = vadd.f32 %v4040, %v4072
        %v4105 = vadd.f32 %v4041, %v4073
        %v4106 = vadd.f32 %v4042, %v4074
        %v4107 = vadd.f32 %v4043, %v4075
        %v4108 = vadd.f32 %v4044, %v4076
        %v4109 = vadd.f32 %v4045, %v4077
        %v4110 = vadd.f32 %v4046, %v4078
        %v4111 = vadd.f32 %v4047, %v4079
        %v4112 = vadd.f32 %v4048, %v4080
        %v4113 = vadd.f32 %v4049, %v4081
        %v4114 = vadd.f32 %v4050, %v4082
        %v4115 = vadd.f32 %v4051, %v4083
        %v4116 = vadd.f32 %v4052, %v4084
        %v4117 = vadd.f32 %v4053, %v4085
        %v4118 = vadd.f32 %v4054, %v4086
        %v4119 = vadd.f32 %v4055, %v4087
        %v4120 = vadd.f32 %v4056, %v4088
        %v4121 = vadd.f32 %v4057, %v4089
        %v4122 = vadd.f32 %v4058, %v4090
        %v4123 = vadd.f32 %v4059, %v4091
        %4124 = vst [vmem:[%s232] sm:$0xff] %v4092
        %4125 = vst [vmem:[%s232 + $0x8] sm:$0xff] %v4093
        %4126 = vst [vmem:[%s232 + $0x10] sm:$0xff] %v4094
        %4127 = vst [vmem:[%s232 + $0x18] sm:$0xff] %v4095
        %4128 = vst [vmem:[%s232 + $0x20] sm:$0xff] %v4096
        %4129 = vst [vmem:[%s232 + $0x28] sm:$0xff] %v4097
        %4130 = vst [vmem:[%s232 + $0x30] sm:$0xff] %v4098
        %4131 = vst [vmem:[%s232 + $0x38] sm:$0xff] %v4099
        %4132 = vst [vmem:[%s232 + $0x40] sm:$0xff] %v4100
        %4133 = vst [vmem:[%s232 + $0x48] sm:$0xff] %v4101
        %4134 = vst [vmem:[%s232 + $0x50] sm:$0xff] %v4102
        %4135 = vst [vmem:[%s232 + $0x58] sm:$0xff] %v4103
        %4136 = vst [vmem:[%s232 + $0x60] sm:$0xff] %v4104
        %4137 = vst [vmem:[%s232 + $0x68] sm:$0xff] %v4105
        %4138 = vst [vmem:[%s232 + $0x70] sm:$0xff] %v4106
        %4139 = vst [vmem:[%s232 + $0x78] sm:$0xff] %v4107
        %4140 = vst [vmem:[%s232 + $0x80] sm:$0xff] %v4108
        %4141 = vst [vmem:[%s232 + $0x88] sm:$0xff] %v4109
        %4142 = vst [vmem:[%s232 + $0x90] sm:$0xff] %v4110
        %4143 = vst [vmem:[%s232 + $0x98] sm:$0xff] %v4111
        %4144 = vst [vmem:[%s232 + $0xa0] sm:$0xff] %v4112
        %4145 = vst [vmem:[%s232 + $0xa8] sm:$0xff] %v4113
        %4146 = vst [vmem:[%s232 + $0xb0] sm:$0xff] %v4114
        %4147 = vst [vmem:[%s232 + $0xb8] sm:$0xff] %v4115
        %4148 = vst [vmem:[%s232 + $0xc0] sm:$0xff] %v4116
        %4149 = vst [vmem:[%s232 + $0xc8] sm:$0xff] %v4117
        %4150 = vst [vmem:[%s232 + $0xd0] sm:$0xff] %v4118
        %4151 = vst [vmem:[%s232 + $0xd8] sm:$0xff] %v4119
        %4152 = vst [vmem:[%s232 + $0xe0] sm:$0xff] %v4120
        %4153 = vst [vmem:[%s232 + $0xe8] sm:$0xff] %v4121
        %4154 = vst [vmem:[%s232 + $0xf0] sm:$0xff] %v4122
        %4155 = vst [vmem:[%s232 + $0xf8] sm:$0xff] %v4123
        %s4156 = sand.u32 %s138, 1
        %s4157 = scalar_lea.sflag [#allocation4], %s4156
        %s4158 = sand.u32 %s138, 1
        %s4159 = smul.addr %s4158, 256
        %s4160 = scalar_lea.vmem [#allocation5], %s4159
        // Predicated region
        $region45: #{tpu_custom_call.1} parent=39 // pred_check
          %p4161 = pneg %p148
        $region46: #{tpu_custom_call.1} parent=39 // pred_check_branch
          %4163 = sbr.rel (%p4161) target = $region48
        $region47: #{tpu_custom_call.1} parent=39 // pred_region
          %s4165 = ssub.s32 4096, 4096
          %4166 = vsyncadd %s4157, %s4165
          %s4167 = smul.addr %s20, 32
          %s4168 = smul.addr %s4167, 128
          %s4169 = scalar_lea.hbm %s5, %s4168
          %s4170 = sshll.u32 %s4160, 4
          %s4171 = int_to_ptr.vmem [resolvable:$true] %s4170
          %4176 = dma.vmem_to_hbm [thread:$0]  %s4171, 4096, %s4169, %s4157, 128, 128, 8
        $region48: #{tpu_custom_call.1} parent=39 // pred_fallthru
          _
      $region40: #{tpu_custom_call.1} parent=5 // pred_fallthru
        _
      %p4177 = scmp.le.s32.totalorder 2, %s15
      // Predicated region
      $region49: #{tpu_custom_call.1} parent=5 // pred_check
        %p4178 = pneg %p4177
      $region50: #{tpu_custom_call.1} parent=5 // pred_check_branch
        %4180 = sbr.rel (%p4178) target = $region52
      $region51: #{tpu_custom_call.1} parent=5 // pred_region
        %s4181 = ssub.s32 %s15, 2
        // Predicated region
        $region53: #{tpu_custom_call.1} parent=51 // pred_check
          %p4182 = pneg %p154
        $region54: #{tpu_custom_call.1} parent=51 // pred_check_branch
          %4184 = sbr.rel (%p4182) target = $region56
        $region55: #{tpu_custom_call.1} parent=51 // pred_region
          %s4185 = sand.u32 %s139, 1
          %s4186 = scalar_lea.sflag [#allocation4], %s4185
          %s4187 = sand.u32 %s139, 1
          %s4188 = smul.addr %s4187, 256
          %s4189 = scalar_lea.vmem [#allocation5], %s4188
          %4190 = dma.done %s4186, 4096
        $region56: #{tpu_custom_call.1} parent=51 // pred_fallthru
          _
      $region52: #{tpu_custom_call.1} parent=5 // pred_fallthru
        _
    $region6: #{tpu_custom_call.1} parent=1 // loop_footer
      %s19 = sadd.s32 1, %s15
    $region7: #{tpu_custom_call.1} parent=1 // loop_footer_branch
      %14 = sbr.rel target = $region3
    $region8: #{tpu_custom_call.1} parent=1 // loop_exit
      _
    %4191 = vsyncpa [#allocation3], 1
    %s4192 = scalar_lea.sflag [#allocation3], 1
    %4193 = vsyncpa %s4192, 1
    %4194 = vsyncpa [#allocation4], 1
    %s4195 = scalar_lea.sflag [#allocation4], 1
    %4196 = vsyncpa %s4195, 1

</llo_original>
